<compile_context>
chip_gen: v7x
topology: tpu7x:2x2x1
jax: 0.10.0
libtpu: 0.0.40
codegen_flags: <defaults>
</compile_context>

<pallas_src>
import jax
import jax.numpy as jnp
from jax.experimental import pallas as pl
from jax.experimental.pallas import tpu as pltpu

# ---- scaled-down vit_b_16 config (same structure, small dims) ----------------
IMG = 32          # image size
PATCH = 16        # patch size (as in vit_b_16)
IN_CH = 3         # RGB
HIDDEN = 64       # hidden_dim
NUM_HEADS = 4
NUM_LAYERS = 2
MLP_DIM = 128
LN_EPS = 1e-6     # torchvision uses LayerNorm(eps=1e-6)

N_PATCHES = (IMG // PATCH) ** 2       # 4
SEQ = N_PATCHES + 1                   # 5 (CLS + patches)
SEQ_PAD = 8                           # pad seq to the 8-sublane tile
KDIM = IN_CH * PATCH * PATCH          # 768
HEAD_DIM = HIDDEN // NUM_HEADS        # 16

_INV_SQRT2 = 0.7071067811865476
_NEG_BIG = -1e30                      # key-padding mask value (finite, no inf-inf)


# ============================ in-kernel helpers ================================

def _erf_approx(x):
    # TODO(synk): lax.erf has no guaranteed Mosaic lowering; use a float32-accurate
    # polynomial (Abramowitz & Stegun 7.1.26, max abs err ~1.5e-7) for exact GELU.
    a1, a2, a3, a4, a5 = 0.254829592, -0.284496736, 1.421413741, -1.453152027, 1.061405429
    p = 0.3275911
    sign = jnp.where(x >= 0.0, 1.0, -1.0)
    ax = jnp.abs(x)
    t = 1.0 / (1.0 + p * ax)
    poly = ((((a5 * t + a4) * t + a3) * t + a2) * t + a1) * t
    return sign * (1.0 - poly * jnp.exp(-ax * ax))


def _gelu_exact(x):
    # nn.GELU() (approximate='none'):  0.5 * x * (1 + erf(x / sqrt(2)))
    return 0.5 * x * (1.0 + _erf_approx(x * _INV_SQRT2))


def _layernorm(x, g, b):
    mean = jnp.mean(x, axis=-1, keepdims=True)
    xc = x - mean
    var = jnp.mean(xc * xc, axis=-1, keepdims=True)
    return xc * jax.lax.rsqrt(var + LN_EPS) * g + b


# ============================ fused Pallas kernel ==============================
# One grid step == one batch element; everything (weights + activations) lives
# in VMEM (blocked specs), activations are (SEQ_PAD, D) sublane-aligned.

def _vit_fused_kernel(
    patches_ref,                      # (S_PAD, KDIM) bf16  (rows 0 and SEQ.. are zero)
    wp_ref,                           # (KDIM, D) bf16
    bias_pos_ref,                     # (S_PAD, D) f32  (cls+pos / conv_b+pos / 0)
    ln1_w_ref, ln1_b_ref,             # (L, 1, D) f32
    in_w_ref, in_b_ref,               # (L, D, 3D) bf16 (Q cols pre-scaled), (L, 1, 3D) f32
    out_w_ref, out_b_ref,             # (L, D, D) bf16, (L, 1, D) f32
    ln2_w_ref, ln2_b_ref,             # (L, 1, D) f32
    fc1_w_ref, fc1_b_ref,             # (L, D, MLP) bf16, (L, 1, MLP) f32
    fc2_w_ref, fc2_b_ref,             # (L, MLP, D) bf16, (L, 1, D) f32
    lnf_w_ref, lnf_b_ref,             # (1, D) f32
    o_ref,                            # (1, D) f32 out  (CLS embedding of this batch)
):
    bf16 = jnp.bfloat16
    d = HIDDEN
    dh = HEAD_DIM
    nh = NUM_HEADS
    s_pad = SEQ_PAD

    # ---- patch embedding (bf16 MXU inputs, f32 accumulation) -----------------
    # Row 0 (CLS slot) and padded rows of patches are zero; bias_pos carries
    # cls+pos[0], conv_b+pos[1:], and zeros for padded rows.
    x = jnp.dot(patches_ref[...], wp_ref[...],
                preferred_element_type=jnp.float32) + bias_pos_ref[...]   # (S_PAD, D) f32

    # ---- key-padding bias: 0 for real keys, -1e30 for padded key columns -----
    col = jax.lax.broadcasted_iota(jnp.int32, (1, s_pad), 1)
    key_bias = jnp.where(col < SEQ, 0.0, _NEG_BIG)                        # (1, S_PAD) f32

    # ---- transformer layers (statically unrolled, weights resident in VMEM) --
    for l in range(NUM_LAYERS):
        # --- attention block (batched over heads, 2 MXU ops per layer) ---
        h = _layernorm(x, ln1_w_ref[l], ln1_b_ref[l])
        qkv = jnp.dot(h.astype(bf16), in_w_ref[l],
                      preferred_element_type=jnp.float32) + in_b_ref[l]   # (S_PAD, 3D) f32
        qkv = qkv.astype(bf16)                                            # single cast / layer
        # head-major (H, S, dh) tensors
        q = jnp.stack([qkv[:, hh * dh:(hh + 1) * dh] for hh in range(nh)], axis=0)
        k = jnp.stack([qkv[:, d + hh * dh:d + (hh + 1) * dh] for hh in range(nh)], axis=0)
        v = jnp.stack([qkv[:, 2 * d + hh * dh:2 * d + (hh + 1) * dh] for hh in range(nh)], axis=0)
        # scores: 1/sqrt(dh) already folded into Q weights/bias at prepare time
        scores = jax.lax.dot_general(
            q, k, (((2,), (2,)), ((0,), (0,))),
            preferred_element_type=jnp.float32)                           # (H, S, S) f32
        scores = scores + key_bias                                        # mask padded keys
        scores = scores - jnp.max(scores, axis=-1, keepdims=True)
        p = jnp.exp(scores)
        p = p * pl.reciprocal(jnp.sum(p, axis=-1, keepdims=True), approx=True)
        ohd = jax.lax.dot_general(
            p.astype(bf16), v, (((2,), (1,)), ((0,), (0,))),
            preferred_element_type=jnp.float32)                           # (H, S, dh) f32
        attn = jnp.concatenate([ohd[hh] for hh in range(nh)], axis=-1)    # (S_PAD, D)
        x = x + jnp.dot(attn.astype(bf16), out_w_ref[l],
                        preferred_element_type=jnp.float32) + out_b_ref[l]

        # --- MLP block ---
        h = _layernorm(x, ln2_w_ref[l], ln2_b_ref[l])
        h1 = jnp.dot(h.astype(bf16), fc1_w_ref[l],
                     preferred_element_type=jnp.float32) + fc1_b_ref[l]
        h1 = _gelu_exact(h1)
        x = x + jnp.dot(h1.astype(bf16), fc2_w_ref[l],
                        preferred_element_type=jnp.float32) + fc2_b_ref[l]

    # ---- final LN on the CLS row only + single contiguous (1, D) store -------
    o_ref[...] = _layernorm(x[0:1, :], lnf_w_ref[...], lnf_b_ref[...])


# ============================ wrapper (glue only) ==============================

def extract_patches(x):
    # NCHW -> (B, n_patches, C*P*P), flattened in (C, ph, pw) order so it
    # matches conv_proj.weight.reshape(D, C*P*P); patch order is row-major
    # over (n_h, n_w), matching torchvision's reshape+permute.
    b, c, h, w = x.shape
    nh, nw = h // PATCH, w // PATCH
    x = x.reshape(b, c, nh, PATCH, nw, PATCH)
    x = x.transpose(0, 2, 4, 1, 3, 5)
    return x.reshape(b, nh * nw, c * PATCH * PATCH)


def vit_forward(x, fp):
    """x: (B, C, H, W) f32, fp: fused/pre-transposed params (see prepare_params)."""
    b = x.shape[0]
    patches = extract_patches(x)                                       # (B, N, KDIM)
    # 8-sublane-aligned (B, S_PAD, KDIM) layout: row 0 = CLS slot (zeros),
    # rows 1..N = patches, rows N+1..S_PAD-1 = zero padding.  bf16 halves DMA.
    patches_p = jnp.concatenate(
        [jnp.zeros((b, 1, KDIM), patches.dtype),
         patches,
         jnp.zeros((b, SEQ_PAD - SEQ, KDIM), patches.dtype)],
        axis=1).astype(jnp.bfloat16)                                   # (B, S_PAD, KDIM)

    def full(arr):
        # Whole-array block, constant index -> resident in VMEM across grid steps.
        if arr.ndim == 2:
            return pl.BlockSpec(arr.shape, lambda i: (0, 0))
        return pl.BlockSpec(arr.shape, lambda i: (0, 0, 0))

    in_specs = [
        pl.BlockSpec((None, SEQ_PAD, KDIM), lambda i: (i, 0, 0)),      # per-batch patches
        full(fp["w_patch"]), full(fp["bias_pos"]),
        full(fp["ln1_w"]), full(fp["ln1_b"]),
        full(fp["in_w"]), full(fp["in_b"]),
        full(fp["out_w"]), full(fp["out_b"]),
        full(fp["ln2_w"]), full(fp["ln2_b"]),
        full(fp["fc1_w"]), full(fp["fc1_b"]),
        full(fp["fc2_w"]), full(fp["fc2_b"]),
        full(fp["ln_f_w"]), full(fp["ln_f_b"]),
    ]

    # Advisory cost estimate for XLA's scheduler.
    flops_layer = 2 * SEQ_PAD * (3 * HIDDEN * HIDDEN + 2 * SEQ_PAD * HIDDEN
                                 + HIDDEN * HIDDEN + 2 * HIDDEN * MLP_DIM)
    flops = int(b * (2 * SEQ_PAD * KDIM * HIDDEN + NUM_LAYERS * flops_layer))
    transc = int(b * NUM_LAYERS * (NUM_HEADS * SEQ_PAD * SEQ_PAD
                                   + 2 * SEQ_PAD * MLP_DIM))
    w_bytes = sum(int(v.size) * v.dtype.itemsize for v in fp.values())
    bytes_acc = int(patches_p.size) * 2 + w_bytes + b * HIDDEN * 4

    out = pl.pallas_call(
        _vit_fused_kernel,
        grid=(b,),
        in_specs=in_specs,
        out_specs=pl.BlockSpec((None, 1, HIDDEN), lambda i: (i, 0, 0)),
        out_shape=jax.ShapeDtypeStruct((b, 1, HIDDEN), jnp.float32),
        compiler_params=pltpu.CompilerParams(
            dimension_semantics=("parallel",)),                        # v7x: 2 TCs
        cost_estimate=pl.CostEstimate(
            flops=flops, transcendentals=transc, bytes_accessed=bytes_acc),
    )(patches_p, fp["w_patch"], fp["bias_pos"],
      fp["ln1_w"], fp["ln1_b"], fp["in_w"], fp["in_b"],
      fp["out_w"], fp["out_b"], fp["ln2_w"], fp["ln2_b"],
      fp["fc1_w"], fp["fc1_b"], fp["fc2_w"], fp["fc2_b"],
      fp["ln_f_w"], fp["ln_f_b"])
    return out.reshape(b, HIDDEN)


# ============================ params ==========================================

def init_params(key):
    # PyTorch-layout params (nn.Linear weight is (out, in)), same as torchvision.
    keys = jax.random.split(key, 4 + NUM_LAYERS)

    def nrm(k, shape, scale=0.02):
        return (scale * jax.random.normal(k, shape)).astype(jnp.float32)

    params = {
        "conv_w": nrm(keys[0], (HIDDEN, IN_CH, PATCH, PATCH)),
        "conv_b": jnp.zeros((HIDDEN,), jnp.float32),
        "class_token": nrm(keys[1], (1, 1, HIDDEN)),
        "pos_embedding": nrm(keys[2], (1, SEQ, HIDDEN)),
        "ln_w": jnp.ones((HIDDEN,), jnp.float32),
        "ln_b": jnp.zeros((HIDDEN,), jnp.float32),
        "layers": [],
    }
    for l in range(NUM_LAYERS):
        lk = jax.random.split(keys[4 + l], 6)
        params["layers"].append({
            "ln1_w": jnp.ones((HIDDEN,), jnp.float32),
            "ln1_b": jnp.zeros((HIDDEN,), jnp.float32),
            "in_w": nrm(lk[0], (3 * HIDDEN, HIDDEN)),
            "in_b": nrm(lk[1], (3 * HIDDEN,)),
            "out_w": nrm(lk[2], (HIDDEN, HIDDEN)),
            "out_b": jnp.zeros((HIDDEN,), jnp.float32),
            "ln2_w": jnp.ones((HIDDEN,), jnp.float32),
            "ln2_b": jnp.zeros((HIDDEN,), jnp.float32),
            "fc1_w": nrm(lk[3], (MLP_DIM, HIDDEN)),
            "fc1_b": nrm(lk[4], (MLP_DIM,)),
            "fc2_w": nrm(lk[5], (HIDDEN, MLP_DIM)),
            "fc2_b": jnp.zeros((HIDDEN,), jnp.float32),
        })
    return params


def prepare_params(params):
    """One-time conversion to the fused-kernel layout:
       * weights pre-transposed to (K, N), per-layer tensors stacked,
       * all MXU weights (incl. patch embed) pre-cast to bf16,
       * 1/sqrt(dh) score scale folded into the Q columns of in_w / in_b,
       * CLS token, positional embedding and conv bias fused into one
         8-sublane-aligned (S_PAD, D) additive tensor."""
    L = NUM_LAYERS
    layers = params["layers"]
    scale = 1.0 / float(HEAD_DIM) ** 0.5     # 0.25, exactly representable

    def stack(name, tail_shape):
        return jnp.stack([lyr[name] for lyr in layers]).reshape((L,) + tail_shape)

    def stack_t_bf16(name):
        return jnp.stack([lyr[name].T for lyr in layers]).astype(jnp.bfloat16)

    # fused QKV weight with the attention scale folded into the Q columns
    in_w = jnp.stack([lyr["in_w"].T for lyr in layers])                   # (L, D, 3D) f32
    in_w = in_w.at[:, :, :HIDDEN].multiply(scale).astype(jnp.bfloat16)
    in_b = jnp.stack([lyr["in_b"] for lyr in layers])                     # (L, 3D) f32
    in_b = in_b.at[:, :HIDDEN].multiply(scale).reshape(L, 1, 3 * HIDDEN)

    # fused additive row bias: row0 = cls+pos0, rows 1..N = conv_b+pos, pad rows = 0
    pos = params["pos_embedding"].reshape(SEQ, HIDDEN)
    bias_pos = jnp.concatenate([
        params["class_token"].reshape(1, HIDDEN) + pos[0:1, :],
        params["conv_b"].reshape(1, HIDDEN) + pos[1:, :],
        jnp.zeros((SEQ_PAD - SEQ, HIDDEN), jnp.float32),
    ], axis=0)                                                            # (S_PAD, D)

    return {
        "w_patch": params["conv_w"].reshape(HIDDEN, KDIM).T.astype(jnp.bfloat16),
        "bias_pos": bias_pos,
        "ln1_w": stack("ln1_w", (1, HIDDEN)),
        "ln1_b": stack("ln1_b", (1, HIDDEN)),
        "in_w": in_w,                                                     # (L, D, 3D) bf16
        "in_b": in_b,                                                     # (L, 1, 3D) f32
        "out_w": stack_t_bf16("out_w"),                                   # (L, D, D) bf16
        "out_b": stack("out_b", (1, HIDDEN)),
        "ln2_w": stack("ln2_w", (1, HIDDEN)),
        "ln2_b": stack("ln2_b", (1, HIDDEN)),
        "fc1_w": stack_t_bf16("fc1_w"),                                   # (L, D, MLP) bf16
        "fc1_b": stack("fc1_b", (1, MLP_DIM)),
        "fc2_w": stack_t_bf16("fc2_w"),                                   # (L, MLP, D) bf16
        "fc2_b": stack("fc2_b", (1, HIDDEN)),
        "ln_f_w": params["ln_w"].reshape(1, HIDDEN),
        "ln_f_b": params["ln_b"].reshape(1, HIDDEN),
    }


# ============================ pure-jnp reference ===============================

def ref_forward(x, params):
    # f32 reference with identical math (exact erf GELU via jax.nn.gelu)
    b = x.shape[0]
    patches = extract_patches(x)
    kdim = patches.shape[2]
    tok = patches @ params["conv_w"].reshape(HIDDEN, kdim).T + params["conv_b"]
    cls = jnp.broadcast_to(params["class_token"], (b, 1, HIDDEN))
    x = jnp.concatenate([cls, tok], axis=1) + params["pos_embedding"]

    def ln(y, g, beta):
        m = y.mean(-1, keepdims=True)
        v = ((y - m) ** 2).mean(-1, keepdims=True)
        return (y - m) * jax.lax.rsqrt(v + LN_EPS) * g + beta

    for p in params["layers"]:
        h = ln(x, p["ln1_w"], p["ln1_b"])
        s_ = h.shape[1]
        dh = HIDDEN // NUM_HEADS
        qkv = (h @ p["in_w"].T + p["in_b"]).reshape(b, s_, 3, NUM_HEADS, dh)
        q = qkv[:, :, 0].transpose(0, 2, 1, 3)
        k = qkv[:, :, 1].transpose(0, 2, 1, 3)
        v = qkv[:, :, 2].transpose(0, 2, 1, 3)
        att = jax.nn.softmax(
            jnp.einsum("bhqd,bhkd->bhqk", q, k) / (float(dh) ** 0.5), axis=-1)
        o = jnp.einsum("bhqk,bhkd->bhqd", att, v)
        o = o.transpose(0, 2, 1, 3).reshape(b, s_, HIDDEN)
        x = x + (o @ p["out_w"].T + p["out_b"])
        h = ln(x, p["ln2_w"], p["ln2_b"])
        h = jax.nn.gelu(h @ p["fc1_w"].T + p["fc1_b"], approximate=False)
        x = x + (h @ p["fc2_w"].T + p["fc2_b"])
    x = ln(x, params["ln_w"], params["ln_b"])
    return x[:, 0]


if __name__ == "__main__":
    key = jax.random.PRNGKey(0)
    pkey, xkey = jax.random.split(key)
    params = init_params(pkey)
    fused = prepare_params(params)          # one-time: transpose / stack / fold / bf16-cast
    x = jax.random.normal(xkey, (2, IN_CH, IMG, IMG), dtype=jnp.float32)

    out = jax.jit(vit_forward)(x, fused)
    out = jax.block_until_ready(out)

    ref = ref_forward(x, params)
    assert out.shape == (2, HIDDEN)
    assert bool(jnp.isfinite(out).all())
    # bf16 MXU inputs everywhere (incl. patch embed) with f32 accumulation plus
    # approx softmax reciprocal -> bf16-level tolerance vs the f32 reference.
    err = float(jnp.max(jnp.abs(out - ref)))
    assert err < 3e-2, f"max abs err {err}"
    print("KERNEL_OK")
</pallas_src>

<mosaic_0001>
module attributes {stable_mosaic.version = 11 : i64} {
  func.func @_vit_fused_kernel(%arg0: i32, %arg1: memref<1x8x768xbf16, #tpu.memory_space<vmem>>, %arg2: memref<768x64xbf16, #tpu.memory_space<vmem>>, %arg3: memref<8x64xf32, #tpu.memory_space<vmem>>, %arg4: memref<2x1x64xf32, #tpu.memory_space<vmem>>, %arg5: memref<2x1x64xf32, #tpu.memory_space<vmem>>, %arg6: memref<2x64x192xbf16, #tpu.memory_space<vmem>>, %arg7: memref<2x1x192xf32, #tpu.memory_space<vmem>>, %arg8: memref<2x64x64xbf16, #tpu.memory_space<vmem>>, %arg9: memref<2x1x64xf32, #tpu.memory_space<vmem>>, %arg10: memref<2x1x64xf32, #tpu.memory_space<vmem>>, %arg11: memref<2x1x64xf32, #tpu.memory_space<vmem>>, %arg12: memref<2x64x128xbf16, #tpu.memory_space<vmem>>, %arg13: memref<2x1x128xf32, #tpu.memory_space<vmem>>, %arg14: memref<2x128x64xbf16, #tpu.memory_space<vmem>>, %arg15: memref<2x1x64xf32, #tpu.memory_space<vmem>>, %arg16: memref<1x64xf32, #tpu.memory_space<vmem>>, %arg17: memref<1x64xf32, #tpu.memory_space<vmem>>, %arg18: memref<1x1x64xf32, #tpu.memory_space<vmem>>) attributes {dimension_semantics = [#tpu.dimension_semantics<parallel>], iteration_bounds = array<i64: 2>, scalar_prefetch = 0 : i64, scratch_operands = 0 : i64, tpu.core_type = #tpu.core_type<tc>, window_params = [{transform_indices = @transform_0, window_bounds = array<i64: 1, 8, 768>}, {pipeline_mode = #tpu.pipeline_mode<synchronous>, transform_indices = @transform_1, window_bounds = array<i64: 768, 64>}, {pipeline_mode = #tpu.pipeline_mode<synchronous>, transform_indices = @transform_2, window_bounds = array<i64: 8, 64>}, {pipeline_mode = #tpu.pipeline_mode<synchronous>, transform_indices = @transform_3, window_bounds = array<i64: 2, 1, 64>}, {pipeline_mode = #tpu.pipeline_mode<synchronous>, transform_indices = @transform_4, window_bounds = array<i64: 2, 1, 64>}, {pipeline_mode = #tpu.pipeline_mode<synchronous>, transform_indices = @transform_5, window_bounds = array<i64: 2, 64, 192>}, {pipeline_mode = #tpu.pipeline_mode<synchronous>, transform_indices = @transform_6, window_bounds = array<i64: 2, 1, 192>}, {pipeline_mode = #tpu.pipeline_mode<synchronous>, transform_indices = @transform_7, window_bounds = array<i64: 2, 64, 64>}, {pipeline_mode = #tpu.pipeline_mode<synchronous>, transform_indices = @transform_8, window_bounds = array<i64: 2, 1, 64>}, {pipeline_mode = #tpu.pipeline_mode<synchronous>, transform_indices = @transform_9, window_bounds = array<i64: 2, 1, 64>}, {pipeline_mode = #tpu.pipeline_mode<synchronous>, transform_indices = @transform_10, window_bounds = array<i64: 2, 1, 64>}, {pipeline_mode = #tpu.pipeline_mode<synchronous>, transform_indices = @transform_11, window_bounds = array<i64: 2, 64, 128>}, {pipeline_mode = #tpu.pipeline_mode<synchronous>, transform_indices = @transform_12, window_bounds = array<i64: 2, 1, 128>}, {pipeline_mode = #tpu.pipeline_mode<synchronous>, transform_indices = @transform_13, window_bounds = array<i64: 2, 128, 64>}, {pipeline_mode = #tpu.pipeline_mode<synchronous>, transform_indices = @transform_14, window_bounds = array<i64: 2, 1, 64>}, {pipeline_mode = #tpu.pipeline_mode<synchronous>, transform_indices = @transform_15, window_bounds = array<i64: 1, 64>}, {pipeline_mode = #tpu.pipeline_mode<synchronous>, transform_indices = @transform_16, window_bounds = array<i64: 1, 64>}, {transform_indices = @transform_17, window_bounds = array<i64: 1, 1, 64>}]} {
    %c0 = arith.constant 0 : index
    %c0_0 = arith.constant 0 : index
    %c0_1 = arith.constant 0 : index
    %0 = vector.load %arg1[%c0, %c0_0, %c0_1] : memref<1x8x768xbf16, #tpu.memory_space<vmem>>, vector<1x8x768xbf16>
    %1 = vector.shape_cast %0 : vector<1x8x768xbf16> to vector<8x768xbf16>
    %c0_2 = arith.constant 0 : index
    %c0_3 = arith.constant 0 : index
    %2 = vector.load %arg2[%c0_2, %c0_3] : memref<768x64xbf16, #tpu.memory_space<vmem>>, vector<768x64xbf16>
    %cst = arith.constant dense<0.000000e+00> : vector<8x64xf32>
    %3 = tpu.matmul %1, %2, %cst {dimension_numbers = #tpu.dot_dimension_numbers<[1], [0], [0], [1], [0, 0, 1, 1], [], []>} : vector<8x768xbf16>, vector<768x64xbf16>, vector<8x64xf32> -> vector<8x64xf32>
    %c0_4 = arith.constant 0 : index
    %c0_5 = arith.constant 0 : index
    %4 = vector.load %arg3[%c0_4, %c0_5] : memref<8x64xf32, #tpu.memory_space<vmem>>, vector<8x64xf32>
    %5 = arith.addf %3, %4 : vector<8x64xf32>
    %6 = tpu.iota {dimensions = array<i32: 1>} : vector<1x8xi32>
    %c5_i32 = arith.constant 5 : i32
    %7 = vector.broadcast %c5_i32 : i32 to vector<1x8xi32>
    %8 = arith.cmpi slt, %6, %7 : vector<1x8xi32>
    %cst_6 = arith.constant 0.000000e+00 : f32
    %cst_7 = arith.constant -1.000000e+30 : f32
    %9 = vector.broadcast %cst_6 : f32 to vector<1x8xf32>
    %10 = vector.broadcast %cst_7 : f32 to vector<1x8xf32>
    %11 = arith.select %8, %9, %10 : vector<1x8xi1>, vector<1x8xf32>
    %c0_8 = arith.constant 0 : index
    %c0_9 = arith.constant 0 : index
    %c0_10 = arith.constant 0 : index
    %12 = vector.load %arg4[%c0_8, %c0_9, %c0_10] : memref<2x1x64xf32, #tpu.memory_space<vmem>>, vector<1x1x64xf32>
    %13 = vector.shape_cast %12 : vector<1x1x64xf32> to vector<1x64xf32>
    %c0_11 = arith.constant 0 : index
    %c0_12 = arith.constant 0 : index
    %c0_13 = arith.constant 0 : index
    %14 = vector.load %arg5[%c0_11, %c0_12, %c0_13] : memref<2x1x64xf32, #tpu.memory_space<vmem>>, vector<1x1x64xf32>
    %15 = vector.shape_cast %14 : vector<1x1x64xf32> to vector<1x64xf32>
    %cst_14 = arith.constant dense<0.000000e+00> : vector<8xf32>
    %16 = vector.multi_reduction <add>, %5, %cst_14 [1] : vector<8x64xf32> to vector<8xf32>
    %17 = vector.shape_cast %16 : vector<8xf32> to vector<8x1xf32>
    %cst_15 = arith.constant 6.400000e+01 : f32
    %18 = vector.broadcast %cst_15 : f32 to vector<8x1xf32>
    %19 = arith.divf %17, %18 : vector<8x1xf32>
    %20 = vector.broadcast %19 : vector<8x1xf32> to vector<8x64xf32>
    %21 = arith.subf %5, %20 : vector<8x64xf32>
    %22 = arith.mulf %21, %21 : vector<8x64xf32>
    %cst_16 = arith.constant dense<0.000000e+00> : vector<8xf32>
    %23 = vector.multi_reduction <add>, %22, %cst_16 [1] : vector<8x64xf32> to vector<8xf32>
    %24 = vector.shape_cast %23 : vector<8xf32> to vector<8x1xf32>
    %cst_17 = arith.constant 6.400000e+01 : f32
    %25 = vector.broadcast %cst_17 : f32 to vector<8x1xf32>
    %26 = arith.divf %24, %25 : vector<8x1xf32>
    %cst_18 = arith.constant 9.99999997E-7 : f32
    %27 = vector.broadcast %cst_18 : f32 to vector<8x1xf32>
    %28 = arith.addf %26, %27 : vector<8x1xf32>
    %29 = math.rsqrt %28 : vector<8x1xf32>
    %30 = vector.broadcast %29 : vector<8x1xf32> to vector<8x64xf32>
    %31 = arith.mulf %21, %30 : vector<8x64xf32>
    %32 = vector.broadcast %13 : vector<1x64xf32> to vector<8x64xf32>
    %33 = arith.mulf %31, %32 : vector<8x64xf32>
    %34 = vector.broadcast %15 : vector<1x64xf32> to vector<8x64xf32>
    %35 = arith.addf %33, %34 : vector<8x64xf32>
    %36 = arith.truncf %35 : vector<8x64xf32> to vector<8x64xbf16>
    %c0_19 = arith.constant 0 : index
    %c0_20 = arith.constant 0 : index
    %c0_21 = arith.constant 0 : index
    %37 = vector.load %arg6[%c0_19, %c0_20, %c0_21] : memref<2x64x192xbf16, #tpu.memory_space<vmem>>, vector<1x64x192xbf16>
    %38 = vector.shape_cast %37 : vector<1x64x192xbf16> to vector<64x192xbf16>
    %cst_22 = arith.constant dense<0.000000e+00> : vector<8x192xf32>
    %39 = tpu.matmul %36, %38, %cst_22 {dimension_numbers = #tpu.dot_dimension_numbers<[1], [0], [0], [1], [0, 0, 1, 1], [], []>} : vector<8x64xbf16>, vector<64x192xbf16>, vector<8x192xf32> -> vector<8x192xf32>
    %c0_23 = arith.constant 0 : index
    %c0_24 = arith.constant 0 : index
    %c0_25 = arith.constant 0 : index
    %40 = vector.load %arg7[%c0_23, %c0_24, %c0_25] : memref<2x1x192xf32, #tpu.memory_space<vmem>>, vector<1x1x192xf32>
    %41 = vector.shape_cast %40 : vector<1x1x192xf32> to vector<1x192xf32>
    %42 = vector.broadcast %41 : vector<1x192xf32> to vector<8x192xf32>
    %43 = arith.addf %39, %42 : vector<8x192xf32>
    %44 = arith.truncf %43 : vector<8x192xf32> to vector<8x192xbf16>
    %45 = vector.extract_strided_slice %44 {offsets = [0, 0], sizes = [8, 16], strides = [1, 1]} : vector<8x192xbf16> to vector<8x16xbf16>
    %46 = vector.extract_strided_slice %44 {offsets = [0, 16], sizes = [8, 16], strides = [1, 1]} : vector<8x192xbf16> to vector<8x16xbf16>
    %47 = vector.extract_strided_slice %44 {offsets = [0, 32], sizes = [8, 16], strides = [1, 1]} : vector<8x192xbf16> to vector<8x16xbf16>
    %48 = vector.extract_strided_slice %44 {offsets = [0, 48], sizes = [8, 16], strides = [1, 1]} : vector<8x192xbf16> to vector<8x16xbf16>
    %49 = vector.shape_cast %45 : vector<8x16xbf16> to vector<1x8x16xbf16>
    %50 = vector.shape_cast %46 : vector<8x16xbf16> to vector<1x8x16xbf16>
    %51 = vector.shape_cast %47 : vector<8x16xbf16> to vector<1x8x16xbf16>
    %52 = vector.shape_cast %48 : vector<8x16xbf16> to vector<1x8x16xbf16>
    %53 = tpu.concatenate %49, %50, %51, %52 in 0 : vector<1x8x16xbf16>, vector<1x8x16xbf16>, vector<1x8x16xbf16>, vector<1x8x16xbf16> -> vector<4x8x16xbf16>
    %54 = vector.extract_strided_slice %44 {offsets = [0, 64], sizes = [8, 16], strides = [1, 1]} : vector<8x192xbf16> to vector<8x16xbf16>
    %55 = vector.extract_strided_slice %44 {offsets = [0, 80], sizes = [8, 16], strides = [1, 1]} : vector<8x192xbf16> to vector<8x16xbf16>
    %56 = vector.extract_strided_slice %44 {offsets = [0, 96], sizes = [8, 16], strides = [1, 1]} : vector<8x192xbf16> to vector<8x16xbf16>
    %57 = vector.extract_strided_slice %44 {offsets = [0, 112], sizes = [8, 16], strides = [1, 1]} : vector<8x192xbf16> to vector<8x16xbf16>
    %58 = vector.shape_cast %54 : vector<8x16xbf16> to vector<1x8x16xbf16>
    %59 = vector.shape_cast %55 : vector<8x16xbf16> to vector<1x8x16xbf16>
    %60 = vector.shape_cast %56 : vector<8x16xbf16> to vector<1x8x16xbf16>
    %61 = vector.shape_cast %57 : vector<8x16xbf16> to vector<1x8x16xbf16>
    %62 = tpu.concatenate %58, %59, %60, %61 in 0 : vector<1x8x16xbf16>, vector<1x8x16xbf16>, vector<1x8x16xbf16>, vector<1x8x16xbf16> -> vector<4x8x16xbf16>
    %63 = vector.extract_strided_slice %44 {offsets = [0, 128], sizes = [8, 16], strides = [1, 1]} : vector<8x192xbf16> to vector<8x16xbf16>
    %64 = vector.extract_strided_slice %44 {offsets = [0, 144], sizes = [8, 16], strides = [1, 1]} : vector<8x192xbf16> to vector<8x16xbf16>
    %65 = vector.extract_strided_slice %44 {offsets = [0, 160], sizes = [8, 16], strides = [1, 1]} : vector<8x192xbf16> to vector<8x16xbf16>
    %66 = vector.extract_strided_slice %44 {offsets = [0, 176], sizes = [8, 16], strides = [1, 1]} : vector<8x192xbf16> to vector<8x16xbf16>
    %67 = vector.shape_cast %63 : vector<8x16xbf16> to vector<1x8x16xbf16>
    %68 = vector.shape_cast %64 : vector<8x16xbf16> to vector<1x8x16xbf16>
    %69 = vector.shape_cast %65 : vector<8x16xbf16> to vector<1x8x16xbf16>
    %70 = vector.shape_cast %66 : vector<8x16xbf16> to vector<1x8x16xbf16>
    %71 = tpu.concatenate %67, %68, %69, %70 in 0 : vector<1x8x16xbf16>, vector<1x8x16xbf16>, vector<1x8x16xbf16>, vector<1x8x16xbf16> -> vector<4x8x16xbf16>
    %cst_26 = arith.constant dense<0.000000e+00> : vector<4x8x8xf32>
    %72 = tpu.matmul %53, %62, %cst_26 {dimension_numbers = #tpu.dot_dimension_numbers<[2], [2], [1], [1], [0, 0, 0, 1, 1, 1], [0], [0]>} : vector<4x8x16xbf16>, vector<4x8x16xbf16>, vector<4x8x8xf32> -> vector<4x8x8xf32>
    %73 = vector.shape_cast %11 : vector<1x8xf32> to vector<1x1x8xf32>
    %74 = vector.broadcast %73 : vector<1x1x8xf32> to vector<4x8x8xf32>
    %75 = arith.addf %72, %74 : vector<4x8x8xf32>
    %cst_27 = arith.constant dense<0xFF800000> : vector<4x8xf32>
    %76 = vector.multi_reduction <maximumf>, %75, %cst_27 [2] : vector<4x8x8xf32> to vector<4x8xf32>
    %77 = vector.shape_cast %76 : vector<4x8xf32> to vector<4x8x1xf32>
    %78 = vector.broadcast %77 : vector<4x8x1xf32> to vector<4x8x8xf32>
    %79 = arith.subf %75, %78 : vector<4x8x8xf32>
    %80 = math.exp %79 : vector<4x8x8xf32>
    %cst_28 = arith.constant dense<0.000000e+00> : vector<4x8xf32>
    %81 = vector.multi_reduction <add>, %80, %cst_28 [2] : vector<4x8x8xf32> to vector<4x8xf32>
    %82 = vector.shape_cast %81 : vector<4x8xf32> to vector<4x8x1xf32>
    %83 = tpu.reciprocal %82 {approx = true} : vector<4x8x1xf32> -> vector<4x8x1xf32>
    %84 = vector.broadcast %83 : vector<4x8x1xf32> to vector<4x8x8xf32>
    %85 = arith.mulf %80, %84 : vector<4x8x8xf32>
    %86 = arith.truncf %85 : vector<4x8x8xf32> to vector<4x8x8xbf16>
    %cst_29 = arith.constant dense<0.000000e+00> : vector<4x8x16xf32>
    %87 = tpu.matmul %86, %71, %cst_29 {dimension_numbers = #tpu.dot_dimension_numbers<[2], [1], [1], [2], [0, 0, 0, 1, 1, 2], [0], [0]>} : vector<4x8x8xbf16>, vector<4x8x16xbf16>, vector<4x8x16xf32> -> vector<4x8x16xf32>
    %88 = vector.extract_strided_slice %87 {offsets = [0, 0, 0], sizes = [1, 8, 16], strides = [1, 1, 1]} : vector<4x8x16xf32> to vector<1x8x16xf32>
    %89 = vector.shape_cast %88 : vector<1x8x16xf32> to vector<8x16xf32>
    %90 = vector.extract_strided_slice %87 {offsets = [1, 0, 0], sizes = [1, 8, 16], strides = [1, 1, 1]} : vector<4x8x16xf32> to vector<1x8x16xf32>
    %91 = vector.shape_cast %90 : vector<1x8x16xf32> to vector<8x16xf32>
    %92 = vector.extract_strided_slice %87 {offsets = [2, 0, 0], sizes = [1, 8, 16], strides = [1, 1, 1]} : vector<4x8x16xf32> to vector<1x8x16xf32>
    %93 = vector.shape_cast %92 : vector<1x8x16xf32> to vector<8x16xf32>
    %94 = vector.extract_strided_slice %87 {offsets = [3, 0, 0], sizes = [1, 8, 16], strides = [1, 1, 1]} : vector<4x8x16xf32> to vector<1x8x16xf32>
    %95 = vector.shape_cast %94 : vector<1x8x16xf32> to vector<8x16xf32>
    %96 = tpu.concatenate %89, %91, %93, %95 in 1 : vector<8x16xf32>, vector<8x16xf32>, vector<8x16xf32>, vector<8x16xf32> -> vector<8x64xf32>
    %97 = arith.truncf %96 : vector<8x64xf32> to vector<8x64xbf16>
    %c0_30 = arith.constant 0 : index
    %c0_31 = arith.constant 0 : index
    %c0_32 = arith.constant 0 : index
    %98 = vector.load %arg8[%c0_30, %c0_31, %c0_32] : memref<2x64x64xbf16, #tpu.memory_space<vmem>>, vector<1x64x64xbf16>
    %99 = vector.shape_cast %98 : vector<1x64x64xbf16> to vector<64x64xbf16>
    %cst_33 = arith.constant dense<0.000000e+00> : vector<8x64xf32>
    %100 = tpu.matmul %97, %99, %cst_33 {dimension_numbers = #tpu.dot_dimension_numbers<[1], [0], [0], [1], [0, 0, 1, 1], [], []>} : vector<8x64xbf16>, vector<64x64xbf16>, vector<8x64xf32> -> vector<8x64xf32>
    %101 = arith.addf %5, %100 : vector<8x64xf32>
    %c0_34 = arith.constant 0 : index
    %c0_35 = arith.constant 0 : index
    %c0_36 = arith.constant 0 : index
    %102 = vector.load %arg9[%c0_34, %c0_35, %c0_36] : memref<2x1x64xf32, #tpu.memory_space<vmem>>, vector<1x1x64xf32>
    %103 = vector.shape_cast %102 : vector<1x1x64xf32> to vector<1x64xf32>
    %104 = vector.broadcast %103 : vector<1x64xf32> to vector<8x64xf32>
    %105 = arith.addf %101, %104 : vector<8x64xf32>
    %c0_37 = arith.constant 0 : index
    %c0_38 = arith.constant 0 : index
    %c0_39 = arith.constant 0 : index
    %106 = vector.load %arg10[%c0_37, %c0_38, %c0_39] : memref<2x1x64xf32, #tpu.memory_space<vmem>>, vector<1x1x64xf32>
    %107 = vector.shape_cast %106 : vector<1x1x64xf32> to vector<1x64xf32>
    %c0_40 = arith.constant 0 : index
    %c0_41 = arith.constant 0 : index
    %c0_42 = arith.constant 0 : index
    %108 = vector.load %arg11[%c0_40, %c0_41, %c0_42] : memref<2x1x64xf32, #tpu.memory_space<vmem>>, vector<1x1x64xf32>
    %109 = vector.shape_cast %108 : vector<1x1x64xf32> to vector<1x64xf32>
    %cst_43 = arith.constant dense<0.000000e+00> : vector<8xf32>
    %110 = vector.multi_reduction <add>, %105, %cst_43 [1] : vector<8x64xf32> to vector<8xf32>
    %111 = vector.shape_cast %110 : vector<8xf32> to vector<8x1xf32>
    %cst_44 = arith.constant 6.400000e+01 : f32
    %112 = vector.broadcast %cst_44 : f32 to vector<8x1xf32>
    %113 = arith.divf %111, %112 : vector<8x1xf32>
    %114 = vector.broadcast %113 : vector<8x1xf32> to vector<8x64xf32>
    %115 = arith.subf %105, %114 : vector<8x64xf32>
    %116 = arith.mulf %115, %115 : vector<8x64xf32>
    %cst_45 = arith.constant dense<0.000000e+00> : vector<8xf32>
    %117 = vector.multi_reduction <add>, %116, %cst_45 [1] : vector<8x64xf32> to vector<8xf32>
    %118 = vector.shape_cast %117 : vector<8xf32> to vector<8x1xf32>
    %cst_46 = arith.constant 6.400000e+01 : f32
    %119 = vector.broadcast %cst_46 : f32 to vector<8x1xf32>
    %120 = arith.divf %118, %119 : vector<8x1xf32>
    %cst_47 = arith.constant 9.99999997E-7 : f32
    %121 = vector.broadcast %cst_47 : f32 to vector<8x1xf32>
    %122 = arith.addf %120, %121 : vector<8x1xf32>
    %123 = math.rsqrt %122 : vector<8x1xf32>
    %124 = vector.broadcast %123 : vector<8x1xf32> to vector<8x64xf32>
    %125 = arith.mulf %115, %124 : vector<8x64xf32>
    %126 = vector.broadcast %107 : vector<1x64xf32> to vector<8x64xf32>
    %127 = arith.mulf %125, %126 : vector<8x64xf32>
    %128 = vector.broadcast %109 : vector<1x64xf32> to vector<8x64xf32>
    %129 = arith.addf %127, %128 : vector<8x64xf32>
    %130 = arith.truncf %129 : vector<8x64xf32> to vector<8x64xbf16>
    %c0_48 = arith.constant 0 : index
    %c0_49 = arith.constant 0 : index
    %c0_50 = arith.constant 0 : index
    %131 = vector.load %arg12[%c0_48, %c0_49, %c0_50] : memref<2x64x128xbf16, #tpu.memory_space<vmem>>, vector<1x64x128xbf16>
    %132 = vector.shape_cast %131 : vector<1x64x128xbf16> to vector<64x128xbf16>
    %cst_51 = arith.constant dense<0.000000e+00> : vector<8x128xf32>
    %133 = tpu.matmul %130, %132, %cst_51 {dimension_numbers = #tpu.dot_dimension_numbers<[1], [0], [0], [1], [0, 0, 1, 1], [], []>} : vector<8x64xbf16>, vector<64x128xbf16>, vector<8x128xf32> -> vector<8x128xf32>
    %c0_52 = arith.constant 0 : index
    %c0_53 = arith.constant 0 : index
    %c0_54 = arith.constant 0 : index
    %134 = vector.load %arg13[%c0_52, %c0_53, %c0_54] : memref<2x1x128xf32, #tpu.memory_space<vmem>>, vector<1x1x128xf32>
    %135 = vector.shape_cast %134 : vector<1x1x128xf32> to vector<1x128xf32>
    %136 = vector.broadcast %135 : vector<1x128xf32> to vector<8x128xf32>
    %137 = arith.addf %133, %136 : vector<8x128xf32>
    %cst_55 = arith.constant 5.000000e-01 : f32
    %138 = vector.broadcast %cst_55 : f32 to vector<8x128xf32>
    %139 = arith.mulf %138, %137 : vector<8x128xf32>
    %cst_56 = arith.constant 0.707106769 : f32
    %140 = vector.broadcast %cst_56 : f32 to vector<8x128xf32>
    %141 = arith.mulf %137, %140 : vector<8x128xf32>
    %cst_57 = arith.constant 0.000000e+00 : f32
    %142 = vector.broadcast %cst_57 : f32 to vector<8x128xf32>
    %143 = arith.cmpf oge, %141, %142 : vector<8x128xf32>
    %cst_58 = arith.constant 1.000000e+00 : f32
    %cst_59 = arith.constant -1.000000e+00 : f32
    %144 = vector.broadcast %cst_58 : f32 to vector<8x128xf32>
    %145 = vector.broadcast %cst_59 : f32 to vector<8x128xf32>
    %146 = arith.select %143, %144, %145 : vector<8x128xi1>, vector<8x128xf32>
    %147 = math.absf %141 : vector<8x128xf32>
    %cst_60 = arith.constant 0.327591091 : f32
    %148 = vector.broadcast %cst_60 : f32 to vector<8x128xf32>
    %149 = arith.mulf %148, %147 : vector<8x128xf32>
    %cst_61 = arith.constant 1.000000e+00 : f32
    %150 = vector.broadcast %cst_61 : f32 to vector<8x128xf32>
    %151 = arith.addf %150, %149 : vector<8x128xf32>
    %cst_62 = arith.constant 1.000000e+00 : f32
    %152 = vector.broadcast %cst_62 : f32 to vector<8x128xf32>
    %153 = arith.divf %152, %151 : vector<8x128xf32>
    %cst_63 = arith.constant 1.06140542 : f32
    %154 = vector.broadcast %cst_63 : f32 to vector<8x128xf32>
    %155 = arith.mulf %154, %153 : vector<8x128xf32>
    %cst_64 = arith.constant -1.45315206 : f32
    %156 = vector.broadcast %cst_64 : f32 to vector<8x128xf32>
    %157 = arith.addf %155, %156 : vector<8x128xf32>
    %158 = arith.mulf %157, %153 : vector<8x128xf32>
    %cst_65 = arith.constant 1.42141378 : f32
    %159 = vector.broadcast %cst_65 : f32 to vector<8x128xf32>
    %160 = arith.addf %158, %159 : vector<8x128xf32>
    %161 = arith.mulf %160, %153 : vector<8x128xf32>
    %cst_66 = arith.constant -0.284496725 : f32
    %162 = vector.broadcast %cst_66 : f32 to vector<8x128xf32>
    %163 = arith.addf %161, %162 : vector<8x128xf32>
    %164 = arith.mulf %163, %153 : vector<8x128xf32>
    %cst_67 = arith.constant 0.254829586 : f32
    %165 = vector.broadcast %cst_67 : f32 to vector<8x128xf32>
    %166 = arith.addf %164, %165 : vector<8x128xf32>
    %167 = arith.mulf %166, %153 : vector<8x128xf32>
    %cst_68 = arith.constant 0.000000e+00 : f32
    %168 = vector.broadcast %cst_68 : f32 to vector<8x128xf32>
    %169 = arith.subf %168, %147 : vector<8x128xf32>
    %170 = arith.mulf %169, %147 : vector<8x128xf32>
    %171 = math.exp %170 : vector<8x128xf32>
    %172 = arith.mulf %167, %171 : vector<8x128xf32>
    %cst_69 = arith.constant 1.000000e+00 : f32
    %173 = vector.broadcast %cst_69 : f32 to vector<8x128xf32>
    %174 = arith.subf %173, %172 : vector<8x128xf32>
    %175 = arith.mulf %146, %174 : vector<8x128xf32>
    %cst_70 = arith.constant 1.000000e+00 : f32
    %176 = vector.broadcast %cst_70 : f32 to vector<8x128xf32>
    %177 = arith.addf %176, %175 : vector<8x128xf32>
    %178 = arith.mulf %139, %177 : vector<8x128xf32>
    %179 = arith.truncf %178 : vector<8x128xf32> to vector<8x128xbf16>
    %c0_71 = arith.constant 0 : index
    %c0_72 = arith.constant 0 : index
    %c0_73 = arith.constant 0 : index
    %180 = vector.load %arg14[%c0_71, %c0_72, %c0_73] : memref<2x128x64xbf16, #tpu.memory_space<vmem>>, vector<1x128x64xbf16>
    %181 = vector.shape_cast %180 : vector<1x128x64xbf16> to vector<128x64xbf16>
    %cst_74 = arith.constant dense<0.000000e+00> : vector<8x64xf32>
    %182 = tpu.matmul %179, %181, %cst_74 {dimension_numbers = #tpu.dot_dimension_numbers<[1], [0], [0], [1], [0, 0, 1, 1], [], []>} : vector<8x128xbf16>, vector<128x64xbf16>, vector<8x64xf32> -> vector<8x64xf32>
    %183 = arith.addf %105, %182 : vector<8x64xf32>
    %c0_75 = arith.constant 0 : index
    %c0_76 = arith.constant 0 : index
    %c0_77 = arith.constant 0 : index
    %184 = vector.load %arg15[%c0_75, %c0_76, %c0_77] : memref<2x1x64xf32, #tpu.memory_space<vmem>>, vector<1x1x64xf32>
    %185 = vector.shape_cast %184 : vector<1x1x64xf32> to vector<1x64xf32>
    %186 = vector.broadcast %185 : vector<1x64xf32> to vector<8x64xf32>
    %187 = arith.addf %183, %186 : vector<8x64xf32>
    %c1 = arith.constant 1 : index
    %c0_78 = arith.constant 0 : index
    %c0_79 = arith.constant 0 : index
    %188 = vector.load %arg4[%c1, %c0_78, %c0_79] : memref<2x1x64xf32, #tpu.memory_space<vmem>>, vector<1x1x64xf32>
    %189 = vector.shape_cast %188 : vector<1x1x64xf32> to vector<1x64xf32>
    %c1_80 = arith.constant 1 : index
    %c0_81 = arith.constant 0 : index
    %c0_82 = arith.constant 0 : index
    %190 = vector.load %arg5[%c1_80, %c0_81, %c0_82] : memref<2x1x64xf32, #tpu.memory_space<vmem>>, vector<1x1x64xf32>
    %191 = vector.shape_cast %190 : vector<1x1x64xf32> to vector<1x64xf32>
    %cst_83 = arith.constant dense<0.000000e+00> : vector<8xf32>
    %192 = vector.multi_reduction <add>, %187, %cst_83 [1] : vector<8x64xf32> to vector<8xf32>
    %193 = vector.shape_cast %192 : vector<8xf32> to vector<8x1xf32>
    %cst_84 = arith.constant 6.400000e+01 : f32
    %194 = vector.broadcast %cst_84 : f32 to vector<8x1xf32>
    %195 = arith.divf %193, %194 : vector<8x1xf32>
    %196 = vector.broadcast %195 : vector<8x1xf32> to vector<8x64xf32>
    %197 = arith.subf %187, %196 : vector<8x64xf32>
    %198 = arith.mulf %197, %197 : vector<8x64xf32>
    %cst_85 = arith.constant dense<0.000000e+00> : vector<8xf32>
    %199 = vector.multi_reduction <add>, %198, %cst_85 [1] : vector<8x64xf32> to vector<8xf32>
    %200 = vector.shape_cast %199 : vector<8xf32> to vector<8x1xf32>
    %cst_86 = arith.constant 6.400000e+01 : f32
    %201 = vector.broadcast %cst_86 : f32 to vector<8x1xf32>
    %202 = arith.divf %200, %201 : vector<8x1xf32>
    %cst_87 = arith.constant 9.99999997E-7 : f32
    %203 = vector.broadcast %cst_87 : f32 to vector<8x1xf32>
    %204 = arith.addf %202, %203 : vector<8x1xf32>
    %205 = math.rsqrt %204 : vector<8x1xf32>
    %206 = vector.broadcast %205 : vector<8x1xf32> to vector<8x64xf32>
    %207 = arith.mulf %197, %206 : vector<8x64xf32>
    %208 = vector.broadcast %189 : vector<1x64xf32> to vector<8x64xf32>
    %209 = arith.mulf %207, %208 : vector<8x64xf32>
    %210 = vector.broadcast %191 : vector<1x64xf32> to vector<8x64xf32>
    %211 = arith.addf %209, %210 : vector<8x64xf32>
    %212 = arith.truncf %211 : vector<8x64xf32> to vector<8x64xbf16>
    %c1_88 = arith.constant 1 : index
    %c0_89 = arith.constant 0 : index
    %c0_90 = arith.constant 0 : index
    %213 = vector.load %arg6[%c1_88, %c0_89, %c0_90] : memref<2x64x192xbf16, #tpu.memory_space<vmem>>, vector<1x64x192xbf16>
    %214 = vector.shape_cast %213 : vector<1x64x192xbf16> to vector<64x192xbf16>
    %cst_91 = arith.constant dense<0.000000e+00> : vector<8x192xf32>
    %215 = tpu.matmul %212, %214, %cst_91 {dimension_numbers = #tpu.dot_dimension_numbers<[1], [0], [0], [1], [0, 0, 1, 1], [], []>} : vector<8x64xbf16>, vector<64x192xbf16>, vector<8x192xf32> -> vector<8x192xf32>
    %c1_92 = arith.constant 1 : index
    %c0_93 = arith.constant 0 : index
    %c0_94 = arith.constant 0 : index
    %216 = vector.load %arg7[%c1_92, %c0_93, %c0_94] : memref<2x1x192xf32, #tpu.memory_space<vmem>>, vector<1x1x192xf32>
    %217 = vector.shape_cast %216 : vector<1x1x192xf32> to vector<1x192xf32>
    %218 = vector.broadcast %217 : vector<1x192xf32> to vector<8x192xf32>
    %219 = arith.addf %215, %218 : vector<8x192xf32>
    %220 = arith.truncf %219 : vector<8x192xf32> to vector<8x192xbf16>
    %221 = vector.extract_strided_slice %220 {offsets = [0, 0], sizes = [8, 16], strides = [1, 1]} : vector<8x192xbf16> to vector<8x16xbf16>
    %222 = vector.extract_strided_slice %220 {offsets = [0, 16], sizes = [8, 16], strides = [1, 1]} : vector<8x192xbf16> to vector<8x16xbf16>
    %223 = vector.extract_strided_slice %220 {offsets = [0, 32], sizes = [8, 16], strides = [1, 1]} : vector<8x192xbf16> to vector<8x16xbf16>
    %224 = vector.extract_strided_slice %220 {offsets = [0, 48], sizes = [8, 16], strides = [1, 1]} : vector<8x192xbf16> to vector<8x16xbf16>
    %225 = vector.shape_cast %221 : vector<8x16xbf16> to vector<1x8x16xbf16>
    %226 = vector.shape_cast %222 : vector<8x16xbf16> to vector<1x8x16xbf16>
    %227 = vector.shape_cast %223 : vector<8x16xbf16> to vector<1x8x16xbf16>
    %228 = vector.shape_cast %224 : vector<8x16xbf16> to vector<1x8x16xbf16>
    %229 = tpu.concatenate %225, %226, %227, %228 in 0 : vector<1x8x16xbf16>, vector<1x8x16xbf16>, vector<1x8x16xbf16>, vector<1x8x16xbf16> -> vector<4x8x16xbf16>
    %230 = vector.extract_strided_slice %220 {offsets = [0, 64], sizes = [8, 16], strides = [1, 1]} : vector<8x192xbf16> to vector<8x16xbf16>
    %231 = vector.extract_strided_slice %220 {offsets = [0, 80], sizes = [8, 16], strides = [1, 1]} : vector<8x192xbf16> to vector<8x16xbf16>
    %232 = vector.extract_strided_slice %220 {offsets = [0, 96], sizes = [8, 16], strides = [1, 1]} : vector<8x192xbf16> to vector<8x16xbf16>
    %233 = vector.extract_strided_slice %220 {offsets = [0, 112], sizes = [8, 16], strides = [1, 1]} : vector<8x192xbf16> to vector<8x16xbf16>
    %234 = vector.shape_cast %230 : vector<8x16xbf16> to vector<1x8x16xbf16>
    %235 = vector.shape_cast %231 : vector<8x16xbf16> to vector<1x8x16xbf16>
    %236 = vector.shape_cast %232 : vector<8x16xbf16> to vector<1x8x16xbf16>
    %237 = vector.shape_cast %233 : vector<8x16xbf16> to vector<1x8x16xbf16>
    %238 = tpu.concatenate %234, %235, %236, %237 in 0 : vector<1x8x16xbf16>, vector<1x8x16xbf16>, vector<1x8x16xbf16>, vector<1x8x16xbf16> -> vector<4x8x16xbf16>
    %239 = vector.extract_strided_slice %220 {offsets = [0, 128], sizes = [8, 16], strides = [1, 1]} : vector<8x192xbf16> to vector<8x16xbf16>
    %240 = vector.extract_strided_slice %220 {offsets = [0, 144], sizes = [8, 16], strides = [1, 1]} : vector<8x192xbf16> to vector<8x16xbf16>
    %241 = vector.extract_strided_slice %220 {offsets = [0, 160], sizes = [8, 16], strides = [1, 1]} : vector<8x192xbf16> to vector<8x16xbf16>
    %242 = vector.extract_strided_slice %220 {offsets = [0, 176], sizes = [8, 16], strides = [1, 1]} : vector<8x192xbf16> to vector<8x16xbf16>
    %243 = vector.shape_cast %239 : vector<8x16xbf16> to vector<1x8x16xbf16>
    %244 = vector.shape_cast %240 : vector<8x16xbf16> to vector<1x8x16xbf16>
    %245 = vector.shape_cast %241 : vector<8x16xbf16> to vector<1x8x16xbf16>
    %246 = vector.shape_cast %242 : vector<8x16xbf16> to vector<1x8x16xbf16>
    %247 = tpu.concatenate %243, %244, %245, %246 in 0 : vector<1x8x16xbf16>, vector<1x8x16xbf16>, vector<1x8x16xbf16>, vector<1x8x16xbf16> -> vector<4x8x16xbf16>
    %cst_95 = arith.constant dense<0.000000e+00> : vector<4x8x8xf32>
    %248 = tpu.matmul %229, %238, %cst_95 {dimension_numbers = #tpu.dot_dimension_numbers<[2], [2], [1], [1], [0, 0, 0, 1, 1, 1], [0], [0]>} : vector<4x8x16xbf16>, vector<4x8x16xbf16>, vector<4x8x8xf32> -> vector<4x8x8xf32>
    %249 = vector.shape_cast %11 : vector<1x8xf32> to vector<1x1x8xf32>
    %250 = vector.broadcast %249 : vector<1x1x8xf32> to vector<4x8x8xf32>
    %251 = arith.addf %248, %250 : vector<4x8x8xf32>
    %cst_96 = arith.constant dense<0xFF800000> : vector<4x8xf32>
    %252 = vector.multi_reduction <maximumf>, %251, %cst_96 [2] : vector<4x8x8xf32> to vector<4x8xf32>
    %253 = vector.shape_cast %252 : vector<4x8xf32> to vector<4x8x1xf32>
    %254 = vector.broadcast %253 : vector<4x8x1xf32> to vector<4x8x8xf32>
    %255 = arith.subf %251, %254 : vector<4x8x8xf32>
    %256 = math.exp %255 : vector<4x8x8xf32>
    %cst_97 = arith.constant dense<0.000000e+00> : vector<4x8xf32>
    %257 = vector.multi_reduction <add>, %256, %cst_97 [2] : vector<4x8x8xf32> to vector<4x8xf32>
    %258 = vector.shape_cast %257 : vector<4x8xf32> to vector<4x8x1xf32>
    %259 = tpu.reciprocal %258 {approx = true} : vector<4x8x1xf32> -> vector<4x8x1xf32>
    %260 = vector.broadcast %259 : vector<4x8x1xf32> to vector<4x8x8xf32>
    %261 = arith.mulf %256, %260 : vector<4x8x8xf32>
    %262 = arith.truncf %261 : vector<4x8x8xf32> to vector<4x8x8xbf16>
    %cst_98 = arith.constant dense<0.000000e+00> : vector<4x8x16xf32>
    %263 = tpu.matmul %262, %247, %cst_98 {dimension_numbers = #tpu.dot_dimension_numbers<[2], [1], [1], [2], [0, 0, 0, 1, 1, 2], [0], [0]>} : vector<4x8x8xbf16>, vector<4x8x16xbf16>, vector<4x8x16xf32> -> vector<4x8x16xf32>
    %264 = vector.extract_strided_slice %263 {offsets = [0, 0, 0], sizes = [1, 8, 16], strides = [1, 1, 1]} : vector<4x8x16xf32> to vector<1x8x16xf32>
    %265 = vector.shape_cast %264 : vector<1x8x16xf32> to vector<8x16xf32>
    %266 = vector.extract_strided_slice %263 {offsets = [1, 0, 0], sizes = [1, 8, 16], strides = [1, 1, 1]} : vector<4x8x16xf32> to vector<1x8x16xf32>
    %267 = vector.shape_cast %266 : vector<1x8x16xf32> to vector<8x16xf32>
    %268 = vector.extract_strided_slice %263 {offsets = [2, 0, 0], sizes = [1, 8, 16], strides = [1, 1, 1]} : vector<4x8x16xf32> to vector<1x8x16xf32>
    %269 = vector.shape_cast %268 : vector<1x8x16xf32> to vector<8x16xf32>
    %270 = vector.extract_strided_slice %263 {offsets = [3, 0, 0], sizes = [1, 8, 16], strides = [1, 1, 1]} : vector<4x8x16xf32> to vector<1x8x16xf32>
    %271 = vector.shape_cast %270 : vector<1x8x16xf32> to vector<8x16xf32>
    %272 = tpu.concatenate %265, %267, %269, %271 in 1 : vector<8x16xf32>, vector<8x16xf32>, vector<8x16xf32>, vector<8x16xf32> -> vector<8x64xf32>
    %273 = arith.truncf %272 : vector<8x64xf32> to vector<8x64xbf16>
    %c1_99 = arith.constant 1 : index
    %c0_100 = arith.constant 0 : index
    %c0_101 = arith.constant 0 : index
    %274 = vector.load %arg8[%c1_99, %c0_100, %c0_101] : memref<2x64x64xbf16, #tpu.memory_space<vmem>>, vector<1x64x64xbf16>
    %275 = vector.shape_cast %274 : vector<1x64x64xbf16> to vector<64x64xbf16>
    %cst_102 = arith.constant dense<0.000000e+00> : vector<8x64xf32>
    %276 = tpu.matmul %273, %275, %cst_102 {dimension_numbers = #tpu.dot_dimension_numbers<[1], [0], [0], [1], [0, 0, 1, 1], [], []>} : vector<8x64xbf16>, vector<64x64xbf16>, vector<8x64xf32> -> vector<8x64xf32>
    %277 = arith.addf %187, %276 : vector<8x64xf32>
    %c1_103 = arith.constant 1 : index
    %c0_104 = arith.constant 0 : index
    %c0_105 = arith.constant 0 : index
    %278 = vector.load %arg9[%c1_103, %c0_104, %c0_105] : memref<2x1x64xf32, #tpu.memory_space<vmem>>, vector<1x1x64xf32>
    %279 = vector.shape_cast %278 : vector<1x1x64xf32> to vector<1x64xf32>
    %280 = vector.broadcast %279 : vector<1x64xf32> to vector<8x64xf32>
    %281 = arith.addf %277, %280 : vector<8x64xf32>
    %c1_106 = arith.constant 1 : index
    %c0_107 = arith.constant 0 : index
    %c0_108 = arith.constant 0 : index
    %282 = vector.load %arg10[%c1_106, %c0_107, %c0_108] : memref<2x1x64xf32, #tpu.memory_space<vmem>>, vector<1x1x64xf32>
    %283 = vector.shape_cast %282 : vector<1x1x64xf32> to vector<1x64xf32>
    %c1_109 = arith.constant 1 : index
    %c0_110 = arith.constant 0 : index
    %c0_111 = arith.constant 0 : index
    %284 = vector.load %arg11[%c1_109, %c0_110, %c0_111] : memref<2x1x64xf32, #tpu.memory_space<vmem>>, vector<1x1x64xf32>
    %285 = vector.shape_cast %284 : vector<1x1x64xf32> to vector<1x64xf32>
    %cst_112 = arith.constant dense<0.000000e+00> : vector<8xf32>
    %286 = vector.multi_reduction <add>, %281, %cst_112 [1] : vector<8x64xf32> to vector<8xf32>
    %287 = vector.shape_cast %286 : vector<8xf32> to vector<8x1xf32>
    %cst_113 = arith.constant 6.400000e+01 : f32
    %288 = vector.broadcast %cst_113 : f32 to vector<8x1xf32>
    %289 = arith.divf %287, %288 : vector<8x1xf32>
    %290 = vector.broadcast %289 : vector<8x1xf32> to vector<8x64xf32>
    %291 = arith.subf %281, %290 : vector<8x64xf32>
    %292 = arith.mulf %291, %291 : vector<8x64xf32>
    %cst_114 = arith.constant dense<0.000000e+00> : vector<8xf32>
    %293 = vector.multi_reduction <add>, %292, %cst_114 [1] : vector<8x64xf32> to vector<8xf32>
    %294 = vector.shape_cast %293 : vector<8xf32> to vector<8x1xf32>
    %cst_115 = arith.constant 6.400000e+01 : f32
    %295 = vector.broadcast %cst_115 : f32 to vector<8x1xf32>
    %296 = arith.divf %294, %295 : vector<8x1xf32>
    %cst_116 = arith.constant 9.99999997E-7 : f32
    %297 = vector.broadcast %cst_116 : f32 to vector<8x1xf32>
    %298 = arith.addf %296, %297 : vector<8x1xf32>
    %299 = math.rsqrt %298 : vector<8x1xf32>
    %300 = vector.broadcast %299 : vector<8x1xf32> to vector<8x64xf32>
    %301 = arith.mulf %291, %300 : vector<8x64xf32>
    %302 = vector.broadcast %283 : vector<1x64xf32> to vector<8x64xf32>
    %303 = arith.mulf %301, %302 : vector<8x64xf32>
    %304 = vector.broadcast %285 : vector<1x64xf32> to vector<8x64xf32>
    %305 = arith.addf %303, %304 : vector<8x64xf32>
    %306 = arith.truncf %305 : vector<8x64xf32> to vector<8x64xbf16>
    %c1_117 = arith.constant 1 : index
    %c0_118 = arith.constant 0 : index
    %c0_119 = arith.constant 0 : index
    %307 = vector.load %arg12[%c1_117, %c0_118, %c0_119] : memref<2x64x128xbf16, #tpu.memory_space<vmem>>, vector<1x64x128xbf16>
    %308 = vector.shape_cast %307 : vector<1x64x128xbf16> to vector<64x128xbf16>
    %cst_120 = arith.constant dense<0.000000e+00> : vector<8x128xf32>
    %309 = tpu.matmul %306, %308, %cst_120 {dimension_numbers = #tpu.dot_dimension_numbers<[1], [0], [0], [1], [0, 0, 1, 1], [], []>} : vector<8x64xbf16>, vector<64x128xbf16>, vector<8x128xf32> -> vector<8x128xf32>
    %c1_121 = arith.constant 1 : index
    %c0_122 = arith.constant 0 : index
    %c0_123 = arith.constant 0 : index
    %310 = vector.load %arg13[%c1_121, %c0_122, %c0_123] : memref<2x1x128xf32, #tpu.memory_space<vmem>>, vector<1x1x128xf32>
    %311 = vector.shape_cast %310 : vector<1x1x128xf32> to vector<1x128xf32>
    %312 = vector.broadcast %311 : vector<1x128xf32> to vector<8x128xf32>
    %313 = arith.addf %309, %312 : vector<8x128xf32>
    %cst_124 = arith.constant 5.000000e-01 : f32
    %314 = vector.broadcast %cst_124 : f32 to vector<8x128xf32>
    %315 = arith.mulf %314, %313 : vector<8x128xf32>
    %cst_125 = arith.constant 0.707106769 : f32
    %316 = vector.broadcast %cst_125 : f32 to vector<8x128xf32>
    %317 = arith.mulf %313, %316 : vector<8x128xf32>
    %cst_126 = arith.constant 0.000000e+00 : f32
    %318 = vector.broadcast %cst_126 : f32 to vector<8x128xf32>
    %319 = arith.cmpf oge, %317, %318 : vector<8x128xf32>
    %cst_127 = arith.constant 1.000000e+00 : f32
    %cst_128 = arith.constant -1.000000e+00 : f32
    %320 = vector.broadcast %cst_127 : f32 to vector<8x128xf32>
    %321 = vector.broadcast %cst_128 : f32 to vector<8x128xf32>
    %322 = arith.select %319, %320, %321 : vector<8x128xi1>, vector<8x128xf32>
    %323 = math.absf %317 : vector<8x128xf32>
    %cst_129 = arith.constant 0.327591091 : f32
    %324 = vector.broadcast %cst_129 : f32 to vector<8x128xf32>
    %325 = arith.mulf %324, %323 : vector<8x128xf32>
    %cst_130 = arith.constant 1.000000e+00 : f32
    %326 = vector.broadcast %cst_130 : f32 to vector<8x128xf32>
    %327 = arith.addf %326, %325 : vector<8x128xf32>
    %cst_131 = arith.constant 1.000000e+00 : f32
    %328 = vector.broadcast %cst_131 : f32 to vector<8x128xf32>
    %329 = arith.divf %328, %327 : vector<8x128xf32>
    %cst_132 = arith.constant 1.06140542 : f32
    %330 = vector.broadcast %cst_132 : f32 to vector<8x128xf32>
    %331 = arith.mulf %330, %329 : vector<8x128xf32>
    %cst_133 = arith.constant -1.45315206 : f32
    %332 = vector.broadcast %cst_133 : f32 to vector<8x128xf32>
    %333 = arith.addf %331, %332 : vector<8x128xf32>
    %334 = arith.mulf %333, %329 : vector<8x128xf32>
    %cst_134 = arith.constant 1.42141378 : f32
    %335 = vector.broadcast %cst_134 : f32 to vector<8x128xf32>
    %336 = arith.addf %334, %335 : vector<8x128xf32>
    %337 = arith.mulf %336, %329 : vector<8x128xf32>
    %cst_135 = arith.constant -0.284496725 : f32
    %338 = vector.broadcast %cst_135 : f32 to vector<8x128xf32>
    %339 = arith.addf %337, %338 : vector<8x128xf32>
    %340 = arith.mulf %339, %329 : vector<8x128xf32>
    %cst_136 = arith.constant 0.254829586 : f32
    %341 = vector.broadcast %cst_136 : f32 to vector<8x128xf32>
    %342 = arith.addf %340, %341 : vector<8x128xf32>
    %343 = arith.mulf %342, %329 : vector<8x128xf32>
    %cst_137 = arith.constant 0.000000e+00 : f32
    %344 = vector.broadcast %cst_137 : f32 to vector<8x128xf32>
    %345 = arith.subf %344, %323 : vector<8x128xf32>
    %346 = arith.mulf %345, %323 : vector<8x128xf32>
    %347 = math.exp %346 : vector<8x128xf32>
    %348 = arith.mulf %343, %347 : vector<8x128xf32>
    %cst_138 = arith.constant 1.000000e+00 : f32
    %349 = vector.broadcast %cst_138 : f32 to vector<8x128xf32>
    %350 = arith.subf %349, %348 : vector<8x128xf32>
    %351 = arith.mulf %322, %350 : vector<8x128xf32>
    %cst_139 = arith.constant 1.000000e+00 : f32
    %352 = vector.broadcast %cst_139 : f32 to vector<8x128xf32>
    %353 = arith.addf %352, %351 : vector<8x128xf32>
    %354 = arith.mulf %315, %353 : vector<8x128xf32>
    %355 = arith.truncf %354 : vector<8x128xf32> to vector<8x128xbf16>
    %c1_140 = arith.constant 1 : index
    %c0_141 = arith.constant 0 : index
    %c0_142 = arith.constant 0 : index
    %356 = vector.load %arg14[%c1_140, %c0_141, %c0_142] : memref<2x128x64xbf16, #tpu.memory_space<vmem>>, vector<1x128x64xbf16>
    %357 = vector.shape_cast %356 : vector<1x128x64xbf16> to vector<128x64xbf16>
    %cst_143 = arith.constant dense<0.000000e+00> : vector<8x64xf32>
    %358 = tpu.matmul %355, %357, %cst_143 {dimension_numbers = #tpu.dot_dimension_numbers<[1], [0], [0], [1], [0, 0, 1, 1], [], []>} : vector<8x128xbf16>, vector<128x64xbf16>, vector<8x64xf32> -> vector<8x64xf32>
    %359 = arith.addf %281, %358 : vector<8x64xf32>
    %c1_144 = arith.constant 1 : index
    %c0_145 = arith.constant 0 : index
    %c0_146 = arith.constant 0 : index
    %360 = vector.load %arg15[%c1_144, %c0_145, %c0_146] : memref<2x1x64xf32, #tpu.memory_space<vmem>>, vector<1x1x64xf32>
    %361 = vector.shape_cast %360 : vector<1x1x64xf32> to vector<1x64xf32>
    %362 = vector.broadcast %361 : vector<1x64xf32> to vector<8x64xf32>
    %363 = arith.addf %359, %362 : vector<8x64xf32>
    %364 = vector.extract_strided_slice %363 {offsets = [0, 0], sizes = [1, 64], strides = [1, 1]} : vector<8x64xf32> to vector<1x64xf32>
    %c0_147 = arith.constant 0 : index
    %c0_148 = arith.constant 0 : index
    %365 = vector.load %arg16[%c0_147, %c0_148] : memref<1x64xf32, #tpu.memory_space<vmem>>, vector<1x64xf32>
    %c0_149 = arith.constant 0 : index
    %c0_150 = arith.constant 0 : index
    %366 = vector.load %arg17[%c0_149, %c0_150] : memref<1x64xf32, #tpu.memory_space<vmem>>, vector<1x64xf32>
    %cst_151 = arith.constant dense<0.000000e+00> : vector<1xf32>
    %367 = vector.multi_reduction <add>, %364, %cst_151 [1] : vector<1x64xf32> to vector<1xf32>
    %368 = vector.shape_cast %367 : vector<1xf32> to vector<1x1xf32>
    %cst_152 = arith.constant 6.400000e+01 : f32
    %369 = vector.broadcast %cst_152 : f32 to vector<1x1xf32>
    %370 = arith.divf %368, %369 : vector<1x1xf32>
    %371 = vector.broadcast %370 : vector<1x1xf32> to vector<1x64xf32>
    %372 = arith.subf %364, %371 : vector<1x64xf32>
    %373 = arith.mulf %372, %372 : vector<1x64xf32>
    %cst_153 = arith.constant dense<0.000000e+00> : vector<1xf32>
    %374 = vector.multi_reduction <add>, %373, %cst_153 [1] : vector<1x64xf32> to vector<1xf32>
    %375 = vector.shape_cast %374 : vector<1xf32> to vector<1x1xf32>
    %cst_154 = arith.constant 6.400000e+01 : f32
    %376 = vector.broadcast %cst_154 : f32 to vector<1x1xf32>
    %377 = arith.divf %375, %376 : vector<1x1xf32>
    %cst_155 = arith.constant 9.99999997E-7 : f32
    %378 = vector.broadcast %cst_155 : f32 to vector<1x1xf32>
    %379 = arith.addf %377, %378 : vector<1x1xf32>
    %380 = math.rsqrt %379 : vector<1x1xf32>
    %381 = vector.broadcast %380 : vector<1x1xf32> to vector<1x64xf32>
    %382 = arith.mulf %372, %381 : vector<1x64xf32>
    %383 = arith.mulf %382, %365 : vector<1x64xf32>
    %384 = arith.addf %383, %366 : vector<1x64xf32>
    %c0_156 = arith.constant 0 : index
    %c0_157 = arith.constant 0 : index
    %c0_158 = arith.constant 0 : index
    %385 = vector.load %arg18[%c0_156, %c0_157, %c0_158] : memref<1x1x64xf32, #tpu.memory_space<vmem>>, vector<1x1x64xf32>
    %386 = vector.shape_cast %385 : vector<1x1x64xf32> to vector<1x64xf32>
    %387 = vector.shape_cast %384 : vector<1x64xf32> to vector<1x1x64xf32>
    tpu.vector_store %arg18[%c0_156, %c0_157, %c0_158], %387 {strides = array<i32>} : memref<1x1x64xf32, #tpu.memory_space<vmem>>, vector<1x1x64xf32>,
    return
  }
  func.func @transform_0(%arg0: i32) -> (i32, i32, i32) {
    %c0_i32 = arith.constant 0 : i32
    %c0_i32_0 = arith.constant 0 : i32
    %c0_i32_1 = arith.constant 0 : i32
    return %arg0, %c0_i32, %c0_i32_0 : i32, i32, i32
  }
  func.func @transform_1(%arg0: i32) -> (i32, i32) {
    %c0_i32 = arith.constant 0 : i32
    %c0_i32_0 = arith.constant 0 : i32
    %c0_i32_1 = arith.constant 0 : i32
    return %c0_i32, %c0_i32_0 : i32, i32
  }
  func.func @transform_2(%arg0: i32) -> (i32, i32) {
    %c0_i32 = arith.constant 0 : i32
    %c0_i32_0 = arith.constant 0 : i32
    %c0_i32_1 = arith.constant 0 : i32
    return %c0_i32, %c0_i32_0 : i32, i32
  }
  func.func @transform_3(%arg0: i32) -> (i32, i32, i32) {
    %c0_i32 = arith.constant 0 : i32
    %c0_i32_0 = arith.constant 0 : i32
    %c0_i32_1 = arith.constant 0 : i32
    %c0_i32_2 = arith.constant 0 : i32
    return %c0_i32, %c0_i32_0, %c0_i32_1 : i32, i32, i32
  }
  func.func @transform_4(%arg0: i32) -> (i32, i32, i32) {
    %c0_i32 = arith.constant 0 : i32
    %c0_i32_0 = arith.constant 0 : i32
    %c0_i32_1 = arith.constant 0 : i32
    %c0_i32_2 = arith.constant 0 : i32
    return %c0_i32, %c0_i32_0, %c0_i32_1 : i32, i32, i32
  }
  func.func @transform_5(%arg0: i32) -> (i32, i32, i32) {
    %c0_i32 = arith.constant 0 : i32
    %c0_i32_0 = arith.constant 0 : i32
    %c0_i32_1 = arith.constant 0 : i32
    %c0_i32_2 = arith.constant 0 : i32
    return %c0_i32, %c0_i32_0, %c0_i32_1 : i32, i32, i32
  }
  func.func @transform_6(%arg0: i32) -> (i32, i32, i32) {
    %c0_i32 = arith.constant 0 : i32
    %c0_i32_0 = arith.constant 0 : i32
    %c0_i32_1 = arith.constant 0 : i32
    %c0_i32_2 = arith.constant 0 : i32
    return %c0_i32, %c0_i32_0, %c0_i32_1 : i32, i32, i32
  }
  func.func @transform_7(%arg0: i32) -> (i32, i32, i32) {
    %c0_i32 = arith.constant 0 : i32
    %c0_i32_0 = arith.constant 0 : i32
    %c0_i32_1 = arith.constant 0 : i32
    %c0_i32_2 = arith.constant 0 : i32
    return %c0_i32, %c0_i32_0, %c0_i32_1 : i32, i32, i32
  }
  func.func @transform_8(%arg0: i32) -> (i32, i32, i32) {
    %c0_i32 = arith.constant 0 : i32
    %c0_i32_0 = arith.constant 0 : i32
    %c0_i32_1 = arith.constant 0 : i32
    %c0_i32_2 = arith.constant 0 : i32
    return %c0_i32, %c0_i32_0, %c0_i32_1 : i32, i32, i32
  }
  func.func @transform_9(%arg0: i32) -> (i32, i32, i32) {
    %c0_i32 = arith.constant 0 : i32
    %c0_i32_0 = arith.constant 0 : i32
    %c0_i32_1 = arith.constant 0 : i32
    %c0_i32_2 = arith.constant 0 : i32
    return %c0_i32, %c0_i32_0, %c0_i32_1 : i32, i32, i32
  }
  func.func @transform_10(%arg0: i32) -> (i32, i32, i32) {
    %c0_i32 = arith.constant 0 : i32
    %c0_i32_0 = arith.constant 0 : i32
    %c0_i32_1 = arith.constant 0 : i32
    %c0_i32_2 = arith.constant 0 : i32
    return %c0_i32, %c0_i32_0, %c0_i32_1 : i32, i32, i32
  }
  func.func @transform_11(%arg0: i32) -> (i32, i32, i32) {
    %c0_i32 = arith.constant 0 : i32
    %c0_i32_0 = arith.constant 0 : i32
    %c0_i32_1 = arith.constant 0 : i32
    %c0_i32_2 = arith.constant 0 : i32
    return %c0_i32, %c0_i32_0, %c0_i32_1 : i32, i32, i32
  }
  func.func @transform_12(%arg0: i32) -> (i32, i32, i32) {
    %c0_i32 = arith.constant 0 : i32
    %c0_i32_0 = arith.constant 0 : i32
    %c0_i32_1 = arith.constant 0 : i32
    %c0_i32_2 = arith.constant 0 : i32
    return %c0_i32, %c0_i32_0, %c0_i32_1 : i32, i32, i32
  }
  func.func @transform_13(%arg0: i32) -> (i32, i32, i32) {
    %c0_i32 = arith.constant 0 : i32
    %c0_i32_0 = arith.constant 0 : i32
    %c0_i32_1 = arith.constant 0 : i32
    %c0_i32_2 = arith.constant 0 : i32
    return %c0_i32, %c0_i32_0, %c0_i32_1 : i32, i32, i32
  }
  func.func @transform_14(%arg0: i32) -> (i32, i32, i32) {
    %c0_i32 = arith.constant 0 : i32
    %c0_i32_0 = arith.constant 0 : i32
    %c0_i32_1 = arith.constant 0 : i32
    %c0_i32_2 = arith.constant 0 : i32
    return %c0_i32, %c0_i32_0, %c0_i32_1 : i32, i32, i32
  }
  func.func @transform_15(%arg0: i32) -> (i32, i32) {
    %c0_i32 = arith.constant 0 : i32
    %c0_i32_0 = arith.constant 0 : i32
    %c0_i32_1 = arith.constant 0 : i32
    return %c0_i32, %c0_i32_0 : i32, i32
  }
  func.func @transform_16(%arg0: i32) -> (i32, i32) {
    %c0_i32 = arith.constant 0 : i32
    %c0_i32_0 = arith.constant 0 : i32
    %c0_i32_1 = arith.constant 0 : i32
    return %c0_i32, %c0_i32_0 : i32, i32
  }
  func.func @transform_17(%arg0: i32) -> (i32, i32, i32) {
    %c0_i32 = arith.constant 0 : i32
    %c0_i32_0 = arith.constant 0 : i32
    %c0_i32_1 = arith.constant 0 : i32
    return %arg0, %c0_i32, %c0_i32_0 : i32, i32, i32
  }
}

</mosaic_0001>

<llo_original>
// kernel: vit_forward.1
$region0: #{vit_forward.1}
  #allocation0 [shape = 'u32[]', space=smem, size = 0x4, offset = 0x4, fixed_abs, tag = 'smem constant byte address 0x4 - core index']
  #allocation1 [shape = 'u32[144,128]{1,0:T(1,128)}', space=vmem, size = 0x12000, scoped, tag = 'internal scratch']
  %s0 = inlined_call_operand.vmem [shape: bf16[2,8,768], index: 0, kind: input, shape index: {}]
  %s1 = inlined_call_operand.vmem [shape: bf16[768,64], index: 1, kind: input, shape index: {}]
  %s2 = inlined_call_operand.vmem [shape: f32[8,64], index: 2, kind: input, shape index: {}]
  %s3 = inlined_call_operand.vmem [shape: f32[2,1,64], index: 3, kind: input, shape index: {}]
  %s4 = inlined_call_operand.vmem [shape: f32[2,1,64], index: 4, kind: input, shape index: {}]
  %s5 = inlined_call_operand.vmem [shape: bf16[2,64,192], index: 5, kind: input, shape index: {}]
  %s6 = inlined_call_operand.vmem [shape: f32[2,1,192], index: 6, kind: input, shape index: {}]
  %s7 = inlined_call_operand.vmem [shape: bf16[2,64,64], index: 7, kind: input, shape index: {}]
  %s8 = inlined_call_operand.vmem [shape: f32[2,1,64], index: 8, kind: input, shape index: {}]
  %s9 = inlined_call_operand.vmem [shape: f32[2,1,64], index: 9, kind: input, shape index: {}]
  %s10 = inlined_call_operand.vmem [shape: f32[2,1,64], index: 10, kind: input, shape index: {}]
  %s11 = inlined_call_operand.vmem [shape: bf16[2,64,128], index: 11, kind: input, shape index: {}]
  %s12 = inlined_call_operand.vmem [shape: f32[2,1,128], index: 12, kind: input, shape index: {}]
  %s13 = inlined_call_operand.vmem [shape: bf16[2,128,64], index: 13, kind: input, shape index: {}]
  %s14 = inlined_call_operand.vmem [shape: f32[2,1,64], index: 14, kind: input, shape index: {}]
  %s15 = inlined_call_operand.vmem [shape: f32[1,64], index: 15, kind: input, shape index: {}]
  %s16 = inlined_call_operand.vmem [shape: f32[1,64], index: 16, kind: input, shape index: {}]
  %s17 = inlined_call_operand.hbm [shape: f32[2,1,64], index: 17, kind: output, shape index: {}]
  %s18 = sld [smem:[#allocation0]]
  $region101: #{vit_forward.1} parent=0
    _
  %s20 = ssub.s32 1, %s18
  %s21 = scalar_select 0, %s20, %s18
  $region1: #{vit_forward.1} parent=0
    #allocation2 [shape = 'u8[1024]{0}', space=vmem, size = 0x400, scoped, tag = 'output window, operand 0']
    #allocation3 [shape = 's32[2]{0}', space=sflag, size = 0x8, scoped, tag = 'scoped memory for vit_forward.1']
    %22 = vsyncpa [#allocation3], 0
    %s23 = scalar_lea.sflag [#allocation3], 1
    %24 = vsyncpa %s23, 0
    loop: start=0, step=1, limit=4
    $region2: #{vit_forward.1} parent=1 // loop_pre_header
      _
    $region3: #{vit_forward.1} parent=1 // loop_header
      %s26 = sphi 0, %s30
      %p27 = scmp.ge.s32.totalorder %s26, 4
      %s36 = sphi 0, %s38
      %s39 = sphi 0, %s36
      %s40 = sphi 0, %s39
      %s56 = sphi 0, %s40
      %s60 = sphi 0, %s60
      %s62 = sphi 0, %s60
      %s63 = sphi 0, %s62
      %s77 = sphi 0, %s63
      %s81 = sphi 0, %s81
      %s83 = sphi 0, %s81
      %s84 = sphi 0, %s83
      %s98 = sphi 0, %s84
      %s102 = sphi 0, %s102
      %s104 = sphi 0, %s102
      %s105 = sphi 0, %s104
      %s119 = sphi 0, %s105
      %s123 = sphi 0, %s123
      %s125 = sphi 0, %s123
      %s126 = sphi 0, %s125
      %s140 = sphi 0, %s126
      %s144 = sphi 0, %s144
      %s146 = sphi 0, %s144
      %s147 = sphi 0, %s146
      %s161 = sphi 0, %s147
      %s165 = sphi 0, %s165
      %s167 = sphi 0, %s165
      %s168 = sphi 0, %s167
      %s182 = sphi 0, %s168
      %s186 = sphi 0, %s186
      %s188 = sphi 0, %s186
      %s189 = sphi 0, %s188
      %s203 = sphi 0, %s189
      %s207 = sphi 0, %s207
      %s209 = sphi 0, %s207
      %s210 = sphi 0, %s209
      %s224 = sphi 0, %s210
      %s228 = sphi 0, %s228
      %s230 = sphi 0, %s228
      %s231 = sphi 0, %s230
      %s245 = sphi 0, %s231
      %s249 = sphi 0, %s249
      %s251 = sphi 0, %s249
      %s252 = sphi 0, %s251
      %s266 = sphi 0, %s252
      %s270 = sphi 0, %s270
      %s272 = sphi 0, %s270
      %s273 = sphi 0, %s272
      %s287 = sphi 0, %s273
      %s291 = sphi 0, %s291
      %s293 = sphi 0, %s291
      %s294 = sphi 0, %s293
      %s308 = sphi 0, %s294
      %s312 = sphi 0, %s312
      %s314 = sphi 0, %s312
      %s315 = sphi 0, %s314
      %s329 = sphi 0, %s315
      %s333 = sphi 0, %s333
      %s335 = sphi 0, %s333
      %s336 = sphi 0, %s335
      %s350 = sphi 0, %s336
      %s354 = sphi 0, %s354
      %s356 = sphi 0, %s354
      %s357 = sphi 0, %s356
      %s371 = sphi 0, %s357
      %s375 = sphi 0, %s375
      %s377 = sphi 0, %s375
      %s378 = sphi 0, %s377
      %s392 = sphi 0, %s378
      %s398 = sphi 0, %s400
      %s401 = sphi 0, %s398
      %s402 = sphi 0, %s401
      %s418 = sphi 0, %s402
    $region4: #{vit_forward.1} parent=1 // loop_header_branch
      %29 = sbr.rel (%p27) target = $region8
    $region5: #{vit_forward.1} parent=1 // loop_body
      %s31 = ssub.s32 %s26, 1
      %s32 = ssub.s32 %s26, 2
      %s33 = sadd.s32 %s26, 1
      %s34 = ssub.s32 %s26, %s33
      %p35 = scmp.eq.s32.totalorder %s34, 0
      %s37 = sadd.s32 %s36, 1
      %s38 = scalar_select %p35, %s36, %s37
      %p41 = pneg %p35
      %p42 = scmp.eq.s32.totalorder %s26, 1
      %p43 = por %p41, %p42
      %p44 = scmp.ne.s32.totalorder %s36, %s39
      %p45 = scmp.eq.s32.totalorder %s26, 0
      %p46 = por %p44, %p45
      %p47 = scmp.ne.s32.totalorder %s36, %s39
      %p48 = scmp.eq.s32.totalorder %s31, 1
      %p49 = por %p47, %p48
      %p50 = scmp.ne.s32.totalorder %s39, %s40
      %p51 = scmp.eq.s32.totalorder %s31, 0
      %p52 = por %p50, %p51
      %p53 = scmp.ne.s32.totalorder %s39, %s40
      %p54 = scmp.eq.s32.totalorder %s32, 1
      %p55 = por %p53, %p54
      %p57 = scmp.ne.s32.totalorder %s40, %s56
      %p58 = scmp.eq.s32.totalorder %s32, 0
      %p59 = por %p57, %p58
      %s61 = sadd.s32 %s60, 1
      %p64 = scmp.eq.s32.totalorder %s26, 1
      %p65 = scmp.ne.s32.totalorder %s60, %s62
      %p66 = scmp.eq.s32.totalorder %s26, 0
      %p67 = por %p65, %p66
      %p68 = scmp.ne.s32.totalorder %s60, %s62
      %p69 = scmp.eq.s32.totalorder %s31, 1
      %p70 = por %p68, %p69
      %p71 = scmp.ne.s32.totalorder %s62, %s63
      %p72 = scmp.eq.s32.totalorder %s31, 0
      %p73 = por %p71, %p72
      %p74 = scmp.ne.s32.totalorder %s62, %s63
      %p75 = scmp.eq.s32.totalorder %s32, 1
      %p76 = por %p74, %p75
      %p78 = scmp.ne.s32.totalorder %s63, %s77
      %p79 = scmp.eq.s32.totalorder %s32, 0
      %p80 = por %p78, %p79
      %s82 = sadd.s32 %s81, 1
      %p85 = scmp.eq.s32.totalorder %s26, 1
      %p86 = scmp.ne.s32.totalorder %s81, %s83
      %p87 = scmp.eq.s32.totalorder %s26, 0
      %p88 = por %p86, %p87
      %p89 = scmp.ne.s32.totalorder %s81, %s83
      %p90 = scmp.eq.s32.totalorder %s31, 1
      %p91 = por %p89, %p90
      %p92 = scmp.ne.s32.totalorder %s83, %s84
      %p93 = scmp.eq.s32.totalorder %s31, 0
      %p94 = por %p92, %p93
      %p95 = scmp.ne.s32.totalorder %s83, %s84
      %p96 = scmp.eq.s32.totalorder %s32, 1
      %p97 = por %p95, %p96
      %p99 = scmp.ne.s32.totalorder %s84, %s98
      %p100 = scmp.eq.s32.totalorder %s32, 0
      %p101 = por %p99, %p100
      %s103 = sadd.s32 %s102, 1
      %p106 = scmp.eq.s32.totalorder %s26, 1
      %p107 = scmp.ne.s32.totalorder %s102, %s104
      %p108 = scmp.eq.s32.totalorder %s26, 0
      %p109 = por %p107, %p108
      %p110 = scmp.ne.s32.totalorder %s102, %s104
      %p111 = scmp.eq.s32.totalorder %s31, 1
      %p112 = por %p110, %p111
      %p113 = scmp.ne.s32.totalorder %s104, %s105
      %p114 = scmp.eq.s32.totalorder %s31, 0
      %p115 = por %p113, %p114
      %p116 = scmp.ne.s32.totalorder %s104, %s105
      %p117 = scmp.eq.s32.totalorder %s32, 1
      %p118 = por %p116, %p117
      %p120 = scmp.ne.s32.totalorder %s105, %s119
      %p121 = scmp.eq.s32.totalorder %s32, 0
      %p122 = por %p120, %p121
      %s124 = sadd.s32 %s123, 1
      %p127 = scmp.eq.s32.totalorder %s26, 1
      %p128 = scmp.ne.s32.totalorder %s123, %s125
      %p129 = scmp.eq.s32.totalorder %s26, 0
      %p130 = por %p128, %p129
      %p131 = scmp.ne.s32.totalorder %s123, %s125
      %p132 = scmp.eq.s32.totalorder %s31, 1
      %p133 = por %p131, %p132
      %p134 = scmp.ne.s32.totalorder %s125, %s126
      %p135 = scmp.eq.s32.totalorder %s31, 0
      %p136 = por %p134, %p135
      %p137 = scmp.ne.s32.totalorder %s125, %s126
      %p138 = scmp.eq.s32.totalorder %s32, 1
      %p139 = por %p137, %p138
      %p141 = scmp.ne.s32.totalorder %s126, %s140
      %p142 = scmp.eq.s32.totalorder %s32, 0
      %p143 = por %p141, %p142
      %s145 = sadd.s32 %s144, 1
      %p148 = scmp.eq.s32.totalorder %s26, 1
      %p149 = scmp.ne.s32.totalorder %s144, %s146
      %p150 = scmp.eq.s32.totalorder %s26, 0
      %p151 = por %p149, %p150
      %p152 = scmp.ne.s32.totalorder %s144, %s146
      %p153 = scmp.eq.s32.totalorder %s31, 1
      %p154 = por %p152, %p153
      %p155 = scmp.ne.s32.totalorder %s146, %s147
      %p156 = scmp.eq.s32.totalorder %s31, 0
      %p157 = por %p155, %p156
      %p158 = scmp.ne.s32.totalorder %s146, %s147
      %p159 = scmp.eq.s32.totalorder %s32, 1
      %p160 = por %p158, %p159
      %p162 = scmp.ne.s32.totalorder %s147, %s161
      %p163 = scmp.eq.s32.totalorder %s32, 0
      %p164 = por %p162, %p163
      %s166 = sadd.s32 %s165, 1
      %p169 = scmp.eq.s32.totalorder %s26, 1
      %p170 = scmp.ne.s32.totalorder %s165, %s167
      %p171 = scmp.eq.s32.totalorder %s26, 0
      %p172 = por %p170, %p171
      %p173 = scmp.ne.s32.totalorder %s165, %s167
      %p174 = scmp.eq.s32.totalorder %s31, 1
      %p175 = por %p173, %p174
      %p176 = scmp.ne.s32.totalorder %s167, %s168
      %p177 = scmp.eq.s32.totalorder %s31, 0
      %p178 = por %p176, %p177
      %p179 = scmp.ne.s32.totalorder %s167, %s168
      %p180 = scmp.eq.s32.totalorder %s32, 1
      %p181 = por %p179, %p180
      %p183 = scmp.ne.s32.totalorder %s168, %s182
      %p184 = scmp.eq.s32.totalorder %s32, 0
      %p185 = por %p183, %p184
      %s187 = sadd.s32 %s186, 1
      %p190 = scmp.eq.s32.totalorder %s26, 1
      %p191 = scmp.ne.s32.totalorder %s186, %s188
      %p192 = scmp.eq.s32.totalorder %s26, 0
      %p193 = por %p191, %p192
      %p194 = scmp.ne.s32.totalorder %s186, %s188
      %p195 = scmp.eq.s32.totalorder %s31, 1
      %p196 = por %p194, %p195
      %p197 = scmp.ne.s32.totalorder %s188, %s189
      %p198 = scmp.eq.s32.totalorder %s31, 0
      %p199 = por %p197, %p198
      %p200 = scmp.ne.s32.totalorder %s188, %s189
      %p201 = scmp.eq.s32.totalorder %s32, 1
      %p202 = por %p200, %p201
      %p204 = scmp.ne.s32.totalorder %s189, %s203
      %p205 = scmp.eq.s32.totalorder %s32, 0
      %p206 = por %p204, %p205
      %s208 = sadd.s32 %s207, 1
      %p211 = scmp.eq.s32.totalorder %s26, 1
      %p212 = scmp.ne.s32.totalorder %s207, %s209
      %p213 = scmp.eq.s32.totalorder %s26, 0
      %p214 = por %p212, %p213
      %p215 = scmp.ne.s32.totalorder %s207, %s209
      %p216 = scmp.eq.s32.totalorder %s31, 1
      %p217 = por %p215, %p216
      %p218 = scmp.ne.s32.totalorder %s209, %s210
      %p219 = scmp.eq.s32.totalorder %s31, 0
      %p220 = por %p218, %p219
      %p221 = scmp.ne.s32.totalorder %s209, %s210
      %p222 = scmp.eq.s32.totalorder %s32, 1
      %p223 = por %p221, %p222
      %p225 = scmp.ne.s32.totalorder %s210, %s224
      %p226 = scmp.eq.s32.totalorder %s32, 0
      %p227 = por %p225, %p226
      %s229 = sadd.s32 %s228, 1
      %p232 = scmp.eq.s32.totalorder %s26, 1
      %p233 = scmp.ne.s32.totalorder %s228, %s230
      %p234 = scmp.eq.s32.totalorder %s26, 0
      %p235 = por %p233, %p234
      %p236 = scmp.ne.s32.totalorder %s228, %s230
      %p237 = scmp.eq.s32.totalorder %s31, 1
      %p238 = por %p236, %p237
      %p239 = scmp.ne.s32.totalorder %s230, %s231
      %p240 = scmp.eq.s32.totalorder %s31, 0
      %p241 = por %p239, %p240
      %p242 = scmp.ne.s32.totalorder %s230, %s231
      %p243 = scmp.eq.s32.totalorder %s32, 1
      %p244 = por %p242, %p243
      %p246 = scmp.ne.s32.totalorder %s231, %s245
      %p247 = scmp.eq.s32.totalorder %s32, 0
      %p248 = por %p246, %p247
      %s250 = sadd.s32 %s249, 1
      %p253 = scmp.eq.s32.totalorder %s26, 1
      %p254 = scmp.ne.s32.totalorder %s249, %s251
      %p255 = scmp.eq.s32.totalorder %s26, 0
      %p256 = por %p254, %p255
      %p257 = scmp.ne.s32.totalorder %s249, %s251
      %p258 = scmp.eq.s32.totalorder %s31, 1
      %p259 = por %p257, %p258
      %p260 = scmp.ne.s32.totalorder %s251, %s252
      %p261 = scmp.eq.s32.totalorder %s31, 0
      %p262 = por %p260, %p261
      %p263 = scmp.ne.s32.totalorder %s251, %s252
      %p264 = scmp.eq.s32.totalorder %s32, 1
      %p265 = por %p263, %p264
      %p267 = scmp.ne.s32.totalorder %s252, %s266
      %p268 = scmp.eq.s32.totalorder %s32, 0
      %p269 = por %p267, %p268
      %s271 = sadd.s32 %s270, 1
      %p274 = scmp.eq.s32.totalorder %s26, 1
      %p275 = scmp.ne.s32.totalorder %s270, %s272
      %p276 = scmp.eq.s32.totalorder %s26, 0
      %p277 = por %p275, %p276
      %p278 = scmp.ne.s32.totalorder %s270, %s272
      %p279 = scmp.eq.s32.totalorder %s31, 1
      %p280 = por %p278, %p279
      %p281 = scmp.ne.s32.totalorder %s272, %s273
      %p282 = scmp.eq.s32.totalorder %s31, 0
      %p283 = por %p281, %p282
      %p284 = scmp.ne.s32.totalorder %s272, %s273
      %p285 = scmp.eq.s32.totalorder %s32, 1
      %p286 = por %p284, %p285
      %p288 = scmp.ne.s32.totalorder %s273, %s287
      %p289 = scmp.eq.s32.totalorder %s32, 0
      %p290 = por %p288, %p289
      %s292 = sadd.s32 %s291, 1
      %p295 = scmp.eq.s32.totalorder %s26, 1
      %p296 = scmp.ne.s32.totalorder %s291, %s293
      %p297 = scmp.eq.s32.totalorder %s26, 0
      %p298 = por %p296, %p297
      %p299 = scmp.ne.s32.totalorder %s291, %s293
      %p300 = scmp.eq.s32.totalorder %s31, 1
      %p301 = por %p299, %p300
      %p302 = scmp.ne.s32.totalorder %s293, %s294
      %p303 = scmp.eq.s32.totalorder %s31, 0
      %p304 = por %p302, %p303
      %p305 = scmp.ne.s32.totalorder %s293, %s294
      %p306 = scmp.eq.s32.totalorder %s32, 1
      %p307 = por %p305, %p306
      %p309 = scmp.ne.s32.totalorder %s294, %s308
      %p310 = scmp.eq.s32.totalorder %s32, 0
      %p311 = por %p309, %p310
      %s313 = sadd.s32 %s312, 1
      %p316 = scmp.eq.s32.totalorder %s26, 1
      %p317 = scmp.ne.s32.totalorder %s312, %s314
      %p318 = scmp.eq.s32.totalorder %s26, 0
      %p319 = por %p317, %p318
      %p320 = scmp.ne.s32.totalorder %s312, %s314
      %p321 = scmp.eq.s32.totalorder %s31, 1
      %p322 = por %p320, %p321
      %p323 = scmp.ne.s32.totalorder %s314, %s315
      %p324 = scmp.eq.s32.totalorder %s31, 0
      %p325 = por %p323, %p324
      %p326 = scmp.ne.s32.totalorder %s314, %s315
      %p327 = scmp.eq.s32.totalorder %s32, 1
      %p328 = por %p326, %p327
      %p330 = scmp.ne.s32.totalorder %s315, %s329
      %p331 = scmp.eq.s32.totalorder %s32, 0
      %p332 = por %p330, %p331
      %s334 = sadd.s32 %s333, 1
      %p337 = scmp.eq.s32.totalorder %s26, 1
      %p338 = scmp.ne.s32.totalorder %s333, %s335
      %p339 = scmp.eq.s32.totalorder %s26, 0
      %p340 = por %p338, %p339
      %p341 = scmp.ne.s32.totalorder %s333, %s335
      %p342 = scmp.eq.s32.totalorder %s31, 1
      %p343 = por %p341, %p342
      %p344 = scmp.ne.s32.totalorder %s335, %s336
      %p345 = scmp.eq.s32.totalorder %s31, 0
      %p346 = por %p344, %p345
      %p347 = scmp.ne.s32.totalorder %s335, %s336
      %p348 = scmp.eq.s32.totalorder %s32, 1
      %p349 = por %p347, %p348
      %p351 = scmp.ne.s32.totalorder %s336, %s350
      %p352 = scmp.eq.s32.totalorder %s32, 0
      %p353 = por %p351, %p352
      %s355 = sadd.s32 %s354, 1
      %p358 = scmp.eq.s32.totalorder %s26, 1
      %p359 = scmp.ne.s32.totalorder %s354, %s356
      %p360 = scmp.eq.s32.totalorder %s26, 0
      %p361 = por %p359, %p360
      %p362 = scmp.ne.s32.totalorder %s354, %s356
      %p363 = scmp.eq.s32.totalorder %s31, 1
      %p364 = por %p362, %p363
      %p365 = scmp.ne.s32.totalorder %s356, %s357
      %p366 = scmp.eq.s32.totalorder %s31, 0
      %p367 = por %p365, %p366
      %p368 = scmp.ne.s32.totalorder %s356, %s357
      %p369 = scmp.eq.s32.totalorder %s32, 1
      %p370 = por %p368, %p369
      %p372 = scmp.ne.s32.totalorder %s357, %s371
      %p373 = scmp.eq.s32.totalorder %s32, 0
      %p374 = por %p372, %p373
      %s376 = sadd.s32 %s375, 1
      %p379 = scmp.eq.s32.totalorder %s26, 1
      %p380 = scmp.ne.s32.totalorder %s375, %s377
      %p381 = scmp.eq.s32.totalorder %s26, 0
      %p382 = por %p380, %p381
      %p383 = scmp.ne.s32.totalorder %s375, %s377
      %p384 = scmp.eq.s32.totalorder %s31, 1
      %p385 = por %p383, %p384
      %p386 = scmp.ne.s32.totalorder %s377, %s378
      %p387 = scmp.eq.s32.totalorder %s31, 0
      %p388 = por %p386, %p387
      %p389 = scmp.ne.s32.totalorder %s377, %s378
      %p390 = scmp.eq.s32.totalorder %s32, 1
      %p391 = por %p389, %p390
      %p393 = scmp.ne.s32.totalorder %s378, %s392
      %p394 = scmp.eq.s32.totalorder %s32, 0
      %p395 = por %p393, %p394
      %s396 = ssub.s32 %s26, %s33
      %p397 = scmp.eq.s32.totalorder %s396, 0
      %s399 = sadd.s32 %s398, 1
      %s400 = scalar_select %p397, %s398, %s399
      %p403 = pneg %p397
      %p404 = scmp.eq.s32.totalorder %s26, 1
      %p405 = por %p403, %p404
      %p406 = scmp.ne.s32.totalorder %s398, %s401
      %p407 = scmp.eq.s32.totalorder %s26, 0
      %p408 = por %p406, %p407
      %p409 = scmp.ne.s32.totalorder %s398, %s401
      %p410 = scmp.eq.s32.totalorder %s31, 1
      %p411 = por %p409, %p410
      %p412 = scmp.ne.s32.totalorder %s401, %s402
      %p413 = scmp.eq.s32.totalorder %s31, 0
      %p414 = por %p412, %p413
      %p415 = scmp.ne.s32.totalorder %s401, %s402
      %p416 = scmp.eq.s32.totalorder %s32, 1
      %p417 = por %p415, %p416
      %p419 = scmp.ne.s32.totalorder %s402, %s418
      %p420 = scmp.eq.s32.totalorder %s32, 0
      %p421 = por %p419, %p420
      %p422 = scmp.le.s32.totalorder 1, %s26
      %p423 = scmp.lt.s32.totalorder %s26, 3
      %p424 = pnand %p422, %p423
      %p425 = pneg %p424
      // Predicated region
      $region9: #{vit_forward.1} parent=5 // pred_check
        _
      $region10: #{vit_forward.1} parent=5 // pred_check_branch
        %427 = sbr.rel (%p424) target = $region12
      $region11: #{vit_forward.1} parent=5 // pred_region
        %s428 = ssub.s32 %s26, 1
        // Predicated region
        $region13: #{vit_forward.1} parent=11 // pred_check
          %p429 = pneg %p73
        $region14: #{vit_forward.1} parent=11 // pred_check_branch
          %431 = sbr.rel (%p429) target = $region16
        $region15: #{vit_forward.1} parent=11 // pred_region
          _
        $region16: #{vit_forward.1} parent=11 // pred_fallthru
          _
        // Predicated region
        $region17: #{vit_forward.1} parent=11 // pred_check
          %p432 = pneg %p94
        $region18: #{vit_forward.1} parent=11 // pred_check_branch
          %434 = sbr.rel (%p432) target = $region20
        $region19: #{vit_forward.1} parent=11 // pred_region
          _
        $region20: #{vit_forward.1} parent=11 // pred_fallthru
          _
        // Predicated region
        $region21: #{vit_forward.1} parent=11 // pred_check
          %p435 = pneg %p115
        $region22: #{vit_forward.1} parent=11 // pred_check_branch
          %437 = sbr.rel (%p435) target = $region24
        $region23: #{vit_forward.1} parent=11 // pred_region
          _
        $region24: #{vit_forward.1} parent=11 // pred_fallthru
          _
        // Predicated region
        $region25: #{vit_forward.1} parent=11 // pred_check
          %p438 = pneg %p136
        $region26: #{vit_forward.1} parent=11 // pred_check_branch
          %440 = sbr.rel (%p438) target = $region28
        $region27: #{vit_forward.1} parent=11 // pred_region
          _
        $region28: #{vit_forward.1} parent=11 // pred_fallthru
          _
        // Predicated region
        $region29: #{vit_forward.1} parent=11 // pred_check
          %p441 = pneg %p157
        $region30: #{vit_forward.1} parent=11 // pred_check_branch
          %443 = sbr.rel (%p441) target = $region32
        $region31: #{vit_forward.1} parent=11 // pred_region
          _
        $region32: #{vit_forward.1} parent=11 // pred_fallthru
          _
        // Predicated region
        $region33: #{vit_forward.1} parent=11 // pred_check
          %p444 = pneg %p178
        $region34: #{vit_forward.1} parent=11 // pred_check_branch
          %446 = sbr.rel (%p444) target = $region36
        $region35: #{vit_forward.1} parent=11 // pred_region
          _
        $region36: #{vit_forward.1} parent=11 // pred_fallthru
          _
        // Predicated region
        $region37: #{vit_forward.1} parent=11 // pred_check
          %p447 = pneg %p199
        $region38: #{vit_forward.1} parent=11 // pred_check_branch
          %449 = sbr.rel (%p447) target = $region40
        $region39: #{vit_forward.1} parent=11 // pred_region
          _
        $region40: #{vit_forward.1} parent=11 // pred_fallthru
          _
        // Predicated region
        $region41: #{vit_forward.1} parent=11 // pred_check
          %p450 = pneg %p220
        $region42: #{vit_forward.1} parent=11 // pred_check_branch
          %452 = sbr.rel (%p450) target = $region44
        $region43: #{vit_forward.1} parent=11 // pred_region
          _
        $region44: #{vit_forward.1} parent=11 // pred_fallthru
          _
        // Predicated region
        $region45: #{vit_forward.1} parent=11 // pred_check
          %p453 = pneg %p241
        $region46: #{vit_forward.1} parent=11 // pred_check_branch
          %455 = sbr.rel (%p453) target = $region48
        $region47: #{vit_forward.1} parent=11 // pred_region
          _
        $region48: #{vit_forward.1} parent=11 // pred_fallthru
          _
        // Predicated region
        $region49: #{vit_forward.1} parent=11 // pred_check
          %p456 = pneg %p262
        $region50: #{vit_forward.1} parent=11 // pred_check_branch
          %458 = sbr.rel (%p456) target = $region52
        $region51: #{vit_forward.1} parent=11 // pred_region
          _
        $region52: #{vit_forward.1} parent=11 // pred_fallthru
          _
        // Predicated region
        $region53: #{vit_forward.1} parent=11 // pred_check
          %p459 = pneg %p283
        $region54: #{vit_forward.1} parent=11 // pred_check_branch
          %461 = sbr.rel (%p459) target = $region56
        $region55: #{vit_forward.1} parent=11 // pred_region
          _
        $region56: #{vit_forward.1} parent=11 // pred_fallthru
          _
        // Predicated region
        $region57: #{vit_forward.1} parent=11 // pred_check
          %p462 = pneg %p304
        $region58: #{vit_forward.1} parent=11 // pred_check_branch
          %464 = sbr.rel (%p462) target = $region60
        $region59: #{vit_forward.1} parent=11 // pred_region
          _
        $region60: #{vit_forward.1} parent=11 // pred_fallthru
          _
        // Predicated region
        $region61: #{vit_forward.1} parent=11 // pred_check
          %p465 = pneg %p325
        $region62: #{vit_forward.1} parent=11 // pred_check_branch
          %467 = sbr.rel (%p465) target = $region64
        $region63: #{vit_forward.1} parent=11 // pred_region
          _
        $region64: #{vit_forward.1} parent=11 // pred_fallthru
          _
        // Predicated region
        $region65: #{vit_forward.1} parent=11 // pred_check
          %p468 = pneg %p346
        $region66: #{vit_forward.1} parent=11 // pred_check_branch
          %470 = sbr.rel (%p468) target = $region68
        $region67: #{vit_forward.1} parent=11 // pred_region
          _
        $region68: #{vit_forward.1} parent=11 // pred_fallthru
          _
        // Predicated region
        $region69: #{vit_forward.1} parent=11 // pred_check
          %p471 = pneg %p367
        $region70: #{vit_forward.1} parent=11 // pred_check_branch
          %473 = sbr.rel (%p471) target = $region72
        $region71: #{vit_forward.1} parent=11 // pred_region
          _
        $region72: #{vit_forward.1} parent=11 // pred_fallthru
          _
        // Predicated region
        $region73: #{vit_forward.1} parent=11 // pred_check
          %p474 = pneg %p388
        $region74: #{vit_forward.1} parent=11 // pred_check_branch
          %476 = sbr.rel (%p474) target = $region76
        $region75: #{vit_forward.1} parent=11 // pred_region
          _
        $region76: #{vit_forward.1} parent=11 // pred_fallthru
          _
      $region12: #{vit_forward.1} parent=5 // pred_fallthru
        _
      %p477 = scmp.lt.s32.totalorder %s26, 2
      // Predicated region
      $region77: #{vit_forward.1} parent=5 // pred_check
        %p478 = pneg %p477
      $region78: #{vit_forward.1} parent=5 // pred_check_branch
        %480 = sbr.rel (%p478) target = $region80
      $region79: #{vit_forward.1} parent=5 // pred_region
        // Predicated region
        $region81: #{vit_forward.1} parent=79 // pred_check
          %p481 = pneg %p46
        $region82: #{vit_forward.1} parent=79 // pred_check_branch
          %483 = sbr.rel (%p481) target = $region84
        $region83: #{vit_forward.1} parent=79 // pred_region
          %p484 = scmp.lt.s32.totalorder %s26, 1
          %s485 = scalar_select %p484, %s26, 1
          %s486 = smul.addr %s485, 6
          %s487 = smul.addr %s486, 4
          %s488 = scalar_lea.vmem %s0, %s487
        $region84: #{vit_forward.1} parent=79 // pred_fallthru
          _
      $region80: #{vit_forward.1} parent=5 // pred_fallthru
        _
      %p489 = scmp.le.s32.totalorder 1, %s26
      %p490 = scmp.lt.s32.totalorder %s26, 3
      %p491 = pnand %p489, %p490
      %p492 = pneg %p491
      // Predicated region
      $region85: #{vit_forward.1} parent=5 // pred_check
        _
      $region86: #{vit_forward.1} parent=5 // pred_check_branch
        %494 = sbr.rel (%p491) target = $region88
      $region87: #{vit_forward.1} parent=5 // pred_region
        %s495 = ssub.s32 %s26, 1
        %p496 = scmp.lt.s32.totalorder %s31, 1
        %s497 = scalar_select %p496, %s31, 1
        %s498 = smul.addr %s497, 6
        %s499 = smul.addr %s498, 4
        %s500 = scalar_lea.vmem %s0, %s499
        %p501 = pneg %p52
        %p502 = pneg %p49
        %p503 = pneg %p73
        %p504 = pneg %p70
        %p505 = pneg %p94
        %p506 = pneg %p91
        %p507 = pneg %p115
        %p508 = pneg %p112
        %p509 = pneg %p136
        %p510 = pneg %p133
        %p511 = pneg %p157
        %p512 = pneg %p154
        %p513 = pneg %p178
        %p514 = pneg %p175
        %p515 = pneg %p199
        %p516 = pneg %p196
        %p517 = pneg %p220
        %p518 = pneg %p217
        %p519 = pneg %p241
        %p520 = pneg %p238
        %p521 = pneg %p262
        %p522 = pneg %p259
        %p523 = pneg %p283
        %p524 = pneg %p280
        %p525 = pneg %p304
        %p526 = pneg %p301
        %p527 = pneg %p325
        %p528 = pneg %p322
        %p529 = pneg %p346
        %p530 = pneg %p343
        %p531 = pneg %p367
        %p532 = pneg %p364
        %p533 = pneg %p388
        %p534 = pneg %p385
        %p535 = pneg %p414
        %p536 = pneg %p411
        %s537 = sand.u32 %s401, 1
        %s538 = scalar_lea.sflag [#allocation3], %s537
        %s539 = sand.u32 %s401, 1
        %s540 = scalar_lea.vmem [#allocation2], %s539
        %p541 = scmp.lt.s32.totalorder %s31, 1
        %s542 = scalar_select %p541, %s31, 1
        %s543 = smul.addr %s542, 6
        %s544 = smul.addr %s543, 4
        %s545 = scalar_lea.vmem %s0, %s544
        %v547 = vld [vmem:[%s545] sm:$0xff]
        %v548 = vld [vmem:[%s545 + $0x8] sm:$0xff]
        %v549 = vld [vmem:[%s545 + $0x10] sm:$0xff]
        %v550 = vld [vmem:[%s1] sm:$0xf]
        %v551 = vld [vmem:[%s1 + $0x4] sm:$0xf]
        %v552 = vld [vmem:[%s1 + $0x8] sm:$0xf]
        %v553 = vld [vmem:[%s1 + $0xc] sm:$0xf]
        %v554 = vld [vmem:[%s1 + $0x10] sm:$0xf]
        %v555 = vld [vmem:[%s1 + $0x14] sm:$0xf]
        %v556 = vld [vmem:[%s1 + $0x18] sm:$0xf]
        %v557 = vld [vmem:[%s1 + $0x1c] sm:$0xf]
        %v558 = vld [vmem:[%s1 + $0x20] sm:$0xf]
        %v559 = vld [vmem:[%s1 + $0x24] sm:$0xf]
        %v560 = vld [vmem:[%s1 + $0x28] sm:$0xf]
        %v561 = vld [vmem:[%s1 + $0x2c] sm:$0xf]
        %v562 = vld [vmem:[%s1 + $0x30] sm:$0xf]
        %v563 = vld [vmem:[%s1 + $0x34] sm:$0xf]
        %v564 = vld [vmem:[%s1 + $0x38] sm:$0xf]
        %v565 = vld [vmem:[%s1 + $0x3c] sm:$0xf]
        %v566 = vld [vmem:[%s1 + $0x40] sm:$0xf]
        %v567 = vld [vmem:[%s1 + $0x44] sm:$0xf]
        %v568 = vld [vmem:[%s1 + $0x48] sm:$0xf]
        %v569 = vld [vmem:[%s1 + $0x4c] sm:$0xf]
        %v570 = vld [vmem:[%s1 + $0x50] sm:$0xf]
        %v571 = vld [vmem:[%s1 + $0x54] sm:$0xf]
        %v572 = vld [vmem:[%s1 + $0x58] sm:$0xf]
        %v573 = vld [vmem:[%s1 + $0x5c] sm:$0xf]
        %v574 = vld [vmem:[%s1 + $0x60] sm:$0xf]
        %v575 = vld [vmem:[%s1 + $0x64] sm:$0xf]
        %v576 = vld [vmem:[%s1 + $0x68] sm:$0xf]
        %v577 = vld [vmem:[%s1 + $0x6c] sm:$0xf]
        %v578 = vld [vmem:[%s1 + $0x70] sm:$0xf]
        %v579 = vld [vmem:[%s1 + $0x74] sm:$0xf]
        %v580 = vld [vmem:[%s1 + $0x78] sm:$0xf]
        %v581 = vld [vmem:[%s1 + $0x7c] sm:$0xf]
        %v582 = vld [vmem:[%s1 + $0x80] sm:$0xf]
        %v583 = vld [vmem:[%s1 + $0x84] sm:$0xf]
        %v584 = vld [vmem:[%s1 + $0x88] sm:$0xf]
        %v585 = vld [vmem:[%s1 + $0x8c] sm:$0xf]
        %v586 = vld [vmem:[%s1 + $0x90] sm:$0xf]
        %v587 = vld [vmem:[%s1 + $0x94] sm:$0xf]
        %v588 = vld [vmem:[%s1 + $0x98] sm:$0xf]
        %v589 = vld [vmem:[%s1 + $0x9c] sm:$0xf]
        %v590 = vld [vmem:[%s1 + $0xa0] sm:$0xf]
        %v591 = vld [vmem:[%s1 + $0xa4] sm:$0xf]
        %v592 = vld [vmem:[%s1 + $0xa8] sm:$0xf]
        %v593 = vld [vmem:[%s1 + $0xac] sm:$0xf]
        %v594 = vld [vmem:[%s1 + $0xb0] sm:$0xf]
        %v595 = vld [vmem:[%s1 + $0xb4] sm:$0xf]
        %v596 = vld [vmem:[%s1 + $0xb8] sm:$0xf]
        %v597 = vld [vmem:[%s1 + $0xbc] sm:$0xf]
        %v598 = vld [vmem:[%s1 + $0xc0] sm:$0xf]
        %v599 = vld [vmem:[%s1 + $0xc4] sm:$0xf]
        %v600 = vld [vmem:[%s1 + $0xc8] sm:$0xf]
        %v601 = vld [vmem:[%s1 + $0xcc] sm:$0xf]
        %v602 = vld [vmem:[%s1 + $0xd0] sm:$0xf]
        %v603 = vld [vmem:[%s1 + $0xd4] sm:$0xf]
        %v604 = vld [vmem:[%s1 + $0xd8] sm:$0xf]
        %v605 = vld [vmem:[%s1 + $0xdc] sm:$0xf]
        %v606 = vld [vmem:[%s1 + $0xe0] sm:$0xf]
        %v607 = vld [vmem:[%s1 + $0xe4] sm:$0xf]
        %v608 = vld [vmem:[%s1 + $0xe8] sm:$0xf]
        %v609 = vld [vmem:[%s1 + $0xec] sm:$0xf]
        %v610 = vld [vmem:[%s1 + $0xf0] sm:$0xf]
        %v611 = vld [vmem:[%s1 + $0xf4] sm:$0xf]
        %v612 = vld [vmem:[%s1 + $0xf8] sm:$0xf]
        %v613 = vld [vmem:[%s1 + $0xfc] sm:$0xf]
        %v614 = vld [vmem:[%s1 + $0x100] sm:$0xf]
        %v615 = vld [vmem:[%s1 + $0x104] sm:$0xf]
        %v616 = vld [vmem:[%s1 + $0x108] sm:$0xf]
        %v617 = vld [vmem:[%s1 + $0x10c] sm:$0xf]
        %v618 = vld [vmem:[%s1 + $0x110] sm:$0xf]
        %v619 = vld [vmem:[%s1 + $0x114] sm:$0xf]
        %v620 = vld [vmem:[%s1 + $0x118] sm:$0xf]
        %v621 = vld [vmem:[%s1 + $0x11c] sm:$0xf]
        %v622 = vld [vmem:[%s1 + $0x120] sm:$0xf]
        %v623 = vld [vmem:[%s1 + $0x124] sm:$0xf]
        %v624 = vld [vmem:[%s1 + $0x128] sm:$0xf]
        %v625 = vld [vmem:[%s1 + $0x12c] sm:$0xf]
        %v626 = vld [vmem:[%s1 + $0x130] sm:$0xf]
        %v627 = vld [vmem:[%s1 + $0x134] sm:$0xf]
        %v628 = vld [vmem:[%s1 + $0x138] sm:$0xf]
        %v629 = vld [vmem:[%s1 + $0x13c] sm:$0xf]
        %v630 = vld [vmem:[%s1 + $0x140] sm:$0xf]
        %v631 = vld [vmem:[%s1 + $0x144] sm:$0xf]
        %v632 = vld [vmem:[%s1 + $0x148] sm:$0xf]
        %v633 = vld [vmem:[%s1 + $0x14c] sm:$0xf]
        %v634 = vld [vmem:[%s1 + $0x150] sm:$0xf]
        %v635 = vld [vmem:[%s1 + $0x154] sm:$0xf]
        %v636 = vld [vmem:[%s1 + $0x158] sm:$0xf]
        %v637 = vld [vmem:[%s1 + $0x15c] sm:$0xf]
        %v638 = vld [vmem:[%s1 + $0x160] sm:$0xf]
        %v639 = vld [vmem:[%s1 + $0x164] sm:$0xf]
        %v640 = vld [vmem:[%s1 + $0x168] sm:$0xf]
        %v641 = vld [vmem:[%s1 + $0x16c] sm:$0xf]
        %v642 = vld [vmem:[%s1 + $0x170] sm:$0xf]
        %v643 = vld [vmem:[%s1 + $0x174] sm:$0xf]
        %v644 = vld [vmem:[%s1 + $0x178] sm:$0xf]
        %v645 = vld [vmem:[%s1 + $0x17c] sm:$0xf]
        %v646 = vld [vmem:[%s2] sm:$0xff]
        %v650 = vunpack.c.l.b16 %v547
        %v651 = vunpack.c.h.b16 %v547
        %v652 = vunpack.c.l.b16 %v548
        %v653 = vunpack.c.h.b16 %v548
        %v654 = vunpack.c.l.b16 %v549
        %v655 = vunpack.c.h.b16 %v549
        %v656 = vpack.c.b16 %v650, %v650
        %v657 = vpack.c.b16 %v651, %v651
        %v658 = vpack.c.b16 %v652, %v652
        %v659 = vpack.c.b16 %v653, %v653
        %v660 = vpack.c.b16 %v654, %v654
        %v661 = vpack.c.b16 %v655, %v655
        %v764 = vunpack.c.l.b16 %v550
        %v765 = vunpack.c.l.b16 %v551
        %v766 = vunpack.c.l.b16 %v552
        %v767 = vunpack.c.l.b16 %v553
        %v768 = vunpack.c.l.b16 %v554
        %v769 = vunpack.c.l.b16 %v555
        %v770 = vunpack.c.l.b16 %v556
        %v771 = vunpack.c.l.b16 %v557
        %v772 = vunpack.c.l.b16 %v558
        %v773 = vunpack.c.l.b16 %v559
        %v774 = vunpack.c.l.b16 %v560
        %v775 = vunpack.c.l.b16 %v561
        %v776 = vunpack.c.l.b16 %v562
        %v777 = vunpack.c.l.b16 %v563
        %v778 = vunpack.c.l.b16 %v564
        %v779 = vunpack.c.l.b16 %v565
        %v780 = vunpack.c.l.b16 %v566
        %v781 = vunpack.c.l.b16 %v567
        %v782 = vunpack.c.l.b16 %v568
        %v783 = vunpack.c.l.b16 %v569
        %v784 = vunpack.c.l.b16 %v570
        %v785 = vunpack.c.l.b16 %v571
        %v786 = vunpack.c.l.b16 %v572
        %v787 = vunpack.c.l.b16 %v573
        %v788 = vunpack.c.l.b16 %v574
        %v789 = vunpack.c.l.b16 %v575
        %v790 = vunpack.c.l.b16 %v576
        %v791 = vunpack.c.l.b16 %v577
        %v792 = vunpack.c.l.b16 %v578
        %v793 = vunpack.c.l.b16 %v579
        %v794 = vunpack.c.l.b16 %v580
        %v795 = vunpack.c.l.b16 %v581
        %v796 = vunpack.c.l.b16 %v582
        %v797 = vunpack.c.l.b16 %v583
        %v798 = vunpack.c.l.b16 %v584
        %v799 = vunpack.c.l.b16 %v585
        %v800 = vunpack.c.l.b16 %v586
        %v801 = vunpack.c.l.b16 %v587
        %v802 = vunpack.c.l.b16 %v588
        %v803 = vunpack.c.l.b16 %v589
        %v804 = vunpack.c.l.b16 %v590
        %v805 = vunpack.c.l.b16 %v591
        %v806 = vunpack.c.l.b16 %v592
        %v807 = vunpack.c.l.b16 %v593
        %v808 = vunpack.c.l.b16 %v594
        %v809 = vunpack.c.l.b16 %v595
        %v810 = vunpack.c.l.b16 %v596
        %v811 = vunpack.c.l.b16 %v597
        %v812 = vunpack.c.l.b16 %v598
        %v813 = vunpack.c.l.b16 %v599
        %v814 = vunpack.c.l.b16 %v600
        %v815 = vunpack.c.l.b16 %v601
        %v816 = vunpack.c.l.b16 %v602
        %v817 = vunpack.c.l.b16 %v603
        %v818 = vunpack.c.l.b16 %v604
        %v819 = vunpack.c.l.b16 %v605
        %v820 = vunpack.c.l.b16 %v606
        %v821 = vunpack.c.l.b16 %v607
        %v822 = vunpack.c.l.b16 %v608
        %v823 = vunpack.c.l.b16 %v609
        %v824 = vunpack.c.l.b16 %v610
        %v825 = vunpack.c.l.b16 %v611
        %v826 = vunpack.c.l.b16 %v612
        %v827 = vunpack.c.l.b16 %v613
        %v828 = vunpack.c.l.b16 %v614
        %v829 = vunpack.c.l.b16 %v615
        %v830 = vunpack.c.l.b16 %v616
        %v831 = vunpack.c.l.b16 %v617
        %v832 = vunpack.c.l.b16 %v618
        %v833 = vunpack.c.l.b16 %v619
        %v834 = vunpack.c.l.b16 %v620
        %v835 = vunpack.c.l.b16 %v621
        %v836 = vunpack.c.l.b16 %v622
        %v837 = vunpack.c.l.b16 %v623
        %v838 = vunpack.c.l.b16 %v624
        %v839 = vunpack.c.l.b16 %v625
        %v840 = vunpack.c.l.b16 %v626
        %v841 = vunpack.c.l.b16 %v627
        %v842 = vunpack.c.l.b16 %v628
        %v843 = vunpack.c.l.b16 %v629
        %v844 = vunpack.c.l.b16 %v630
        %v845 = vunpack.c.l.b16 %v631
        %v846 = vunpack.c.l.b16 %v632
        %v847 = vunpack.c.l.b16 %v633
        %v848 = vunpack.c.l.b16 %v634
        %v849 = vunpack.c.l.b16 %v635
        %v850 = vunpack.c.l.b16 %v636
        %v851 = vunpack.c.l.b16 %v637
        %v852 = vunpack.c.l.b16 %v638
        %v853 = vunpack.c.l.b16 %v639
        %v854 = vunpack.c.l.b16 %v640
        %v855 = vunpack.c.l.b16 %v641
        %v856 = vunpack.c.l.b16 %v642
        %v857 = vunpack.c.l.b16 %v643
        %v858 = vunpack.c.l.b16 %v644
        %v859 = vunpack.c.l.b16 %v645
        %v860 = vpack.c.b16 %v765, %v764
        %v861 = vpack.c.b16 %v767, %v766
        %v862 = vpack.c.b16 %v769, %v768
        %v863 = vpack.c.b16 %v771, %v770
        %v864 = vpack.c.b16 %v773, %v772
        %v865 = vpack.c.b16 %v775, %v774
        %v866 = vpack.c.b16 %v777, %v776
        %v867 = vpack.c.b16 %v779, %v778
        %v868 = vpack.c.b16 %v781, %v780
        %v869 = vpack.c.b16 %v783, %v782
        %v870 = vpack.c.b16 %v785, %v784
        %v871 = vpack.c.b16 %v787, %v786
        %v872 = vpack.c.b16 %v789, %v788
        %v873 = vpack.c.b16 %v791, %v790
        %v874 = vpack.c.b16 %v793, %v792
        %v875 = vpack.c.b16 %v795, %v794
        %v876 = vpack.c.b16 %v797, %v796
        %v877 = vpack.c.b16 %v799, %v798
        %v878 = vpack.c.b16 %v801, %v800
        %v879 = vpack.c.b16 %v803, %v802
        %v880 = vpack.c.b16 %v805, %v804
        %v881 = vpack.c.b16 %v807, %v806
        %v882 = vpack.c.b16 %v809, %v808
        %v883 = vpack.c.b16 %v811, %v810
        %v884 = vpack.c.b16 %v813, %v812
        %v885 = vpack.c.b16 %v815, %v814
        %v886 = vpack.c.b16 %v817, %v816
        %v887 = vpack.c.b16 %v819, %v818
        %v888 = vpack.c.b16 %v821, %v820
        %v889 = vpack.c.b16 %v823, %v822
        %v890 = vpack.c.b16 %v825, %v824
        %v891 = vpack.c.b16 %v827, %v826
        %v892 = vpack.c.b16 %v829, %v828
        %v893 = vpack.c.b16 %v831, %v830
        %v894 = vpack.c.b16 %v833, %v832
        %v895 = vpack.c.b16 %v835, %v834
        %v896 = vpack.c.b16 %v837, %v836
        %v897 = vpack.c.b16 %v839, %v838
        %v898 = vpack.c.b16 %v841, %v840
        %v899 = vpack.c.b16 %v843, %v842
        %v900 = vpack.c.b16 %v845, %v844
        %v901 = vpack.c.b16 %v847, %v846
        %v902 = vpack.c.b16 %v849, %v848
        %v903 = vpack.c.b16 %v851, %v850
        %v904 = vpack.c.b16 %v853, %v852
        %v905 = vpack.c.b16 %v855, %v854
        %v906 = vpack.c.b16 %v857, %v856
        %v907 = vpack.c.b16 %v859, %v858
        %956 = vmatprep.subr.bf16.mxu0 0
        %957 = vmatpush1.bf16.msra.mxu0 %v860
        %958 = vmatprep.subr.bf16.mxu0 0
        %959 = vmatpush1.bf16.msra.mxu0 %v861
        %960 = vmatprep.subr.bf16.mxu0 0
        %961 = vmatpush1.bf16.msra.mxu0 %v862
        %962 = vmatprep.subr.bf16.mxu0 0
        %963 = vmatpush1.bf16.msra.mxu0 %v863
        %964 = vmatprep.subr.bf16.mxu0 0
        %965 = vmatpush1.bf16.msra.mxu0 %v864
        %966 = vmatprep.subr.bf16.mxu0 0
        %967 = vmatpush1.bf16.msra.mxu0 %v865
        %968 = vmatprep.subr.bf16.mxu0 0
        %969 = vmatpush1.bf16.msra.mxu0 %v866
        %970 = vmatprep.subr.bf16.mxu0 0
        %971 = vmatpush1.bf16.msra.mxu0 %v867
        %972 = vmatprep.subr.bf16.mxu0 0
        %973 = vmatpush1.bf16.msra.mxu0 %v868
        %974 = vmatprep.subr.bf16.mxu0 0
        %975 = vmatpush1.bf16.msra.mxu0 %v869
        %976 = vmatprep.subr.bf16.mxu0 0
        %977 = vmatpush1.bf16.msra.mxu0 %v870
        %978 = vmatprep.subr.bf16.mxu0 0
        %979 = vmatpush1.bf16.msra.mxu0 %v871
        %980 = vmatprep.subr.bf16.mxu0 0
        %981 = vmatpush1.bf16.msra.mxu0 %v872
        %982 = vmatprep.subr.bf16.mxu0 0
        %983 = vmatpush1.bf16.msra.mxu0 %v873
        %984 = vmatprep.subr.bf16.mxu0 0
        %985 = vmatpush1.bf16.msra.mxu0 %v874
        %986 = vmatprep.subr.bf16.mxu0 0
        %987 = vmatpush1.bf16.msra.mxu0 %v875
        %988 = vmatprep.mubr.bf16.mxu0 %v657
        %989 = vmatmul.mubr.bf16.gmra.mrb[0].mxu0 %v656
        %v990 = vpop.f32.mrb[0].mxu0
        %v991 = vadd.f32 %v646, %v990
        %v992 = vpop.f32.mrb[0].mxu0
        %v993 = vpop.f32.mrb[0].mxu0
        %v994 = vpop.f32.mrb[0].mxu0
        %995 = vdwg.mxu0
        %996 = vmatprep.subr.bf16.mxu0 0
        %997 = vmatpush1.bf16.msra.mxu0 %v876
        %998 = vmatprep.subr.bf16.mxu0 0
        %999 = vmatpush1.bf16.msra.mxu0 %v877
        %1000 = vmatprep.subr.bf16.mxu0 0
        %1001 = vmatpush1.bf16.msra.mxu0 %v878
        %1002 = vmatprep.subr.bf16.mxu0 0
        %1003 = vmatpush1.bf16.msra.mxu0 %v879
        %1004 = vmatprep.subr.bf16.mxu0 0
        %1005 = vmatpush1.bf16.msra.mxu0 %v880
        %1006 = vmatprep.subr.bf16.mxu0 0
        %1007 = vmatpush1.bf16.msra.mxu0 %v881
        %1008 = vmatprep.subr.bf16.mxu0 0
        %1009 = vmatpush1.bf16.msra.mxu0 %v882
        %1010 = vmatprep.subr.bf16.mxu0 0
        %1011 = vmatpush1.bf16.msra.mxu0 %v883
        %1012 = vmatprep.subr.bf16.mxu0 0
        %1013 = vmatpush1.bf16.msra.mxu0 %v884
        %1014 = vmatprep.subr.bf16.mxu0 0
        %1015 = vmatpush1.bf16.msra.mxu0 %v885
        %1016 = vmatprep.subr.bf16.mxu0 0
        %1017 = vmatpush1.bf16.msra.mxu0 %v886
        %1018 = vmatprep.subr.bf16.mxu0 0
        %1019 = vmatpush1.bf16.msra.mxu0 %v887
        %1020 = vmatprep.subr.bf16.mxu0 0
        %1021 = vmatpush1.bf16.msra.mxu0 %v888
        %1022 = vmatprep.subr.bf16.mxu0 0
        %1023 = vmatpush1.bf16.msra.mxu0 %v889
        %1024 = vmatprep.subr.bf16.mxu0 0
        %1025 = vmatpush1.bf16.msra.mxu0 %v890
        %1026 = vmatprep.subr.bf16.mxu0 0
        %1027 = vmatpush1.bf16.msra.mxu0 %v891
        %1028 = vmatprep.mubr.bf16.mxu0 %v659
        %1029 = vmatmul.mubr.bf16.gmra.mrb[0].mxu0 %v658
        %v1030 = vpop.f32.mrb[0].mxu0
        %v1031 = vadd.f32 %v991, %v1030
        %v1032 = vpop.f32.mrb[0].mxu0
        %v1033 = vpop.f32.mrb[0].mxu0
        %v1034 = vpop.f32.mrb[0].mxu0
        %1035 = vdwg.mxu0
        %1036 = vmatprep.subr.bf16.mxu0 0
        %1037 = vmatpush1.bf16.msra.mxu0 %v892
        %1038 = vmatprep.subr.bf16.mxu0 0
        %1039 = vmatpush1.bf16.msra.mxu0 %v893
        %1040 = vmatprep.subr.bf16.mxu0 0
        %1041 = vmatpush1.bf16.msra.mxu0 %v894
        %1042 = vmatprep.subr.bf16.mxu0 0
        %1043 = vmatpush1.bf16.msra.mxu0 %v895
        %1044 = vmatprep.subr.bf16.mxu0 0
        %1045 = vmatpush1.bf16.msra.mxu0 %v896
        %1046 = vmatprep.subr.bf16.mxu0 0
        %1047 = vmatpush1.bf16.msra.mxu0 %v897
        %1048 = vmatprep.subr.bf16.mxu0 0
        %1049 = vmatpush1.bf16.msra.mxu0 %v898
        %1050 = vmatprep.subr.bf16.mxu0 0
        %1051 = vmatpush1.bf16.msra.mxu0 %v899
        %1052 = vmatprep.subr.bf16.mxu0 0
        %1053 = vmatpush1.bf16.msra.mxu0 %v900
        %1054 = vmatprep.subr.bf16.mxu0 0
        %1055 = vmatpush1.bf16.msra.mxu0 %v901
        %1056 = vmatprep.subr.bf16.mxu0 0
        %1057 = vmatpush1.bf16.msra.mxu0 %v902
        %1058 = vmatprep.subr.bf16.mxu0 0
        %1059 = vmatpush1.bf16.msra.mxu0 %v903
        %1060 = vmatprep.subr.bf16.mxu0 0
        %1061 = vmatpush1.bf16.msra.mxu0 %v904
        %1062 = vmatprep.subr.bf16.mxu0 0
        %1063 = vmatpush1.bf16.msra.mxu0 %v905
        %1064 = vmatprep.subr.bf16.mxu0 0
        %1065 = vmatpush1.bf16.msra.mxu0 %v906
        %1066 = vmatprep.subr.bf16.mxu0 0
        %1067 = vmatpush1.bf16.msra.mxu0 %v907
        %1068 = vmatprep.mubr.bf16.mxu0 %v661
        %1069 = vmatmul.mubr.bf16.gmra.mrb[0].mxu0 %v660
        %v1070 = vpop.f32.mrb[0].mxu0
        %v1071 = vadd.f32 %v1031, %v1070
        %v1072 = vpop.f32.mrb[0].mxu0
        %v1073 = vpop.f32.mrb[0].mxu0
        %v1074 = vpop.f32.mrb[0].mxu0
        %1075 = vdwg.mxu0
        %v1076 = vlaneseq
        %v1077 = vand.u32 %v1076, 127
        %vm1078 = vcmp.lt.s32.totalorder %v1077, 5
        %v1079 = vsel %vm1078, 0.0, -1e+30
        %v1080 = vld [vmem:[%s3] sm:$0x1]
        %v1081 = vld [vmem:[%s4] sm:$0x1]
        %vm1082 = vcmask 523264
        %v1083 = vsel %vm1082, %v1071, 0.0
        %1084 = vadd.xlane.f32.xlu0 %v1083
        %v1085 = vpop.xlane.xlu0 %1084
        %v1086 = vrcp.pop 64.0
        %v1087 = vmul.f32 %v1085, %v1086
        %v1088 = vsub.f32 %v1071, %v1087
        %v1089 = vmul.f32 %v1088, %v1088
        %v1090 = vsel %vm1082, %v1089, 0.0
        %1091 = vadd.xlane.f32.xlu0 %v1090
        %v1092 = vpop.xlane.xlu0 %1091
        %v1093 = vmul.f32 %v1092, %v1086
        %v1094 = vadd.f32 %v1093, 1e-06
        %v1095 = vrsqrt.pop %v1094
        %v1096 = vmul.f32 %v1088, %v1095
        %v1098 = vlaneseq
        %v1099 = vshrl.u32 %v1098, 7
        %v1100 = vsub.s32 0, %v1099
        %v1101 = vrot.slane %v1080, %v1100
        %v1103 = vmul.f32 %v1096, %v1101
        %v1105 = vlaneseq
        %v1106 = vshrl.u32 %v1105, 7
        %v1107 = vsub.s32 0, %v1106
        %v1108 = vrot.slane %v1081, %v1107
        %v1110 = vadd.f32 %v1103, %v1108
        %v1111 = vpack.c.bf16 %v1110, %v1110
        %v1112 = vld [vmem:[%s5] sm:$0xff]
        %v1113 = vld [vmem:[%s5 + $0x8] sm:$0xff]
        %v1114 = vld [vmem:[%s5 + $0x10] sm:$0xff]
        %v1115 = vld [vmem:[%s5 + $0x18] sm:$0xff]
        %v1116 = vld [vmem:[%s5 + $0x20] sm:$0xff]
        %v1117 = vld [vmem:[%s5 + $0x28] sm:$0xff]
        %v1118 = vld [vmem:[%s5 + $0x30] sm:$0xff]
        %v1119 = vld [vmem:[%s5 + $0x38] sm:$0xff]
        %v1120 = vld [vmem:[%s6] sm:$0x3]
        %v1122 = vlaneseq
        %v1123 = vshrl.u32 %v1122, 7
        %v1124 = vsub.s32 0, %v1123
        %v1125 = vrot.slane %v1120, %v1124
        %v1126 = vlaneseq
        %v1127 = vshrl.u32 %v1126, 7
        %v1128 = vsub.s32 1, %v1127
        %v1129 = vrot.slane %v1120, %v1128
        %v1140 = vunpack.c.l.b16 %v1112
        %v1141 = vunpack.c.h.b16 %v1112
        %v1142 = vunpack.c.l.b16 %v1113
        %v1143 = vunpack.c.h.b16 %v1113
        %v1144 = vunpack.c.l.b16 %v1114
        %v1145 = vunpack.c.h.b16 %v1114
        %v1146 = vunpack.c.l.b16 %v1115
        %v1147 = vunpack.c.h.b16 %v1115
        %v1148 = vunpack.c.l.b16 %v1116
        %v1149 = vunpack.c.h.b16 %v1116
        %v1150 = vunpack.c.l.b16 %v1117
        %v1151 = vunpack.c.h.b16 %v1117
        %v1152 = vunpack.c.l.b16 %v1118
        %v1153 = vunpack.c.h.b16 %v1118
        %v1154 = vunpack.c.l.b16 %v1119
        %v1155 = vunpack.c.h.b16 %v1119
        %v1156 = vpack.c.b16 %v1142, %v1140
        %v1157 = vpack.c.b16 %v1143, %v1141
        %v1158 = vpack.c.b16 %v1146, %v1144
        %v1159 = vpack.c.b16 %v1147, %v1145
        %v1160 = vpack.c.b16 %v1150, %v1148
        %v1161 = vpack.c.b16 %v1151, %v1149
        %v1162 = vpack.c.b16 %v1154, %v1152
        %v1163 = vpack.c.b16 %v1155, %v1153
        %v1173 = vsel %vm1082, %v1111, 0
        %1175 = vmatprep.subr.bf16.mxu0 %v1157
        %1176 = vmatpush1.bf16.msra.mxu0 %v1156
        %1177 = vmatprep.subr.bf16.mxu0 %v1159
        %1178 = vmatpush1.bf16.msra.mxu0 %v1158
        %1179 = vmatprep.subr.bf16.mxu0 %v1161
        %1180 = vmatpush1.bf16.msra.mxu0 %v1160
        %1181 = vmatprep.subr.bf16.mxu0 %v1163
        %1182 = vmatpush1.bf16.msra.mxu0 %v1162
        %1183 = vmatprep.subr.bf16.mxu0 0
        %1184 = vmatpush1.bf16.msra.mxu0 0
        %1185 = vmatprep.subr.bf16.mxu0 0
        %1186 = vmatpush1.bf16.msra.mxu0 0
        %1187 = vmatprep.subr.bf16.mxu0 0
        %1188 = vmatpush1.bf16.msra.mxu0 0
        %1189 = vmatprep.subr.bf16.mxu0 0
        %1190 = vmatpush1.bf16.msra.mxu0 0
        %1191 = vmatprep.subr.bf16.mxu0 0
        %1192 = vmatpush1.bf16.msra.mxu0 0
        %1193 = vmatprep.subr.bf16.mxu0 0
        %1194 = vmatpush1.bf16.msra.mxu0 0
        %1195 = vmatprep.subr.bf16.mxu0 0
        %1196 = vmatpush1.bf16.msra.mxu0 0
        %1197 = vmatprep.subr.bf16.mxu0 0
        %1198 = vmatpush1.bf16.msra.mxu0 0
        %1199 = vmatprep.subr.bf16.mxu0 0
        %1200 = vmatpush1.bf16.msra.mxu0 0
        %1201 = vmatprep.subr.bf16.mxu0 0
        %1202 = vmatpush1.bf16.msra.mxu0 0
        %1203 = vmatprep.subr.bf16.mxu0 0
        %1204 = vmatpush1.bf16.msra.mxu0 0
        %1205 = vmatprep.subr.bf16.mxu0 0
        %1206 = vmatpush1.bf16.msra.mxu0 0
        %1207 = vmatprep.mubr.bf16.mxu0 0
        %1208 = vmatmul.mubr.bf16.gmra.mrb[0].mxu0 %v1173
        %v1209 = vpop.f32.mrb[0].mxu0
        %v1210 = vadd.f32 %v1125, %v1209
        %v1211 = vpop.f32.mrb[0].mxu0
        %v1212 = vadd.f32 %v1129, %v1211
        %v1213 = vpop.f32.mrb[0].mxu0
        %v1214 = vpop.f32.mrb[0].mxu0
        %1215 = vdwg.mxu0
        %v1216 = vpack.c.bf16 %v1210, %v1210
        %v1217 = vpack.c.bf16 %v1212, %v1212
        %1219 = vrot.lane.b32.xlu0 %v1216, 112
        %v1220 = vpop.permute.xlu0 %1219
        %1221 = vrot.lane.b32.xlu0 %v1216, 96
        %v1222 = vpop.permute.xlu0 %1221
        %1223 = vrot.lane.b32.xlu0 %v1216, 80
        %v1224 = vpop.permute.xlu0 %1223
        %1226 = vrot.lane.b32.xlu0 %v1217, 112
        %v1227 = vpop.permute.xlu0 %1226
        %1228 = vrot.lane.b32.xlu0 %v1217, 96
        %v1229 = vpop.permute.xlu0 %1228
        %1230 = vrot.lane.b32.xlu0 %v1217, 80
        %v1231 = vpop.permute.xlu0 %1230
        %1232 = vrot.lane.b32.xlu0 %v1216, 64
        %v1233 = vpop.permute.xlu0 %1232
        %vm1234 = vcmask 130048
        %v1236 = vsel %vm1234, %v1216, 0
        %v1239 = vsel %vm1234, %v1233, 0
        %1241 = vmatprep.subr.bf16.mxu0 0
        %1242 = vmatpush1.bf16.xpose.msra.mxu0 %v1239
        %1243 = vmatprep.subr.bf16.mxu0 0
        %1244 = vmatpush1.bf16.xpose.msra.mxu0 0
        %1245 = vmatprep.subr.bf16.mxu0 0
        %1246 = vmatpush1.bf16.xpose.msra.mxu0 0
        %1247 = vmatprep.subr.bf16.mxu0 0
        %1248 = vmatpush1.bf16.xpose.msra.mxu0 0
        %1249 = vmatprep.subr.bf16.mxu0 0
        %1250 = vmatpush1.bf16.xpose.msra.mxu0 0
        %1251 = vmatprep.subr.bf16.mxu0 0
        %1252 = vmatpush1.bf16.xpose.msra.mxu0 0
        %1253 = vmatprep.subr.bf16.mxu0 0
        %1254 = vmatpush1.bf16.xpose.msra.mxu0 0
        %1255 = vmatprep.subr.bf16.mxu0 0
        %1256 = vmatpush1.bf16.xpose.msra.mxu0 0
        %1257 = vmatprep.subr.bf16.mxu0 0
        %1258 = vmatpush1.bf16.xpose.msra.mxu0 0
        %1259 = vmatprep.subr.bf16.mxu0 0
        %1260 = vmatpush1.bf16.xpose.msra.mxu0 0
        %1261 = vmatprep.subr.bf16.mxu0 0
        %1262 = vmatpush1.bf16.xpose.msra.mxu0 0
        %1263 = vmatprep.subr.bf16.mxu0 0
        %1264 = vmatpush1.bf16.xpose.msra.mxu0 0
        %1265 = vmatprep.subr.bf16.mxu0 0
        %1266 = vmatpush1.bf16.xpose.msra.mxu0 0
        %1267 = vmatprep.subr.bf16.mxu0 0
        %1268 = vmatpush1.bf16.xpose.msra.mxu0 0
        %1269 = vmatprep.subr.bf16.mxu0 0
        %1270 = vmatpush1.bf16.xpose.msra.mxu0 0
        %1271 = vmatprep.subr.bf16.mxu0 0
        %1272 = vmatpush1.bf16.xpose.msra.mxu0 0
        %1273 = vmatprep.mubr.bf16.mxu0 0
        %1274 = vmatmul.mubr.bf16.gmra.mrb[0].mxu0 %v1236
        %v1275 = vpop.f32.mrb[0].mxu0
        %v1276 = vadd.f32 %v1079, %v1275
        %v1277 = vpop.f32.mrb[0].mxu0
        %v1278 = vpop.f32.mrb[0].mxu0
        %v1279 = vpop.f32.mrb[0].mxu0
        %1280 = vdwg.mxu0
        %1281 = vrot.lane.b32.xlu0 %v1220, 64
        %v1282 = vpop.permute.xlu0 %1281
        %v1284 = vsel %vm1234, %v1220, 0
        %v1287 = vsel %vm1234, %v1282, 0
        %1289 = vmatprep.subr.bf16.mxu0 0
        %1290 = vmatpush1.bf16.xpose.msra.mxu0 %v1287
        %1291 = vmatprep.subr.bf16.mxu0 0
        %1292 = vmatpush1.bf16.xpose.msra.mxu0 0
        %1293 = vmatprep.subr.bf16.mxu0 0
        %1294 = vmatpush1.bf16.xpose.msra.mxu0 0
        %1295 = vmatprep.subr.bf16.mxu0 0
        %1296 = vmatpush1.bf16.xpose.msra.mxu0 0
        %1297 = vmatprep.subr.bf16.mxu0 0
        %1298 = vmatpush1.bf16.xpose.msra.mxu0 0
        %1299 = vmatprep.subr.bf16.mxu0 0
        %1300 = vmatpush1.bf16.xpose.msra.mxu0 0
        %1301 = vmatprep.subr.bf16.mxu0 0
        %1302 = vmatpush1.bf16.xpose.msra.mxu0 0
        %1303 = vmatprep.subr.bf16.mxu0 0
        %1304 = vmatpush1.bf16.xpose.msra.mxu0 0
        %1305 = vmatprep.subr.bf16.mxu0 0
        %1306 = vmatpush1.bf16.xpose.msra.mxu0 0
        %1307 = vmatprep.subr.bf16.mxu0 0
        %1308 = vmatpush1.bf16.xpose.msra.mxu0 0
        %1309 = vmatprep.subr.bf16.mxu0 0
        %1310 = vmatpush1.bf16.xpose.msra.mxu0 0
        %1311 = vmatprep.subr.bf16.mxu0 0
        %1312 = vmatpush1.bf16.xpose.msra.mxu0 0
        %1313 = vmatprep.subr.bf16.mxu0 0
        %1314 = vmatpush1.bf16.xpose.msra.mxu0 0
        %1315 = vmatprep.subr.bf16.mxu0 0
        %1316 = vmatpush1.bf16.xpose.msra.mxu0 0
        %1317 = vmatprep.subr.bf16.mxu0 0
        %1318 = vmatpush1.bf16.xpose.msra.mxu0 0
        %1319 = vmatprep.subr.bf16.mxu0 0
        %1320 = vmatpush1.bf16.xpose.msra.mxu0 0
        %1321 = vmatprep.mubr.bf16.mxu0 0
        %1322 = vmatmul.mubr.bf16.gmra.mrb[0].mxu0 %v1284
        %v1323 = vpop.f32.mrb[0].mxu0
        %v1324 = vadd.f32 %v1079, %v1323
        %v1325 = vpop.f32.mrb[0].mxu0
        %v1326 = vpop.f32.mrb[0].mxu0
        %v1327 = vpop.f32.mrb[0].mxu0
        %1328 = vdwg.mxu0
        %1329 = vrot.lane.b32.xlu0 %v1222, 64
        %v1330 = vpop.permute.xlu0 %1329
        %v1332 = vsel %vm1234, %v1222, 0
        %v1335 = vsel %vm1234, %v1330, 0
        %1337 = vmatprep.subr.bf16.mxu0 0
        %1338 = vmatpush1.bf16.xpose.msra.mxu0 %v1335
        %1339 = vmatprep.subr.bf16.mxu0 0
        %1340 = vmatpush1.bf16.xpose.msra.mxu0 0
        %1341 = vmatprep.subr.bf16.mxu0 0
        %1342 = vmatpush1.bf16.xpose.msra.mxu0 0
        %1343 = vmatprep.subr.bf16.mxu0 0
        %1344 = vmatpush1.bf16.xpose.msra.mxu0 0
        %1345 = vmatprep.subr.bf16.mxu0 0
        %1346 = vmatpush1.bf16.xpose.msra.mxu0 0
        %1347 = vmatprep.subr.bf16.mxu0 0
        %1348 = vmatpush1.bf16.xpose.msra.mxu0 0
        %1349 = vmatprep.subr.bf16.mxu0 0
        %1350 = vmatpush1.bf16.xpose.msra.mxu0 0
        %1351 = vmatprep.subr.bf16.mxu0 0
        %1352 = vmatpush1.bf16.xpose.msra.mxu0 0
        %1353 = vmatprep.subr.bf16.mxu0 0
        %1354 = vmatpush1.bf16.xpose.msra.mxu0 0
        %1355 = vmatprep.subr.bf16.mxu0 0
        %1356 = vmatpush1.bf16.xpose.msra.mxu0 0
        %1357 = vmatprep.subr.bf16.mxu0 0
        %1358 = vmatpush1.bf16.xpose.msra.mxu0 0
        %1359 = vmatprep.subr.bf16.mxu0 0
        %1360 = vmatpush1.bf16.xpose.msra.mxu0 0
        %1361 = vmatprep.subr.bf16.mxu0 0
        %1362 = vmatpush1.bf16.xpose.msra.mxu0 0
        %1363 = vmatprep.subr.bf16.mxu0 0
        %1364 = vmatpush1.bf16.xpose.msra.mxu0 0
        %1365 = vmatprep.subr.bf16.mxu0 0
        %1366 = vmatpush1.bf16.xpose.msra.mxu0 0
        %1367 = vmatprep.subr.bf16.mxu0 0
        %1368 = vmatpush1.bf16.xpose.msra.mxu0 0
        %1369 = vmatprep.mubr.bf16.mxu0 0
        %1370 = vmatmul.mubr.bf16.gmra.mrb[0].mxu0 %v1332
        %v1371 = vpop.f32.mrb[0].mxu0
        %v1372 = vadd.f32 %v1079, %v1371
        %v1373 = vpop.f32.mrb[0].mxu0
        %v1374 = vpop.f32.mrb[0].mxu0
        %v1375 = vpop.f32.mrb[0].mxu0
        %1376 = vdwg.mxu0
        %1377 = vrot.lane.b32.xlu0 %v1224, 64
        %v1378 = vpop.permute.xlu0 %1377
        %v1380 = vsel %vm1234, %v1224, 0
        %v1383 = vsel %vm1234, %v1378, 0
        %1385 = vmatprep.subr.bf16.mxu0 0
        %1386 = vmatpush1.bf16.xpose.msra.mxu0 %v1383
        %1387 = vmatprep.subr.bf16.mxu0 0
        %1388 = vmatpush1.bf16.xpose.msra.mxu0 0
        %1389 = vmatprep.subr.bf16.mxu0 0
        %1390 = vmatpush1.bf16.xpose.msra.mxu0 0
        %1391 = vmatprep.subr.bf16.mxu0 0
        %1392 = vmatpush1.bf16.xpose.msra.mxu0 0
        %1393 = vmatprep.subr.bf16.mxu0 0
        %1394 = vmatpush1.bf16.xpose.msra.mxu0 0
        %1395 = vmatprep.subr.bf16.mxu0 0
        %1396 = vmatpush1.bf16.xpose.msra.mxu0 0
        %1397 = vmatprep.subr.bf16.mxu0 0
        %1398 = vmatpush1.bf16.xpose.msra.mxu0 0
        %1399 = vmatprep.subr.bf16.mxu0 0
        %1400 = vmatpush1.bf16.xpose.msra.mxu0 0
        %1401 = vmatprep.subr.bf16.mxu0 0
        %1402 = vmatpush1.bf16.xpose.msra.mxu0 0
        %1403 = vmatprep.subr.bf16.mxu0 0
        %1404 = vmatpush1.bf16.xpose.msra.mxu0 0
        %1405 = vmatprep.subr.bf16.mxu0 0
        %1406 = vmatpush1.bf16.xpose.msra.mxu0 0
        %1407 = vmatprep.subr.bf16.mxu0 0
        %1408 = vmatpush1.bf16.xpose.msra.mxu0 0
        %1409 = vmatprep.subr.bf16.mxu0 0
        %1410 = vmatpush1.bf16.xpose.msra.mxu0 0
        %1411 = vmatprep.subr.bf16.mxu0 0
        %1412 = vmatpush1.bf16.xpose.msra.mxu0 0
        %1413 = vmatprep.subr.bf16.mxu0 0
        %1414 = vmatpush1.bf16.xpose.msra.mxu0 0
        %1415 = vmatprep.subr.bf16.mxu0 0
        %1416 = vmatpush1.bf16.xpose.msra.mxu0 0
        %1417 = vmatprep.mubr.bf16.mxu0 0
        %1418 = vmatmul.mubr.bf16.gmra.mrb[0].mxu0 %v1380
        %v1419 = vpop.f32.mrb[0].mxu0
        %v1420 = vadd.f32 %v1079, %v1419
        %v1421 = vpop.f32.mrb[0].mxu0
        %v1422 = vpop.f32.mrb[0].mxu0
        %v1423 = vpop.f32.mrb[0].mxu0
        %1424 = vdwg.mxu0
        %vm1425 = vcmask 64512
        %v1426 = vsel %vm1425, %v1276, -inf
        %1427 = vmax.xlane.f32.xlu0 %v1426
        %v1428 = vpop.xlane.xlu0 %1427
        %v1429 = vsel %vm1425, %v1324, -inf
        %1430 = vmax.xlane.f32.xlu0 %v1429
        %v1431 = vpop.xlane.xlu0 %1430
        %v1432 = vsel %vm1425, %v1372, -inf
        %1433 = vmax.xlane.f32.xlu0 %v1432
        %v1434 = vpop.xlane.xlu0 %1433
        %v1435 = vsel %vm1425, %v1420, -inf
        %1436 = vmax.xlane.f32.xlu0 %v1435
        %v1437 = vpop.xlane.xlu0 %1436
        %v1438 = vsub.f32 %v1276, %v1428
        %v1439 = vsub.f32 %v1324, %v1431
        %v1440 = vsub.f32 %v1372, %v1434
        %v1441 = vsub.f32 %v1420, %v1437
        %v1442 = vmul.f32 %v1438, 1.442695
        %v1443 = vpow.pop %v1442
        %v1444 = vmul.f32 %v1439, 1.442695
        %v1445 = vpow.pop %v1444
        %v1446 = vmul.f32 %v1440, 1.442695
        %v1447 = vpow.pop %v1446
        %v1448 = vmul.f32 %v1441, 1.442695
        %v1449 = vpow.pop %v1448
        %v1450 = vsel %vm1425, %v1443, 0.0
        %1451 = vadd.xlane.f32.xlu0 %v1450
        %v1452 = vpop.xlane.xlu0 %1451
        %v1453 = vsel %vm1425, %v1445, 0.0
        %1454 = vadd.xlane.f32.xlu0 %v1453
        %v1455 = vpop.xlane.xlu0 %1454
        %v1456 = vsel %vm1425, %v1447, 0.0
        %1457 = vadd.xlane.f32.xlu0 %v1456
        %v1458 = vpop.xlane.xlu0 %1457
        %v1459 = vsel %vm1425, %v1449, 0.0
        %1460 = vadd.xlane.f32.xlu0 %v1459
        %v1461 = vpop.xlane.xlu0 %1460
        %v1462 = vrcp.pop %v1452
        %v1463 = vrcp.pop %v1455
        %v1464 = vrcp.pop %v1458
        %v1465 = vrcp.pop %v1461
        %v1466 = vmul.f32 %v1443, %v1462
        %v1467 = vmul.f32 %v1445, %v1463
        %v1468 = vmul.f32 %v1447, %v1464
        %v1469 = vmul.f32 %v1449, %v1465
        %v1470 = vpack.c.bf16 %v1466, %v1466
        %v1471 = vpack.c.bf16 %v1467, %v1467
        %v1472 = vpack.c.bf16 %v1468, %v1468
        %v1473 = vpack.c.bf16 %v1469, %v1469
        %v1475 = vsel %vm1425, %v1470, 0
        %vm1477 = vcmask 1043456
        %v1479 = vsel %vm1477, %v1217, 0
        %1481 = vmatprep.subr.bf16.mxu0 0
        %1482 = vmatpush1.bf16.msra.mxu0 %v1479
        %1483 = vmatprep.subr.bf16.mxu0 0
        %1484 = vmatpush1.bf16.msra.mxu0 0
        %1485 = vmatprep.subr.bf16.mxu0 0
        %1486 = vmatpush1.bf16.msra.mxu0 0
        %1487 = vmatprep.subr.bf16.mxu0 0
        %1488 = vmatpush1.bf16.msra.mxu0 0
        %1489 = vmatprep.subr.bf16.mxu0 0
        %1490 = vmatpush1.bf16.msra.mxu0 0
        %1491 = vmatprep.subr.bf16.mxu0 0
        %1492 = vmatpush1.bf16.msra.mxu0 0
        %1493 = vmatprep.subr.bf16.mxu0 0
        %1494 = vmatpush1.bf16.msra.mxu0 0
        %1495 = vmatprep.subr.bf16.mxu0 0
        %1496 = vmatpush1.bf16.msra.mxu0 0
        %1497 = vmatprep.subr.bf16.mxu0 0
        %1498 = vmatpush1.bf16.msra.mxu0 0
        %1499 = vmatprep.subr.bf16.mxu0 0
        %1500 = vmatpush1.bf16.msra.mxu0 0
        %1501 = vmatprep.subr.bf16.mxu0 0
        %1502 = vmatpush1.bf16.msra.mxu0 0
        %1503 = vmatprep.subr.bf16.mxu0 0
        %1504 = vmatpush1.bf16.msra.mxu0 0
        %1505 = vmatprep.subr.bf16.mxu0 0
        %1506 = vmatpush1.bf16.msra.mxu0 0
        %1507 = vmatprep.subr.bf16.mxu0 0
        %1508 = vmatpush1.bf16.msra.mxu0 0
        %1509 = vmatprep.subr.bf16.mxu0 0
        %1510 = vmatpush1.bf16.msra.mxu0 0
        %1511 = vmatprep.subr.bf16.mxu0 0
        %1512 = vmatpush1.bf16.msra.mxu0 0
        %1513 = vmatprep.mubr.bf16.mxu0 0
        %1514 = vmatmul.mubr.bf16.gmra.mrb[0].mxu0 %v1475
        %v1515 = vpop.f32.mrb[0].mxu0
        %v1516 = vadd.f32 0.0, %v1515
        %v1517 = vpop.f32.mrb[0].mxu0
        %v1518 = vpop.f32.mrb[0].mxu0
        %v1519 = vpop.f32.mrb[0].mxu0
        %1520 = vdwg.mxu0
        %v1522 = vsel %vm1425, %v1471, 0
        %v1525 = vsel %vm1477, %v1227, 0
        %1527 = vmatprep.subr.bf16.mxu0 0
        %1528 = vmatpush1.bf16.msra.mxu0 %v1525
        %1529 = vmatprep.subr.bf16.mxu0 0
        %1530 = vmatpush1.bf16.msra.mxu0 0
        %1531 = vmatprep.subr.bf16.mxu0 0
        %1532 = vmatpush1.bf16.msra.mxu0 0
        %1533 = vmatprep.subr.bf16.mxu0 0
        %1534 = vmatpush1.bf16.msra.mxu0 0
        %1535 = vmatprep.subr.bf16.mxu0 0
        %1536 = vmatpush1.bf16.msra.mxu0 0
        %1537 = vmatprep.subr.bf16.mxu0 0
        %1538 = vmatpush1.bf16.msra.mxu0 0
        %1539 = vmatprep.subr.bf16.mxu0 0
        %1540 = vmatpush1.bf16.msra.mxu0 0
        %1541 = vmatprep.subr.bf16.mxu0 0
        %1542 = vmatpush1.bf16.msra.mxu0 0
        %1543 = vmatprep.subr.bf16.mxu0 0
        %1544 = vmatpush1.bf16.msra.mxu0 0
        %1545 = vmatprep.subr.bf16.mxu0 0
        %1546 = vmatpush1.bf16.msra.mxu0 0
        %1547 = vmatprep.subr.bf16.mxu0 0
        %1548 = vmatpush1.bf16.msra.mxu0 0
        %1549 = vmatprep.subr.bf16.mxu0 0
        %1550 = vmatpush1.bf16.msra.mxu0 0
        %1551 = vmatprep.subr.bf16.mxu0 0
        %1552 = vmatpush1.bf16.msra.mxu0 0
        %1553 = vmatprep.subr.bf16.mxu0 0
        %1554 = vmatpush1.bf16.msra.mxu0 0
        %1555 = vmatprep.subr.bf16.mxu0 0
        %1556 = vmatpush1.bf16.msra.mxu0 0
        %1557 = vmatprep.subr.bf16.mxu0 0
        %1558 = vmatpush1.bf16.msra.mxu0 0
        %1559 = vmatprep.mubr.bf16.mxu0 0
        %1560 = vmatmul.mubr.bf16.gmra.mrb[0].mxu0 %v1522
        %v1561 = vpop.f32.mrb[0].mxu0
        %v1562 = vadd.f32 0.0, %v1561
        %v1563 = vpop.f32.mrb[0].mxu0
        %v1564 = vpop.f32.mrb[0].mxu0
        %v1565 = vpop.f32.mrb[0].mxu0
        %1566 = vdwg.mxu0
        %v1568 = vsel %vm1425, %v1472, 0
        %v1571 = vsel %vm1477, %v1229, 0
        %1573 = vmatprep.subr.bf16.mxu0 0
        %1574 = vmatpush1.bf16.msra.mxu0 %v1571
        %1575 = vmatprep.subr.bf16.mxu0 0
        %1576 = vmatpush1.bf16.msra.mxu0 0
        %1577 = vmatprep.subr.bf16.mxu0 0
        %1578 = vmatpush1.bf16.msra.mxu0 0
        %1579 = vmatprep.subr.bf16.mxu0 0
        %1580 = vmatpush1.bf16.msra.mxu0 0
        %1581 = vmatprep.subr.bf16.mxu0 0
        %1582 = vmatpush1.bf16.msra.mxu0 0
        %1583 = vmatprep.subr.bf16.mxu0 0
        %1584 = vmatpush1.bf16.msra.mxu0 0
        %1585 = vmatprep.subr.bf16.mxu0 0
        %1586 = vmatpush1.bf16.msra.mxu0 0
        %1587 = vmatprep.subr.bf16.mxu0 0
        %1588 = vmatpush1.bf16.msra.mxu0 0
        %1589 = vmatprep.subr.bf16.mxu0 0
        %1590 = vmatpush1.bf16.msra.mxu0 0
        %1591 = vmatprep.subr.bf16.mxu0 0
        %1592 = vmatpush1.bf16.msra.mxu0 0
        %1593 = vmatprep.subr.bf16.mxu0 0
        %1594 = vmatpush1.bf16.msra.mxu0 0
        %1595 = vmatprep.subr.bf16.mxu0 0
        %1596 = vmatpush1.bf16.msra.mxu0 0
        %1597 = vmatprep.subr.bf16.mxu0 0
        %1598 = vmatpush1.bf16.msra.mxu0 0
        %1599 = vmatprep.subr.bf16.mxu0 0
        %1600 = vmatpush1.bf16.msra.mxu0 0
        %1601 = vmatprep.subr.bf16.mxu0 0
        %1602 = vmatpush1.bf16.msra.mxu0 0
        %1603 = vmatprep.subr.bf16.mxu0 0
        %1604 = vmatpush1.bf16.msra.mxu0 0
        %1605 = vmatprep.mubr.bf16.mxu0 0
        %1606 = vmatmul.mubr.bf16.gmra.mrb[0].mxu0 %v1568
        %v1607 = vpop.f32.mrb[0].mxu0
        %v1608 = vadd.f32 0.0, %v1607
        %v1609 = vpop.f32.mrb[0].mxu0
        %v1610 = vpop.f32.mrb[0].mxu0
        %v1611 = vpop.f32.mrb[0].mxu0
        %1612 = vdwg.mxu0
        %v1614 = vsel %vm1425, %v1473, 0
        %v1617 = vsel %vm1477, %v1231, 0
        %1619 = vmatprep.subr.bf16.mxu0 0
        %1620 = vmatpush1.bf16.msra.mxu0 %v1617
        %1621 = vmatprep.subr.bf16.mxu0 0
        %1622 = vmatpush1.bf16.msra.mxu0 0
        %1623 = vmatprep.subr.bf16.mxu0 0
        %1624 = vmatpush1.bf16.msra.mxu0 0
        %1625 = vmatprep.subr.bf16.mxu0 0
        %1626 = vmatpush1.bf16.msra.mxu0 0
        %1627 = vmatprep.subr.bf16.mxu0 0
        %1628 = vmatpush1.bf16.msra.mxu0 0
        %1629 = vmatprep.subr.bf16.mxu0 0
        %1630 = vmatpush1.bf16.msra.mxu0 0
        %1631 = vmatprep.subr.bf16.mxu0 0
        %1632 = vmatpush1.bf16.msra.mxu0 0
        %1633 = vmatprep.subr.bf16.mxu0 0
        %1634 = vmatpush1.bf16.msra.mxu0 0
        %1635 = vmatprep.subr.bf16.mxu0 0
        %1636 = vmatpush1.bf16.msra.mxu0 0
        %1637 = vmatprep.subr.bf16.mxu0 0
        %1638 = vmatpush1.bf16.msra.mxu0 0
        %1639 = vmatprep.subr.bf16.mxu0 0
        %1640 = vmatpush1.bf16.msra.mxu0 0
        %1641 = vmatprep.subr.bf16.mxu0 0
        %1642 = vmatpush1.bf16.msra.mxu0 0
        %1643 = vmatprep.subr.bf16.mxu0 0
        %1644 = vmatpush1.bf16.msra.mxu0 0
        %1645 = vmatprep.subr.bf16.mxu0 0
        %1646 = vmatpush1.bf16.msra.mxu0 0
        %1647 = vmatprep.subr.bf16.mxu0 0
        %1648 = vmatpush1.bf16.msra.mxu0 0
        %1649 = vmatprep.subr.bf16.mxu0 0
        %1650 = vmatpush1.bf16.msra.mxu0 0
        %1651 = vmatprep.mubr.bf16.mxu0 0
        %1652 = vmatmul.mubr.bf16.gmra.mrb[0].mxu0 %v1614
        %v1653 = vpop.f32.mrb[0].mxu0
        %v1654 = vadd.f32 0.0, %v1653
        %v1655 = vpop.f32.mrb[0].mxu0
        %v1656 = vpop.f32.mrb[0].mxu0
        %v1657 = vpop.f32.mrb[0].mxu0
        %1658 = vdwg.mxu0
        %1660 = vrot.lane.b32.xlu0 %v1562, 16
        %v1661 = vpop.permute.xlu0 %1660
        %1664 = vrot.lane.b32.xlu0 %v1608, 32
        %v1665 = vpop.permute.xlu0 %1664
        %1668 = vrot.lane.b32.xlu0 %v1654, 48
        %v1669 = vpop.permute.xlu0 %1668
        %v1671 = vsel %vm1234, %v1516, %v1661
        %vm1672 = vcmask 261120
        %v1673 = vsel %vm1672, %v1671, %v1665
        %vm1674 = vcmask 392192
        %v1675 = vsel %vm1674, %v1673, %v1669
        %v1676 = vpack.c.bf16 %v1675, %v1675
        %v1677 = vld [vmem:[%s7] sm:$0xf]
        %v1678 = vld [vmem:[%s7 + $0x4] sm:$0xf]
        %v1679 = vld [vmem:[%s7 + $0x8] sm:$0xf]
        %v1680 = vld [vmem:[%s7 + $0xc] sm:$0xf]
        %v1681 = vld [vmem:[%s7 + $0x10] sm:$0xf]
        %v1682 = vld [vmem:[%s7 + $0x14] sm:$0xf]
        %v1683 = vld [vmem:[%s7 + $0x18] sm:$0xf]
        %v1684 = vld [vmem:[%s7 + $0x1c] sm:$0xf]
        %v1693 = vunpack.c.l.b16 %v1677
        %v1694 = vunpack.c.l.b16 %v1678
        %v1695 = vunpack.c.l.b16 %v1679
        %v1696 = vunpack.c.l.b16 %v1680
        %v1697 = vunpack.c.l.b16 %v1681
        %v1698 = vunpack.c.l.b16 %v1682
        %v1699 = vunpack.c.l.b16 %v1683
        %v1700 = vunpack.c.l.b16 %v1684
        %v1701 = vpack.c.b16 %v1694, %v1693
        %v1702 = vpack.c.b16 %v1696, %v1695
        %v1703 = vpack.c.b16 %v1698, %v1697
        %v1704 = vpack.c.b16 %v1700, %v1699
        %v1710 = vsel %vm1082, %v1676, 0
        %1712 = vmatprep.subr.bf16.mxu0 0
        %1713 = vmatpush1.bf16.msra.mxu0 %v1701
        %1714 = vmatprep.subr.bf16.mxu0 0
        %1715 = vmatpush1.bf16.msra.mxu0 %v1702
        %1716 = vmatprep.subr.bf16.mxu0 0
        %1717 = vmatpush1.bf16.msra.mxu0 %v1703
        %1718 = vmatprep.subr.bf16.mxu0 0
        %1719 = vmatpush1.bf16.msra.mxu0 %v1704
        %1720 = vmatprep.subr.bf16.mxu0 0
        %1721 = vmatpush1.bf16.msra.mxu0 0
        %1722 = vmatprep.subr.bf16.mxu0 0
        %1723 = vmatpush1.bf16.msra.mxu0 0
        %1724 = vmatprep.subr.bf16.mxu0 0
        %1725 = vmatpush1.bf16.msra.mxu0 0
        %1726 = vmatprep.subr.bf16.mxu0 0
        %1727 = vmatpush1.bf16.msra.mxu0 0
        %1728 = vmatprep.subr.bf16.mxu0 0
        %1729 = vmatpush1.bf16.msra.mxu0 0
        %1730 = vmatprep.subr.bf16.mxu0 0
        %1731 = vmatpush1.bf16.msra.mxu0 0
        %1732 = vmatprep.subr.bf16.mxu0 0
        %1733 = vmatpush1.bf16.msra.mxu0 0
        %1734 = vmatprep.subr.bf16.mxu0 0
        %1735 = vmatpush1.bf16.msra.mxu0 0
        %1736 = vmatprep.subr.bf16.mxu0 0
        %1737 = vmatpush1.bf16.msra.mxu0 0
        %1738 = vmatprep.subr.bf16.mxu0 0
        %1739 = vmatpush1.bf16.msra.mxu0 0
        %1740 = vmatprep.subr.bf16.mxu0 0
        %1741 = vmatpush1.bf16.msra.mxu0 0
        %1742 = vmatprep.subr.bf16.mxu0 0
        %1743 = vmatpush1.bf16.msra.mxu0 0
        %1744 = vmatprep.mubr.bf16.mxu0 0
        %1745 = vmatmul.mubr.bf16.gmra.mrb[0].mxu0 %v1710
        %v1746 = vpop.f32.mrb[0].mxu0
        %v1747 = vadd.f32 0.0, %v1746
        %v1748 = vpop.f32.mrb[0].mxu0
        %v1749 = vpop.f32.mrb[0].mxu0
        %v1750 = vpop.f32.mrb[0].mxu0
        %1751 = vdwg.mxu0
        %v1752 = vadd.f32 %v1071, %v1747
        %v1753 = vld [vmem:[%s8] sm:$0x1]
        %v1755 = vlaneseq
        %v1756 = vshrl.u32 %v1755, 7
        %v1757 = vsub.s32 0, %v1756
        %v1758 = vrot.slane %v1753, %v1757
        %v1760 = vadd.f32 %v1752, %v1758
        %v1761 = vld [vmem:[%s9] sm:$0x1]
        %v1762 = vld [vmem:[%s10] sm:$0x1]
        %v1763 = vsel %vm1082, %v1760, 0.0
        %1764 = vadd.xlane.f32.xlu0 %v1763
        %v1765 = vpop.xlane.xlu0 %1764
        %v1766 = vmul.f32 %v1765, %v1086
        %v1767 = vsub.f32 %v1760, %v1766
        %v1768 = vmul.f32 %v1767, %v1767
        %v1769 = vsel %vm1082, %v1768, 0.0
        %1770 = vadd.xlane.f32.xlu0 %v1769
        %v1771 = vpop.xlane.xlu0 %1770
        %v1772 = vmul.f32 %v1771, %v1086
        %v1773 = vadd.f32 %v1772, 1e-06
        %v1774 = vrsqrt.pop %v1773
        %v1775 = vmul.f32 %v1767, %v1774
        %v1777 = vlaneseq
        %v1778 = vshrl.u32 %v1777, 7
        %v1779 = vsub.s32 0, %v1778
        %v1780 = vrot.slane %v1761, %v1779
        %v1782 = vmul.f32 %v1775, %v1780
        %v1784 = vlaneseq
        %v1785 = vshrl.u32 %v1784, 7
        %v1786 = vsub.s32 0, %v1785
        %v1787 = vrot.slane %v1762, %v1786
        %v1789 = vadd.f32 %v1782, %v1787
        %v1790 = vpack.c.bf16 %v1789, %v1789
        %v1791 = vld [vmem:[%s11] sm:$0xf]
        %v1792 = vld [vmem:[%s11 + $0x4] sm:$0xf]
        %v1793 = vld [vmem:[%s11 + $0x8] sm:$0xf]
        %v1794 = vld [vmem:[%s11 + $0xc] sm:$0xf]
        %v1795 = vld [vmem:[%s11 + $0x10] sm:$0xf]
        %v1796 = vld [vmem:[%s11 + $0x14] sm:$0xf]
        %v1797 = vld [vmem:[%s11 + $0x18] sm:$0xf]
        %v1798 = vld [vmem:[%s11 + $0x1c] sm:$0xf]
        %v1799 = vld [vmem:[%s12] sm:$0x1]
        %v1801 = vlaneseq
        %v1802 = vshrl.u32 %v1801, 7
        %v1803 = vsub.s32 0, %v1802
        %v1804 = vrot.slane %v1799, %v1803
        %v1814 = vunpack.c.l.b16 %v1791
        %v1815 = vunpack.c.l.b16 %v1792
        %v1816 = vunpack.c.l.b16 %v1793
        %v1817 = vunpack.c.l.b16 %v1794
        %v1818 = vunpack.c.l.b16 %v1795
        %v1819 = vunpack.c.l.b16 %v1796
        %v1820 = vunpack.c.l.b16 %v1797
        %v1821 = vunpack.c.l.b16 %v1798
        %v1822 = vpack.c.b16 %v1815, %v1814
        %v1823 = vpack.c.b16 %v1817, %v1816
        %v1824 = vpack.c.b16 %v1819, %v1818
        %v1825 = vpack.c.b16 %v1821, %v1820
        %v1831 = vsel %vm1082, %v1790, 0
        %1833 = vmatprep.subr.bf16.mxu0 0
        %1834 = vmatpush1.bf16.msra.mxu0 %v1822
        %1835 = vmatprep.subr.bf16.mxu0 0
        %1836 = vmatpush1.bf16.msra.mxu0 %v1823
        %1837 = vmatprep.subr.bf16.mxu0 0
        %1838 = vmatpush1.bf16.msra.mxu0 %v1824
        %1839 = vmatprep.subr.bf16.mxu0 0
        %1840 = vmatpush1.bf16.msra.mxu0 %v1825
        %1841 = vmatprep.subr.bf16.mxu0 0
        %1842 = vmatpush1.bf16.msra.mxu0 0
        %1843 = vmatprep.subr.bf16.mxu0 0
        %1844 = vmatpush1.bf16.msra.mxu0 0
        %1845 = vmatprep.subr.bf16.mxu0 0
        %1846 = vmatpush1.bf16.msra.mxu0 0
        %1847 = vmatprep.subr.bf16.mxu0 0
        %1848 = vmatpush1.bf16.msra.mxu0 0
        %1849 = vmatprep.subr.bf16.mxu0 0
        %1850 = vmatpush1.bf16.msra.mxu0 0
        %1851 = vmatprep.subr.bf16.mxu0 0
        %1852 = vmatpush1.bf16.msra.mxu0 0
        %1853 = vmatprep.subr.bf16.mxu0 0
        %1854 = vmatpush1.bf16.msra.mxu0 0
        %1855 = vmatprep.subr.bf16.mxu0 0
        %1856 = vmatpush1.bf16.msra.mxu0 0
        %1857 = vmatprep.subr.bf16.mxu0 0
        %1858 = vmatpush1.bf16.msra.mxu0 0
        %1859 = vmatprep.subr.bf16.mxu0 0
        %1860 = vmatpush1.bf16.msra.mxu0 0
        %1861 = vmatprep.subr.bf16.mxu0 0
        %1862 = vmatpush1.bf16.msra.mxu0 0
        %1863 = vmatprep.subr.bf16.mxu0 0
        %1864 = vmatpush1.bf16.msra.mxu0 0
        %1865 = vmatprep.mubr.bf16.mxu0 0
        %1866 = vmatmul.mubr.bf16.gmra.mrb[0].mxu0 %v1831
        %v1867 = vpop.f32.mrb[0].mxu0
        %v1868 = vadd.f32 %v1804, %v1867
        %v1869 = vpop.f32.mrb[0].mxu0
        %v1870 = vpop.f32.mrb[0].mxu0
        %v1871 = vpop.f32.mrb[0].mxu0
        %1872 = vdwg.mxu0
        %v1873 = vmul.f32 %v1868, 0.5
        %v1874 = vmul.f32 %v1868, 0.70710677
        %vm1875 = vcmp.ge.f32.partialorder %v1874, 0.0
        %v1876 = vsel %vm1875, 1.0, -1.0
        %v1877 = vand.u32 2147483647, %v1874
        %v1878 = vmul.f32 %v1877, 0.3275911
        %v1879 = vadd.f32 %v1878, 1.0
        %v1880 = vrcp.pop %v1879
        %v1881 = vmul.f32 1.0, %v1880
        %v1882 = vmul.f32 %v1881, 1.0614054
        %v1883 = vadd.f32 %v1882, -1.4531521
        %v1884 = vmul.f32 %v1883, %v1881
        %v1885 = vadd.f32 %v1884, 1.4214138
        %v1886 = vmul.f32 %v1885, %v1881
        %v1887 = vadd.f32 %v1886, -0.28449672
        %v1888 = vmul.f32 %v1887, %v1881
        %v1889 = vadd.f32 %v1888, 0.2548296
        %v1890 = vmul.f32 %v1889, %v1881
        %v1891 = vsub.f32 0.0, %v1877
        %v1892 = vmul.f32 %v1891, %v1877
        %v1893 = vmul.f32 %v1892, 1.442695
        %v1894 = vpow.pop %v1893
        %v1895 = vmul.f32 %v1890, %v1894
        %v1896 = vsub.f32 1.0, %v1895
        %v1897 = vmul.f32 %v1876, %v1896
        %v1898 = vadd.f32 %v1897, 1.0
        %v1899 = vmul.f32 %v1873, %v1898
        %v1900 = vpack.c.bf16 %v1899, %v1899
        %v1901 = vld [vmem:[%s13] sm:$0xf]
        %v1902 = vld [vmem:[%s13 + $0x4] sm:$0xf]
        %v1903 = vld [vmem:[%s13 + $0x8] sm:$0xf]
        %v1904 = vld [vmem:[%s13 + $0xc] sm:$0xf]
        %v1905 = vld [vmem:[%s13 + $0x10] sm:$0xf]
        %v1906 = vld [vmem:[%s13 + $0x14] sm:$0xf]
        %v1907 = vld [vmem:[%s13 + $0x18] sm:$0xf]
        %v1908 = vld [vmem:[%s13 + $0x1c] sm:$0xf]
        %v1909 = vld [vmem:[%s13 + $0x20] sm:$0xf]
        %v1910 = vld [vmem:[%s13 + $0x24] sm:$0xf]
        %v1911 = vld [vmem:[%s13 + $0x28] sm:$0xf]
        %v1912 = vld [vmem:[%s13 + $0x2c] sm:$0xf]
        %v1913 = vld [vmem:[%s13 + $0x30] sm:$0xf]
        %v1914 = vld [vmem:[%s13 + $0x34] sm:$0xf]
        %v1915 = vld [vmem:[%s13 + $0x38] sm:$0xf]
        %v1916 = vld [vmem:[%s13 + $0x3c] sm:$0xf]
        %v1933 = vunpack.c.l.b16 %v1901
        %v1934 = vunpack.c.l.b16 %v1902
        %v1935 = vunpack.c.l.b16 %v1903
        %v1936 = vunpack.c.l.b16 %v1904
        %v1937 = vunpack.c.l.b16 %v1905
        %v1938 = vunpack.c.l.b16 %v1906
        %v1939 = vunpack.c.l.b16 %v1907
        %v1940 = vunpack.c.l.b16 %v1908
        %v1941 = vunpack.c.l.b16 %v1909
        %v1942 = vunpack.c.l.b16 %v1910
        %v1943 = vunpack.c.l.b16 %v1911
        %v1944 = vunpack.c.l.b16 %v1912
        %v1945 = vunpack.c.l.b16 %v1913
        %v1946 = vunpack.c.l.b16 %v1914
        %v1947 = vunpack.c.l.b16 %v1915
        %v1948 = vunpack.c.l.b16 %v1916
        %v1949 = vpack.c.b16 %v1934, %v1933
        %v1950 = vpack.c.b16 %v1936, %v1935
        %v1951 = vpack.c.b16 %v1938, %v1937
        %v1952 = vpack.c.b16 %v1940, %v1939
        %v1953 = vpack.c.b16 %v1942, %v1941
        %v1954 = vpack.c.b16 %v1944, %v1943
        %v1955 = vpack.c.b16 %v1946, %v1945
        %v1956 = vpack.c.b16 %v1948, %v1947
        %1965 = vmatprep.subr.bf16.mxu0 0
        %1966 = vmatpush1.bf16.msra.mxu0 %v1949
        %1967 = vmatprep.subr.bf16.mxu0 0
        %1968 = vmatpush1.bf16.msra.mxu0 %v1950
        %1969 = vmatprep.subr.bf16.mxu0 0
        %1970 = vmatpush1.bf16.msra.mxu0 %v1951
        %1971 = vmatprep.subr.bf16.mxu0 0
        %1972 = vmatpush1.bf16.msra.mxu0 %v1952
        %1973 = vmatprep.subr.bf16.mxu0 0
        %1974 = vmatpush1.bf16.msra.mxu0 %v1953
        %1975 = vmatprep.subr.bf16.mxu0 0
        %1976 = vmatpush1.bf16.msra.mxu0 %v1954
        %1977 = vmatprep.subr.bf16.mxu0 0
        %1978 = vmatpush1.bf16.msra.mxu0 %v1955
        %1979 = vmatprep.subr.bf16.mxu0 0
        %1980 = vmatpush1.bf16.msra.mxu0 %v1956
        %1981 = vmatprep.subr.bf16.mxu0 0
        %1982 = vmatpush1.bf16.msra.mxu0 0
        %1983 = vmatprep.subr.bf16.mxu0 0
        %1984 = vmatpush1.bf16.msra.mxu0 0
        %1985 = vmatprep.subr.bf16.mxu0 0
        %1986 = vmatpush1.bf16.msra.mxu0 0
        %1987 = vmatprep.subr.bf16.mxu0 0
        %1988 = vmatpush1.bf16.msra.mxu0 0
        %1989 = vmatprep.subr.bf16.mxu0 0
        %1990 = vmatpush1.bf16.msra.mxu0 0
        %1991 = vmatprep.subr.bf16.mxu0 0
        %1992 = vmatpush1.bf16.msra.mxu0 0
        %1993 = vmatprep.subr.bf16.mxu0 0
        %1994 = vmatpush1.bf16.msra.mxu0 0
        %1995 = vmatprep.subr.bf16.mxu0 0
        %1996 = vmatpush1.bf16.msra.mxu0 0
        %1997 = vmatprep.mubr.bf16.mxu0 0
        %1998 = vmatmul.mubr.bf16.gmra.mrb[0].mxu0 %v1900
        %v1999 = vpop.f32.mrb[0].mxu0
        %v2000 = vadd.f32 0.0, %v1999
        %v2001 = vpop.f32.mrb[0].mxu0
        %v2002 = vpop.f32.mrb[0].mxu0
        %v2003 = vpop.f32.mrb[0].mxu0
        %2004 = vdwg.mxu0
        %v2005 = vadd.f32 %v1760, %v2000
        %v2006 = vld [vmem:[%s14] sm:$0x1]
        %v2008 = vlaneseq
        %v2009 = vshrl.u32 %v2008, 7
        %v2010 = vsub.s32 0, %v2009
        %v2011 = vrot.slane %v2006, %v2010
        %v2013 = vadd.f32 %v2005, %v2011
        %s2014 = scalar_lea.vmem %s3, 1
        %v2015 = vld [vmem:[%s2014] sm:$0x1]
        %s2016 = scalar_lea.vmem %s4, 1
        %v2017 = vld [vmem:[%s2016] sm:$0x1]
        %v2018 = vsel %vm1082, %v2013, 0.0
        %2019 = vadd.xlane.f32.xlu0 %v2018
        %v2020 = vpop.xlane.xlu0 %2019
        %v2021 = vmul.f32 %v2020, %v1086
        %v2022 = vsub.f32 %v2013, %v2021
        %v2023 = vmul.f32 %v2022, %v2022
        %v2024 = vsel %vm1082, %v2023, 0.0
        %2025 = vadd.xlane.f32.xlu0 %v2024
        %v2026 = vpop.xlane.xlu0 %2025
        %v2027 = vmul.f32 %v2026, %v1086
        %v2028 = vadd.f32 %v2027, 1e-06
        %v2029 = vrsqrt.pop %v2028
        %v2030 = vmul.f32 %v2022, %v2029
        %v2032 = vlaneseq
        %v2033 = vshrl.u32 %v2032, 7
        %v2034 = vsub.s32 0, %v2033
        %v2035 = vrot.slane %v2015, %v2034
        %v2037 = vmul.f32 %v2030, %v2035
        %v2039 = vlaneseq
        %v2040 = vshrl.u32 %v2039, 7
        %v2041 = vsub.s32 0, %v2040
        %v2042 = vrot.slane %v2017, %v2041
        %v2044 = vadd.f32 %v2037, %v2042
        %v2045 = vpack.c.bf16 %v2044, %v2044
        %s2046 = scalar_lea.vmem %s5, 64
        %v2047 = vld [vmem:[%s2046] sm:$0xff]
        %v2048 = vld [vmem:[%s2046 + $0x8] sm:$0xff]
        %v2049 = vld [vmem:[%s2046 + $0x10] sm:$0xff]
        %v2050 = vld [vmem:[%s2046 + $0x18] sm:$0xff]
        %v2051 = vld [vmem:[%s2046 + $0x20] sm:$0xff]
        %v2052 = vld [vmem:[%s2046 + $0x28] sm:$0xff]
        %v2053 = vld [vmem:[%s2046 + $0x30] sm:$0xff]
        %v2054 = vld [vmem:[%s2046 + $0x38] sm:$0xff]
        %s2055 = scalar_lea.vmem %s6, 2
        %v2056 = vld [vmem:[%s2055] sm:$0x3]
        %v2058 = vlaneseq
        %v2059 = vshrl.u32 %v2058, 7
        %v2060 = vsub.s32 0, %v2059
        %v2061 = vrot.slane %v2056, %v2060
        %v2062 = vlaneseq
        %v2063 = vshrl.u32 %v2062, 7
        %v2064 = vsub.s32 1, %v2063
        %v2065 = vrot.slane %v2056, %v2064
        %v2076 = vunpack.c.l.b16 %v2047
        %v2077 = vunpack.c.h.b16 %v2047
        %v2078 = vunpack.c.l.b16 %v2048
        %v2079 = vunpack.c.h.b16 %v2048
        %v2080 = vunpack.c.l.b16 %v2049
        %v2081 = vunpack.c.h.b16 %v2049
        %v2082 = vunpack.c.l.b16 %v2050
        %v2083 = vunpack.c.h.b16 %v2050
        %v2084 = vunpack.c.l.b16 %v2051
        %v2085 = vunpack.c.h.b16 %v2051
        %v2086 = vunpack.c.l.b16 %v2052
        %v2087 = vunpack.c.h.b16 %v2052
        %v2088 = vunpack.c.l.b16 %v2053
        %v2089 = vunpack.c.h.b16 %v2053
        %v2090 = vunpack.c.l.b16 %v2054
        %v2091 = vunpack.c.h.b16 %v2054
        %v2092 = vpack.c.b16 %v2078, %v2076
        %v2093 = vpack.c.b16 %v2079, %v2077
        %v2094 = vpack.c.b16 %v2082, %v2080
        %v2095 = vpack.c.b16 %v2083, %v2081
        %v2096 = vpack.c.b16 %v2086, %v2084
        %v2097 = vpack.c.b16 %v2087, %v2085
        %v2098 = vpack.c.b16 %v2090, %v2088
        %v2099 = vpack.c.b16 %v2091, %v2089
        %v2109 = vsel %vm1082, %v2045, 0
        %2111 = vmatprep.subr.bf16.mxu0 %v2093
        %2112 = vmatpush1.bf16.msra.mxu0 %v2092
        %2113 = vmatprep.subr.bf16.mxu0 %v2095
        %2114 = vmatpush1.bf16.msra.mxu0 %v2094
        %2115 = vmatprep.subr.bf16.mxu0 %v2097
        %2116 = vmatpush1.bf16.msra.mxu0 %v2096
        %2117 = vmatprep.subr.bf16.mxu0 %v2099
        %2118 = vmatpush1.bf16.msra.mxu0 %v2098
        %2119 = vmatprep.subr.bf16.mxu0 0
        %2120 = vmatpush1.bf16.msra.mxu0 0
        %2121 = vmatprep.subr.bf16.mxu0 0
        %2122 = vmatpush1.bf16.msra.mxu0 0
        %2123 = vmatprep.subr.bf16.mxu0 0
        %2124 = vmatpush1.bf16.msra.mxu0 0
        %2125 = vmatprep.subr.bf16.mxu0 0
        %2126 = vmatpush1.bf16.msra.mxu0 0
        %2127 = vmatprep.subr.bf16.mxu0 0
        %2128 = vmatpush1.bf16.msra.mxu0 0
        %2129 = vmatprep.subr.bf16.mxu0 0
        %2130 = vmatpush1.bf16.msra.mxu0 0
        %2131 = vmatprep.subr.bf16.mxu0 0
        %2132 = vmatpush1.bf16.msra.mxu0 0
        %2133 = vmatprep.subr.bf16.mxu0 0
        %2134 = vmatpush1.bf16.msra.mxu0 0
        %2135 = vmatprep.subr.bf16.mxu0 0
        %2136 = vmatpush1.bf16.msra.mxu0 0
        %2137 = vmatprep.subr.bf16.mxu0 0
        %2138 = vmatpush1.bf16.msra.mxu0 0
        %2139 = vmatprep.subr.bf16.mxu0 0
        %2140 = vmatpush1.bf16.msra.mxu0 0
        %2141 = vmatprep.subr.bf16.mxu0 0
        %2142 = vmatpush1.bf16.msra.mxu0 0
        %2143 = vmatprep.mubr.bf16.mxu0 0
        %2144 = vmatmul.mubr.bf16.gmra.mrb[0].mxu0 %v2109
        %v2145 = vpop.f32.mrb[0].mxu0
        %v2146 = vadd.f32 %v2061, %v2145
        %v2147 = vpop.f32.mrb[0].mxu0
        %v2148 = vadd.f32 %v2065, %v2147
        %v2149 = vpop.f32.mrb[0].mxu0
        %v2150 = vpop.f32.mrb[0].mxu0
        %2151 = vdwg.mxu0
        %v2152 = vpack.c.bf16 %v2146, %v2146
        %v2153 = vpack.c.bf16 %v2148, %v2148
        %2155 = vrot.lane.b32.xlu0 %v2152, 112
        %v2156 = vpop.permute.xlu0 %2155
        %2157 = vrot.lane.b32.xlu0 %v2152, 96
        %v2158 = vpop.permute.xlu0 %2157
        %2159 = vrot.lane.b32.xlu0 %v2152, 80
        %v2160 = vpop.permute.xlu0 %2159
        %2162 = vrot.lane.b32.xlu0 %v2153, 112
        %v2163 = vpop.permute.xlu0 %2162
        %2164 = vrot.lane.b32.xlu0 %v2153, 96
        %v2165 = vpop.permute.xlu0 %2164
        %2166 = vrot.lane.b32.xlu0 %v2153, 80
        %v2167 = vpop.permute.xlu0 %2166
        %2168 = vrot.lane.b32.xlu0 %v2152, 64
        %v2169 = vpop.permute.xlu0 %2168
        %v2171 = vsel %vm1234, %v2152, 0
        %v2174 = vsel %vm1234, %v2169, 0
        %2176 = vmatprep.subr.bf16.mxu0 0
        %2177 = vmatpush1.bf16.xpose.msra.mxu0 %v2174
        %2178 = vmatprep.subr.bf16.mxu0 0
        %2179 = vmatpush1.bf16.xpose.msra.mxu0 0
        %2180 = vmatprep.subr.bf16.mxu0 0
        %2181 = vmatpush1.bf16.xpose.msra.mxu0 0
        %2182 = vmatprep.subr.bf16.mxu0 0
        %2183 = vmatpush1.bf16.xpose.msra.mxu0 0
        %2184 = vmatprep.subr.bf16.mxu0 0
        %2185 = vmatpush1.bf16.xpose.msra.mxu0 0
        %2186 = vmatprep.subr.bf16.mxu0 0
        %2187 = vmatpush1.bf16.xpose.msra.mxu0 0
        %2188 = vmatprep.subr.bf16.mxu0 0
        %2189 = vmatpush1.bf16.xpose.msra.mxu0 0
        %2190 = vmatprep.subr.bf16.mxu0 0
        %2191 = vmatpush1.bf16.xpose.msra.mxu0 0
        %2192 = vmatprep.subr.bf16.mxu0 0
        %2193 = vmatpush1.bf16.xpose.msra.mxu0 0
        %2194 = vmatprep.subr.bf16.mxu0 0
        %2195 = vmatpush1.bf16.xpose.msra.mxu0 0
        %2196 = vmatprep.subr.bf16.mxu0 0
        %2197 = vmatpush1.bf16.xpose.msra.mxu0 0
        %2198 = vmatprep.subr.bf16.mxu0 0
        %2199 = vmatpush1.bf16.xpose.msra.mxu0 0
        %2200 = vmatprep.subr.bf16.mxu0 0
        %2201 = vmatpush1.bf16.xpose.msra.mxu0 0
        %2202 = vmatprep.subr.bf16.mxu0 0
        %2203 = vmatpush1.bf16.xpose.msra.mxu0 0
        %2204 = vmatprep.subr.bf16.mxu0 0
        %2205 = vmatpush1.bf16.xpose.msra.mxu0 0
        %2206 = vmatprep.subr.bf16.mxu0 0
        %2207 = vmatpush1.bf16.xpose.msra.mxu0 0
        %2208 = vmatprep.mubr.bf16.mxu0 0
        %2209 = vmatmul.mubr.bf16.gmra.mrb[0].mxu0 %v2171
        %v2210 = vpop.f32.mrb[0].mxu0
        %v2211 = vadd.f32 %v1079, %v2210
        %v2212 = vpop.f32.mrb[0].mxu0
        %v2213 = vpop.f32.mrb[0].mxu0
        %v2214 = vpop.f32.mrb[0].mxu0
        %2215 = vdwg.mxu0
        %2216 = vrot.lane.b32.xlu0 %v2156, 64
        %v2217 = vpop.permute.xlu0 %2216
        %v2219 = vsel %vm1234, %v2156, 0
        %v2222 = vsel %vm1234, %v2217, 0
        %2224 = vmatprep.subr.bf16.mxu0 0
        %2225 = vmatpush1.bf16.xpose.msra.mxu0 %v2222
        %2226 = vmatprep.subr.bf16.mxu0 0
        %2227 = vmatpush1.bf16.xpose.msra.mxu0 0
        %2228 = vmatprep.subr.bf16.mxu0 0
        %2229 = vmatpush1.bf16.xpose.msra.mxu0 0
        %2230 = vmatprep.subr.bf16.mxu0 0
        %2231 = vmatpush1.bf16.xpose.msra.mxu0 0
        %2232 = vmatprep.subr.bf16.mxu0 0
        %2233 = vmatpush1.bf16.xpose.msra.mxu0 0
        %2234 = vmatprep.subr.bf16.mxu0 0
        %2235 = vmatpush1.bf16.xpose.msra.mxu0 0
        %2236 = vmatprep.subr.bf16.mxu0 0
        %2237 = vmatpush1.bf16.xpose.msra.mxu0 0
        %2238 = vmatprep.subr.bf16.mxu0 0
        %2239 = vmatpush1.bf16.xpose.msra.mxu0 0
        %2240 = vmatprep.subr.bf16.mxu0 0
        %2241 = vmatpush1.bf16.xpose.msra.mxu0 0
        %2242 = vmatprep.subr.bf16.mxu0 0
        %2243 = vmatpush1.bf16.xpose.msra.mxu0 0
        %2244 = vmatprep.subr.bf16.mxu0 0
        %2245 = vmatpush1.bf16.xpose.msra.mxu0 0
        %2246 = vmatprep.subr.bf16.mxu0 0
        %2247 = vmatpush1.bf16.xpose.msra.mxu0 0
        %2248 = vmatprep.subr.bf16.mxu0 0
        %2249 = vmatpush1.bf16.xpose.msra.mxu0 0
        %2250 = vmatprep.subr.bf16.mxu0 0
        %2251 = vmatpush1.bf16.xpose.msra.mxu0 0
        %2252 = vmatprep.subr.bf16.mxu0 0
        %2253 = vmatpush1.bf16.xpose.msra.mxu0 0
        %2254 = vmatprep.subr.bf16.mxu0 0
        %2255 = vmatpush1.bf16.xpose.msra.mxu0 0
        %2256 = vmatprep.mubr.bf16.mxu0 0
        %2257 = vmatmul.mubr.bf16.gmra.mrb[0].mxu0 %v2219
        %v2258 = vpop.f32.mrb[0].mxu0
        %v2259 = vadd.f32 %v1079, %v2258
        %v2260 = vpop.f32.mrb[0].mxu0
        %v2261 = vpop.f32.mrb[0].mxu0
        %v2262 = vpop.f32.mrb[0].mxu0
        %2263 = vdwg.mxu0
        %2264 = vrot.lane.b32.xlu0 %v2158, 64
        %v2265 = vpop.permute.xlu0 %2264
        %v2267 = vsel %vm1234, %v2158, 0
        %v2270 = vsel %vm1234, %v2265, 0
        %2272 = vmatprep.subr.bf16.mxu0 0
        %2273 = vmatpush1.bf16.xpose.msra.mxu0 %v2270
        %2274 = vmatprep.subr.bf16.mxu0 0
        %2275 = vmatpush1.bf16.xpose.msra.mxu0 0
        %2276 = vmatprep.subr.bf16.mxu0 0
        %2277 = vmatpush1.bf16.xpose.msra.mxu0 0
        %2278 = vmatprep.subr.bf16.mxu0 0
        %2279 = vmatpush1.bf16.xpose.msra.mxu0 0
        %2280 = vmatprep.subr.bf16.mxu0 0
        %2281 = vmatpush1.bf16.xpose.msra.mxu0 0
        %2282 = vmatprep.subr.bf16.mxu0 0
        %2283 = vmatpush1.bf16.xpose.msra.mxu0 0
        %2284 = vmatprep.subr.bf16.mxu0 0
        %2285 = vmatpush1.bf16.xpose.msra.mxu0 0
        %2286 = vmatprep.subr.bf16.mxu0 0
        %2287 = vmatpush1.bf16.xpose.msra.mxu0 0
        %2288 = vmatprep.subr.bf16.mxu0 0
        %2289 = vmatpush1.bf16.xpose.msra.mxu0 0
        %2290 = vmatprep.subr.bf16.mxu0 0
        %2291 = vmatpush1.bf16.xpose.msra.mxu0 0
        %2292 = vmatprep.subr.bf16.mxu0 0
        %2293 = vmatpush1.bf16.xpose.msra.mxu0 0
        %2294 = vmatprep.subr.bf16.mxu0 0
        %2295 = vmatpush1.bf16.xpose.msra.mxu0 0
        %2296 = vmatprep.subr.bf16.mxu0 0
        %2297 = vmatpush1.bf16.xpose.msra.mxu0 0
        %2298 = vmatprep.subr.bf16.mxu0 0
        %2299 = vmatpush1.bf16.xpose.msra.mxu0 0
        %2300 = vmatprep.subr.bf16.mxu0 0
        %2301 = vmatpush1.bf16.xpose.msra.mxu0 0
        %2302 = vmatprep.subr.bf16.mxu0 0
        %2303 = vmatpush1.bf16.xpose.msra.mxu0 0
        %2304 = vmatprep.mubr.bf16.mxu0 0
        %2305 = vmatmul.mubr.bf16.gmra.mrb[0].mxu0 %v2267
        %v2306 = vpop.f32.mrb[0].mxu0
        %v2307 = vadd.f32 %v1079, %v2306
        %v2308 = vpop.f32.mrb[0].mxu0
        %v2309 = vpop.f32.mrb[0].mxu0
        %v2310 = vpop.f32.mrb[0].mxu0
        %2311 = vdwg.mxu0
        %2312 = vrot.lane.b32.xlu0 %v2160, 64
        %v2313 = vpop.permute.xlu0 %2312
        %v2315 = vsel %vm1234, %v2160, 0
        %v2318 = vsel %vm1234, %v2313, 0
        %2320 = vmatprep.subr.bf16.mxu0 0
        %2321 = vmatpush1.bf16.xpose.msra.mxu0 %v2318
        %2322 = vmatprep.subr.bf16.mxu0 0
        %2323 = vmatpush1.bf16.xpose.msra.mxu0 0
        %2324 = vmatprep.subr.bf16.mxu0 0
        %2325 = vmatpush1.bf16.xpose.msra.mxu0 0
        %2326 = vmatprep.subr.bf16.mxu0 0
        %2327 = vmatpush1.bf16.xpose.msra.mxu0 0
        %2328 = vmatprep.subr.bf16.mxu0 0
        %2329 = vmatpush1.bf16.xpose.msra.mxu0 0
        %2330 = vmatprep.subr.bf16.mxu0 0
        %2331 = vmatpush1.bf16.xpose.msra.mxu0 0
        %2332 = vmatprep.subr.bf16.mxu0 0
        %2333 = vmatpush1.bf16.xpose.msra.mxu0 0
        %2334 = vmatprep.subr.bf16.mxu0 0
        %2335 = vmatpush1.bf16.xpose.msra.mxu0 0
        %2336 = vmatprep.subr.bf16.mxu0 0
        %2337 = vmatpush1.bf16.xpose.msra.mxu0 0
        %2338 = vmatprep.subr.bf16.mxu0 0
        %2339 = vmatpush1.bf16.xpose.msra.mxu0 0
        %2340 = vmatprep.subr.bf16.mxu0 0
        %2341 = vmatpush1.bf16.xpose.msra.mxu0 0
        %2342 = vmatprep.subr.bf16.mxu0 0
        %2343 = vmatpush1.bf16.xpose.msra.mxu0 0
        %2344 = vmatprep.subr.bf16.mxu0 0
        %2345 = vmatpush1.bf16.xpose.msra.mxu0 0
        %2346 = vmatprep.subr.bf16.mxu0 0
        %2347 = vmatpush1.bf16.xpose.msra.mxu0 0
        %2348 = vmatprep.subr.bf16.mxu0 0
        %2349 = vmatpush1.bf16.xpose.msra.mxu0 0
        %2350 = vmatprep.subr.bf16.mxu0 0
        %2351 = vmatpush1.bf16.xpose.msra.mxu0 0
        %2352 = vmatprep.mubr.bf16.mxu0 0
        %2353 = vmatmul.mubr.bf16.gmra.mrb[0].mxu0 %v2315
        %v2354 = vpop.f32.mrb[0].mxu0
        %v2355 = vadd.f32 %v1079, %v2354
        %v2356 = vpop.f32.mrb[0].mxu0
        %v2357 = vpop.f32.mrb[0].mxu0
        %v2358 = vpop.f32.mrb[0].mxu0
        %2359 = vdwg.mxu0
        %v2360 = vsel %vm1425, %v2211, -inf
        %2361 = vmax.xlane.f32.xlu0 %v2360
        %v2362 = vpop.xlane.xlu0 %2361
        %v2363 = vsel %vm1425, %v2259, -inf
        %2364 = vmax.xlane.f32.xlu0 %v2363
        %v2365 = vpop.xlane.xlu0 %2364
        %v2366 = vsel %vm1425, %v2307, -inf
        %2367 = vmax.xlane.f32.xlu0 %v2366
        %v2368 = vpop.xlane.xlu0 %2367
        %v2369 = vsel %vm1425, %v2355, -inf
        %2370 = vmax.xlane.f32.xlu0 %v2369
        %v2371 = vpop.xlane.xlu0 %2370
        %v2372 = vsub.f32 %v2211, %v2362
        %v2373 = vsub.f32 %v2259, %v2365
        %v2374 = vsub.f32 %v2307, %v2368
        %v2375 = vsub.f32 %v2355, %v2371
        %v2376 = vmul.f32 %v2372, 1.442695
        %v2377 = vpow.pop %v2376
        %v2378 = vmul.f32 %v2373, 1.442695
        %v2379 = vpow.pop %v2378
        %v2380 = vmul.f32 %v2374, 1.442695
        %v2381 = vpow.pop %v2380
        %v2382 = vmul.f32 %v2375, 1.442695
        %v2383 = vpow.pop %v2382
        %v2384 = vsel %vm1425, %v2377, 0.0
        %2385 = vadd.xlane.f32.xlu0 %v2384
        %v2386 = vpop.xlane.xlu0 %2385
        %v2387 = vsel %vm1425, %v2379, 0.0
        %2388 = vadd.xlane.f32.xlu0 %v2387
        %v2389 = vpop.xlane.xlu0 %2388
        %v2390 = vsel %vm1425, %v2381, 0.0
        %2391 = vadd.xlane.f32.xlu0 %v2390
        %v2392 = vpop.xlane.xlu0 %2391
        %v2393 = vsel %vm1425, %v2383, 0.0
        %2394 = vadd.xlane.f32.xlu0 %v2393
        %v2395 = vpop.xlane.xlu0 %2394
        %v2396 = vrcp.pop %v2386
        %v2397 = vrcp.pop %v2389
        %v2398 = vrcp.pop %v2392
        %v2399 = vrcp.pop %v2395
        %v2400 = vmul.f32 %v2377, %v2396
        %v2401 = vmul.f32 %v2379, %v2397
        %v2402 = vmul.f32 %v2381, %v2398
        %v2403 = vmul.f32 %v2383, %v2399
        %v2404 = vpack.c.bf16 %v2400, %v2400
        %v2405 = vpack.c.bf16 %v2401, %v2401
        %v2406 = vpack.c.bf16 %v2402, %v2402
        %v2407 = vpack.c.bf16 %v2403, %v2403
        %v2409 = vsel %vm1425, %v2404, 0
        %v2412 = vsel %vm1477, %v2153, 0
        %2414 = vmatprep.subr.bf16.mxu0 0
        %2415 = vmatpush1.bf16.msra.mxu0 %v2412
        %2416 = vmatprep.subr.bf16.mxu0 0
        %2417 = vmatpush1.bf16.msra.mxu0 0
        %2418 = vmatprep.subr.bf16.mxu0 0
        %2419 = vmatpush1.bf16.msra.mxu0 0
        %2420 = vmatprep.subr.bf16.mxu0 0
        %2421 = vmatpush1.bf16.msra.mxu0 0
        %2422 = vmatprep.subr.bf16.mxu0 0
        %2423 = vmatpush1.bf16.msra.mxu0 0
        %2424 = vmatprep.subr.bf16.mxu0 0
        %2425 = vmatpush1.bf16.msra.mxu0 0
        %2426 = vmatprep.subr.bf16.mxu0 0
        %2427 = vmatpush1.bf16.msra.mxu0 0
        %2428 = vmatprep.subr.bf16.mxu0 0
        %2429 = vmatpush1.bf16.msra.mxu0 0
        %2430 = vmatprep.subr.bf16.mxu0 0
        %2431 = vmatpush1.bf16.msra.mxu0 0
        %2432 = vmatprep.subr.bf16.mxu0 0
        %2433 = vmatpush1.bf16.msra.mxu0 0
        %2434 = vmatprep.subr.bf16.mxu0 0
        %2435 = vmatpush1.bf16.msra.mxu0 0
        %2436 = vmatprep.subr.bf16.mxu0 0
        %2437 = vmatpush1.bf16.msra.mxu0 0
        %2438 = vmatprep.subr.bf16.mxu0 0
        %2439 = vmatpush1.bf16.msra.mxu0 0
        %2440 = vmatprep.subr.bf16.mxu0 0
        %2441 = vmatpush1.bf16.msra.mxu0 0
        %2442 = vmatprep.subr.bf16.mxu0 0
        %2443 = vmatpush1.bf16.msra.mxu0 0
        %2444 = vmatprep.subr.bf16.mxu0 0
        %2445 = vmatpush1.bf16.msra.mxu0 0
        %2446 = vmatprep.mubr.bf16.mxu0 0
        %2447 = vmatmul.mubr.bf16.gmra.mrb[0].mxu0 %v2409
        %v2448 = vpop.f32.mrb[0].mxu0
        %v2449 = vadd.f32 0.0, %v2448
        %v2450 = vpop.f32.mrb[0].mxu0
        %v2451 = vpop.f32.mrb[0].mxu0
        %v2452 = vpop.f32.mrb[0].mxu0
        %2453 = vdwg.mxu0
        %v2455 = vsel %vm1425, %v2405, 0
        %v2458 = vsel %vm1477, %v2163, 0
        %2460 = vmatprep.subr.bf16.mxu0 0
        %2461 = vmatpush1.bf16.msra.mxu0 %v2458
        %2462 = vmatprep.subr.bf16.mxu0 0
        %2463 = vmatpush1.bf16.msra.mxu0 0
        %2464 = vmatprep.subr.bf16.mxu0 0
        %2465 = vmatpush1.bf16.msra.mxu0 0
        %2466 = vmatprep.subr.bf16.mxu0 0
        %2467 = vmatpush1.bf16.msra.mxu0 0
        %2468 = vmatprep.subr.bf16.mxu0 0
        %2469 = vmatpush1.bf16.msra.mxu0 0
        %2470 = vmatprep.subr.bf16.mxu0 0
        %2471 = vmatpush1.bf16.msra.mxu0 0
        %2472 = vmatprep.subr.bf16.mxu0 0
        %2473 = vmatpush1.bf16.msra.mxu0 0
        %2474 = vmatprep.subr.bf16.mxu0 0
        %2475 = vmatpush1.bf16.msra.mxu0 0
        %2476 = vmatprep.subr.bf16.mxu0 0
        %2477 = vmatpush1.bf16.msra.mxu0 0
        %2478 = vmatprep.subr.bf16.mxu0 0
        %2479 = vmatpush1.bf16.msra.mxu0 0
        %2480 = vmatprep.subr.bf16.mxu0 0
        %2481 = vmatpush1.bf16.msra.mxu0 0
        %2482 = vmatprep.subr.bf16.mxu0 0
        %2483 = vmatpush1.bf16.msra.mxu0 0
        %2484 = vmatprep.subr.bf16.mxu0 0
        %2485 = vmatpush1.bf16.msra.mxu0 0
        %2486 = vmatprep.subr.bf16.mxu0 0
        %2487 = vmatpush1.bf16.msra.mxu0 0
        %2488 = vmatprep.subr.bf16.mxu0 0
        %2489 = vmatpush1.bf16.msra.mxu0 0
        %2490 = vmatprep.subr.bf16.mxu0 0
        %2491 = vmatpush1.bf16.msra.mxu0 0
        %2492 = vmatprep.mubr.bf16.mxu0 0
        %2493 = vmatmul.mubr.bf16.gmra.mrb[0].mxu0 %v2455
        %v2494 = vpop.f32.mrb[0].mxu0
        %v2495 = vadd.f32 0.0, %v2494
        %v2496 = vpop.f32.mrb[0].mxu0
        %v2497 = vpop.f32.mrb[0].mxu0
        %v2498 = vpop.f32.mrb[0].mxu0
        %2499 = vdwg.mxu0
        %v2501 = vsel %vm1425, %v2406, 0
        %v2504 = vsel %vm1477, %v2165, 0
        %2506 = vmatprep.subr.bf16.mxu0 0
        %2507 = vmatpush1.bf16.msra.mxu0 %v2504
        %2508 = vmatprep.subr.bf16.mxu0 0
        %2509 = vmatpush1.bf16.msra.mxu0 0
        %2510 = vmatprep.subr.bf16.mxu0 0
        %2511 = vmatpush1.bf16.msra.mxu0 0
        %2512 = vmatprep.subr.bf16.mxu0 0
        %2513 = vmatpush1.bf16.msra.mxu0 0
        %2514 = vmatprep.subr.bf16.mxu0 0
        %2515 = vmatpush1.bf16.msra.mxu0 0
        %2516 = vmatprep.subr.bf16.mxu0 0
        %2517 = vmatpush1.bf16.msra.mxu0 0
        %2518 = vmatprep.subr.bf16.mxu0 0
        %2519 = vmatpush1.bf16.msra.mxu0 0
        %2520 = vmatprep.subr.bf16.mxu0 0
        %2521 = vmatpush1.bf16.msra.mxu0 0
        %2522 = vmatprep.subr.bf16.mxu0 0
        %2523 = vmatpush1.bf16.msra.mxu0 0
        %2524 = vmatprep.subr.bf16.mxu0 0
        %2525 = vmatpush1.bf16.msra.mxu0 0
        %2526 = vmatprep.subr.bf16.mxu0 0
        %2527 = vmatpush1.bf16.msra.mxu0 0
        %2528 = vmatprep.subr.bf16.mxu0 0
        %2529 = vmatpush1.bf16.msra.mxu0 0
        %2530 = vmatprep.subr.bf16.mxu0 0
        %2531 = vmatpush1.bf16.msra.mxu0 0
        %2532 = vmatprep.subr.bf16.mxu0 0
        %2533 = vmatpush1.bf16.msra.mxu0 0
        %2534 = vmatprep.subr.bf16.mxu0 0
        %2535 = vmatpush1.bf16.msra.mxu0 0
        %2536 = vmatprep.subr.bf16.mxu0 0
        %2537 = vmatpush1.bf16.msra.mxu0 0
        %2538 = vmatprep.mubr.bf16.mxu0 0
        %2539 = vmatmul.mubr.bf16.gmra.mrb[0].mxu0 %v2501
        %v2540 = vpop.f32.mrb[0].mxu0
        %v2541 = vadd.f32 0.0, %v2540
        %v2542 = vpop.f32.mrb[0].mxu0
        %v2543 = vpop.f32.mrb[0].mxu0
        %v2544 = vpop.f32.mrb[0].mxu0
        %2545 = vdwg.mxu0
        %v2547 = vsel %vm1425, %v2407, 0
        %v2550 = vsel %vm1477, %v2167, 0
        %2552 = vmatprep.subr.bf16.mxu0 0
        %2553 = vmatpush1.bf16.msra.mxu0 %v2550
        %2554 = vmatprep.subr.bf16.mxu0 0
        %2555 = vmatpush1.bf16.msra.mxu0 0
        %2556 = vmatprep.subr.bf16.mxu0 0
        %2557 = vmatpush1.bf16.msra.mxu0 0
        %2558 = vmatprep.subr.bf16.mxu0 0
        %2559 = vmatpush1.bf16.msra.mxu0 0
        %2560 = vmatprep.subr.bf16.mxu0 0
        %2561 = vmatpush1.bf16.msra.mxu0 0
        %2562 = vmatprep.subr.bf16.mxu0 0
        %2563 = vmatpush1.bf16.msra.mxu0 0
        %2564 = vmatprep.subr.bf16.mxu0 0
        %2565 = vmatpush1.bf16.msra.mxu0 0
        %2566 = vmatprep.subr.bf16.mxu0 0
        %2567 = vmatpush1.bf16.msra.mxu0 0
        %2568 = vmatprep.subr.bf16.mxu0 0
        %2569 = vmatpush1.bf16.msra.mxu0 0
        %2570 = vmatprep.subr.bf16.mxu0 0
        %2571 = vmatpush1.bf16.msra.mxu0 0
        %2572 = vmatprep.subr.bf16.mxu0 0
        %2573 = vmatpush1.bf16.msra.mxu0 0
        %2574 = vmatprep.subr.bf16.mxu0 0
        %2575 = vmatpush1.bf16.msra.mxu0 0
        %2576 = vmatprep.subr.bf16.mxu0 0
        %2577 = vmatpush1.bf16.msra.mxu0 0
        %2578 = vmatprep.subr.bf16.mxu0 0
        %2579 = vmatpush1.bf16.msra.mxu0 0
        %2580 = vmatprep.subr.bf16.mxu0 0
        %2581 = vmatpush1.bf16.msra.mxu0 0
        %2582 = vmatprep.subr.bf16.mxu0 0
        %2583 = vmatpush1.bf16.msra.mxu0 0
        %2584 = vmatprep.mubr.bf16.mxu0 0
        %2585 = vmatmul.mubr.bf16.gmra.mrb[0].mxu0 %v2547
        %v2586 = vpop.f32.mrb[0].mxu0
        %v2587 = vadd.f32 0.0, %v2586
        %v2588 = vpop.f32.mrb[0].mxu0
        %v2589 = vpop.f32.mrb[0].mxu0
        %v2590 = vpop.f32.mrb[0].mxu0
        %2591 = vdwg.mxu0
        %2593 = vrot.lane.b32.xlu0 %v2495, 16
        %v2594 = vpop.permute.xlu0 %2593
        %2597 = vrot.lane.b32.xlu0 %v2541, 32
        %v2598 = vpop.permute.xlu0 %2597
        %2601 = vrot.lane.b32.xlu0 %v2587, 48
        %v2602 = vpop.permute.xlu0 %2601
        %v2604 = vsel %vm1234, %v2449, %v2594
        %v2605 = vsel %vm1672, %v2604, %v2598
        %v2606 = vsel %vm1674, %v2605, %v2602
        %v2607 = vpack.c.bf16 %v2606, %v2606
        %s2608 = scalar_lea.vmem %s7, 32
        %v2609 = vld [vmem:[%s2608] sm:$0xf]
        %v2610 = vld [vmem:[%s2608 + $0x4] sm:$0xf]
        %v2611 = vld [vmem:[%s2608 + $0x8] sm:$0xf]
        %v2612 = vld [vmem:[%s2608 + $0xc] sm:$0xf]
        %v2613 = vld [vmem:[%s2608 + $0x10] sm:$0xf]
        %v2614 = vld [vmem:[%s2608 + $0x14] sm:$0xf]
        %v2615 = vld [vmem:[%s2608 + $0x18] sm:$0xf]
        %v2616 = vld [vmem:[%s2608 + $0x1c] sm:$0xf]
        %v2625 = vunpack.c.l.b16 %v2609
        %v2626 = vunpack.c.l.b16 %v2610
        %v2627 = vunpack.c.l.b16 %v2611
        %v2628 = vunpack.c.l.b16 %v2612
        %v2629 = vunpack.c.l.b16 %v2613
        %v2630 = vunpack.c.l.b16 %v2614
        %v2631 = vunpack.c.l.b16 %v2615
        %v2632 = vunpack.c.l.b16 %v2616
        %v2633 = vpack.c.b16 %v2626, %v2625
        %v2634 = vpack.c.b16 %v2628, %v2627
        %v2635 = vpack.c.b16 %v2630, %v2629
        %v2636 = vpack.c.b16 %v2632, %v2631
        %v2642 = vsel %vm1082, %v2607, 0
        %2644 = vmatprep.subr.bf16.mxu0 0
        %2645 = vmatpush1.bf16.msra.mxu0 %v2633
        %2646 = vmatprep.subr.bf16.mxu0 0
        %2647 = vmatpush1.bf16.msra.mxu0 %v2634
        %2648 = vmatprep.subr.bf16.mxu0 0
        %2649 = vmatpush1.bf16.msra.mxu0 %v2635
        %2650 = vmatprep.subr.bf16.mxu0 0
        %2651 = vmatpush1.bf16.msra.mxu0 %v2636
        %2652 = vmatprep.subr.bf16.mxu0 0
        %2653 = vmatpush1.bf16.msra.mxu0 0
        %2654 = vmatprep.subr.bf16.mxu0 0
        %2655 = vmatpush1.bf16.msra.mxu0 0
        %2656 = vmatprep.subr.bf16.mxu0 0
        %2657 = vmatpush1.bf16.msra.mxu0 0
        %2658 = vmatprep.subr.bf16.mxu0 0
        %2659 = vmatpush1.bf16.msra.mxu0 0
        %2660 = vmatprep.subr.bf16.mxu0 0
        %2661 = vmatpush1.bf16.msra.mxu0 0
        %2662 = vmatprep.subr.bf16.mxu0 0
        %2663 = vmatpush1.bf16.msra.mxu0 0
        %2664 = vmatprep.subr.bf16.mxu0 0
        %2665 = vmatpush1.bf16.msra.mxu0 0
        %2666 = vmatprep.subr.bf16.mxu0 0
        %2667 = vmatpush1.bf16.msra.mxu0 0
        %2668 = vmatprep.subr.bf16.mxu0 0
        %2669 = vmatpush1.bf16.msra.mxu0 0
        %2670 = vmatprep.subr.bf16.mxu0 0
        %2671 = vmatpush1.bf16.msra.mxu0 0
        %2672 = vmatprep.subr.bf16.mxu0 0
        %2673 = vmatpush1.bf16.msra.mxu0 0
        %2674 = vmatprep.subr.bf16.mxu0 0
        %2675 = vmatpush1.bf16.msra.mxu0 0
        %2676 = vmatprep.mubr.bf16.mxu0 0
        %2677 = vmatmul.mubr.bf16.gmra.mrb[0].mxu0 %v2642
        %v2678 = vpop.f32.mrb[0].mxu0
        %v2679 = vadd.f32 0.0, %v2678
        %v2680 = vpop.f32.mrb[0].mxu0
        %v2681 = vpop.f32.mrb[0].mxu0
        %v2682 = vpop.f32.mrb[0].mxu0
        %2683 = vdwg.mxu0
        %v2684 = vadd.f32 %v2013, %v2679
        %s2685 = scalar_lea.vmem %s8, 1
        %v2686 = vld [vmem:[%s2685] sm:$0x1]
        %v2688 = vlaneseq
        %v2689 = vshrl.u32 %v2688, 7
        %v2690 = vsub.s32 0, %v2689
        %v2691 = vrot.slane %v2686, %v2690
        %v2693 = vadd.f32 %v2684, %v2691
        %s2694 = scalar_lea.vmem %s9, 1
        %v2695 = vld [vmem:[%s2694] sm:$0x1]
        %s2696 = scalar_lea.vmem %s10, 1
        %v2697 = vld [vmem:[%s2696] sm:$0x1]
        %v2698 = vsel %vm1082, %v2693, 0.0
        %2699 = vadd.xlane.f32.xlu0 %v2698
        %v2700 = vpop.xlane.xlu0 %2699
        %v2701 = vmul.f32 %v2700, %v1086
        %v2702 = vsub.f32 %v2693, %v2701
        %v2703 = vmul.f32 %v2702, %v2702
        %v2704 = vsel %vm1082, %v2703, 0.0
        %2705 = vadd.xlane.f32.xlu0 %v2704
        %v2706 = vpop.xlane.xlu0 %2705
        %v2707 = vmul.f32 %v2706, %v1086
        %v2708 = vadd.f32 %v2707, 1e-06
        %v2709 = vrsqrt.pop %v2708
        %v2710 = vmul.f32 %v2702, %v2709
        %v2712 = vlaneseq
        %v2713 = vshrl.u32 %v2712, 7
        %v2714 = vsub.s32 0, %v2713
        %v2715 = vrot.slane %v2695, %v2714
        %v2717 = vmul.f32 %v2710, %v2715
        %v2719 = vlaneseq
        %v2720 = vshrl.u32 %v2719, 7
        %v2721 = vsub.s32 0, %v2720
        %v2722 = vrot.slane %v2697, %v2721
        %v2724 = vadd.f32 %v2717, %v2722
        %v2725 = vpack.c.bf16 %v2724, %v2724
        %s2726 = scalar_lea.vmem %s11, 32
        %v2727 = vld [vmem:[%s2726] sm:$0xf]
        %v2728 = vld [vmem:[%s2726 + $0x4] sm:$0xf]
        %v2729 = vld [vmem:[%s2726 + $0x8] sm:$0xf]
        %v2730 = vld [vmem:[%s2726 + $0xc] sm:$0xf]
        %v2731 = vld [vmem:[%s2726 + $0x10] sm:$0xf]
        %v2732 = vld [vmem:[%s2726 + $0x14] sm:$0xf]
        %v2733 = vld [vmem:[%s2726 + $0x18] sm:$0xf]
        %v2734 = vld [vmem:[%s2726 + $0x1c] sm:$0xf]
        %s2735 = scalar_lea.vmem %s12, 1
        %v2736 = vld [vmem:[%s2735] sm:$0x1]
        %v2738 = vlaneseq
        %v2739 = vshrl.u32 %v2738, 7
        %v2740 = vsub.s32 0, %v2739
        %v2741 = vrot.slane %v2736, %v2740
        %v2751 = vunpack.c.l.b16 %v2727
        %v2752 = vunpack.c.l.b16 %v2728
        %v2753 = vunpack.c.l.b16 %v2729
        %v2754 = vunpack.c.l.b16 %v2730
        %v2755 = vunpack.c.l.b16 %v2731
        %v2756 = vunpack.c.l.b16 %v2732
        %v2757 = vunpack.c.l.b16 %v2733
        %v2758 = vunpack.c.l.b16 %v2734
        %v2759 = vpack.c.b16 %v2752, %v2751
        %v2760 = vpack.c.b16 %v2754, %v2753
        %v2761 = vpack.c.b16 %v2756, %v2755
        %v2762 = vpack.c.b16 %v2758, %v2757
        %v2768 = vsel %vm1082, %v2725, 0
        %2770 = vmatprep.subr.bf16.mxu0 0
        %2771 = vmatpush1.bf16.msra.mxu0 %v2759
        %2772 = vmatprep.subr.bf16.mxu0 0
        %2773 = vmatpush1.bf16.msra.mxu0 %v2760
        %2774 = vmatprep.subr.bf16.mxu0 0
        %2775 = vmatpush1.bf16.msra.mxu0 %v2761
        %2776 = vmatprep.subr.bf16.mxu0 0
        %2777 = vmatpush1.bf16.msra.mxu0 %v2762
        %2778 = vmatprep.subr.bf16.mxu0 0
        %2779 = vmatpush1.bf16.msra.mxu0 0
        %2780 = vmatprep.subr.bf16.mxu0 0
        %2781 = vmatpush1.bf16.msra.mxu0 0
        %2782 = vmatprep.subr.bf16.mxu0 0
        %2783 = vmatpush1.bf16.msra.mxu0 0
        %2784 = vmatprep.subr.bf16.mxu0 0
        %2785 = vmatpush1.bf16.msra.mxu0 0
        %2786 = vmatprep.subr.bf16.mxu0 0
        %2787 = vmatpush1.bf16.msra.mxu0 0
        %2788 = vmatprep.subr.bf16.mxu0 0
        %2789 = vmatpush1.bf16.msra.mxu0 0
        %2790 = vmatprep.subr.bf16.mxu0 0
        %2791 = vmatpush1.bf16.msra.mxu0 0
        %2792 = vmatprep.subr.bf16.mxu0 0
        %2793 = vmatpush1.bf16.msra.mxu0 0
        %2794 = vmatprep.subr.bf16.mxu0 0
        %2795 = vmatpush1.bf16.msra.mxu0 0
        %2796 = vmatprep.subr.bf16.mxu0 0
        %2797 = vmatpush1.bf16.msra.mxu0 0
        %2798 = vmatprep.subr.bf16.mxu0 0
        %2799 = vmatpush1.bf16.msra.mxu0 0
        %2800 = vmatprep.subr.bf16.mxu0 0
        %2801 = vmatpush1.bf16.msra.mxu0 0
        %2802 = vmatprep.mubr.bf16.mxu0 0
        %2803 = vmatmul.mubr.bf16.gmra.mrb[0].mxu0 %v2768
        %v2804 = vpop.f32.mrb[0].mxu0
        %v2805 = vadd.f32 %v2741, %v2804
        %v2806 = vpop.f32.mrb[0].mxu0
        %v2807 = vpop.f32.mrb[0].mxu0
        %v2808 = vpop.f32.mrb[0].mxu0
        %2809 = vdwg.mxu0
        %v2810 = vmul.f32 %v2805, 0.5
        %v2811 = vmul.f32 %v2805, 0.70710677
        %vm2812 = vcmp.ge.f32.partialorder %v2811, 0.0
        %v2813 = vsel %vm2812, 1.0, -1.0
        %v2814 = vand.u32 2147483647, %v2811
        %v2815 = vmul.f32 %v2814, 0.3275911
        %v2816 = vadd.f32 %v2815, 1.0
        %v2817 = vrcp.pop %v2816
        %v2818 = vmul.f32 1.0, %v2817
        %v2819 = vmul.f32 %v2818, 1.0614054
        %v2820 = vadd.f32 %v2819, -1.4531521
        %v2821 = vmul.f32 %v2820, %v2818
        %v2822 = vadd.f32 %v2821, 1.4214138
        %v2823 = vmul.f32 %v2822, %v2818
        %v2824 = vadd.f32 %v2823, -0.28449672
        %v2825 = vmul.f32 %v2824, %v2818
        %v2826 = vadd.f32 %v2825, 0.2548296
        %v2827 = vmul.f32 %v2826, %v2818
        %v2828 = vsub.f32 0.0, %v2814
        %v2829 = vmul.f32 %v2828, %v2814
        %v2830 = vmul.f32 %v2829, 1.442695
        %v2831 = vpow.pop %v2830
        %v2832 = vmul.f32 %v2827, %v2831
        %v2833 = vsub.f32 1.0, %v2832
        %v2834 = vmul.f32 %v2813, %v2833
        %v2835 = vadd.f32 %v2834, 1.0
        %v2836 = vmul.f32 %v2810, %v2835
        %v2837 = vpack.c.bf16 %v2836, %v2836
        %s2838 = scalar_lea.vmem %s13, 64
        %v2839 = vld [vmem:[%s2838] sm:$0xf]
        %v2840 = vld [vmem:[%s2838 + $0x4] sm:$0xf]
        %v2841 = vld [vmem:[%s2838 + $0x8] sm:$0xf]
        %v2842 = vld [vmem:[%s2838 + $0xc] sm:$0xf]
        %v2843 = vld [vmem:[%s2838 + $0x10] sm:$0xf]
        %v2844 = vld [vmem:[%s2838 + $0x14] sm:$0xf]
        %v2845 = vld [vmem:[%s2838 + $0x18] sm:$0xf]
        %v2846 = vld [vmem:[%s2838 + $0x1c] sm:$0xf]
        %v2847 = vld [vmem:[%s2838 + $0x20] sm:$0xf]
        %v2848 = vld [vmem:[%s2838 + $0x24] sm:$0xf]
        %v2849 = vld [vmem:[%s2838 + $0x28] sm:$0xf]
        %v2850 = vld [vmem:[%s2838 + $0x2c] sm:$0xf]
        %v2851 = vld [vmem:[%s2838 + $0x30] sm:$0xf]
        %v2852 = vld [vmem:[%s2838 + $0x34] sm:$0xf]
        %v2853 = vld [vmem:[%s2838 + $0x38] sm:$0xf]
        %v2854 = vld [vmem:[%s2838 + $0x3c] sm:$0xf]
        %v2871 = vunpack.c.l.b16 %v2839
        %v2872 = vunpack.c.l.b16 %v2840
        %v2873 = vunpack.c.l.b16 %v2841
        %v2874 = vunpack.c.l.b16 %v2842
        %v2875 = vunpack.c.l.b16 %v2843
        %v2876 = vunpack.c.l.b16 %v2844
        %v2877 = vunpack.c.l.b16 %v2845
        %v2878 = vunpack.c.l.b16 %v2846
        %v2879 = vunpack.c.l.b16 %v2847
        %v2880 = vunpack.c.l.b16 %v2848
        %v2881 = vunpack.c.l.b16 %v2849
        %v2882 = vunpack.c.l.b16 %v2850
        %v2883 = vunpack.c.l.b16 %v2851
        %v2884 = vunpack.c.l.b16 %v2852
        %v2885 = vunpack.c.l.b16 %v2853
        %v2886 = vunpack.c.l.b16 %v2854
        %v2887 = vpack.c.b16 %v2872, %v2871
        %v2888 = vpack.c.b16 %v2874, %v2873
        %v2889 = vpack.c.b16 %v2876, %v2875
        %v2890 = vpack.c.b16 %v2878, %v2877
        %v2891 = vpack.c.b16 %v2880, %v2879
        %v2892 = vpack.c.b16 %v2882, %v2881
        %v2893 = vpack.c.b16 %v2884, %v2883
        %v2894 = vpack.c.b16 %v2886, %v2885
        %2903 = vmatprep.subr.bf16.mxu0 0
        %2904 = vmatpush1.bf16.msra.mxu0 %v2887
        %2905 = vmatprep.subr.bf16.mxu0 0
        %2906 = vmatpush1.bf16.msra.mxu0 %v2888
        %2907 = vmatprep.subr.bf16.mxu0 0
        %2908 = vmatpush1.bf16.msra.mxu0 %v2889
        %2909 = vmatprep.subr.bf16.mxu0 0
        %2910 = vmatpush1.bf16.msra.mxu0 %v2890
        %2911 = vmatprep.subr.bf16.mxu0 0
        %2912 = vmatpush1.bf16.msra.mxu0 %v2891
        %2913 = vmatprep.subr.bf16.mxu0 0
        %2914 = vmatpush1.bf16.msra.mxu0 %v2892
        %2915 = vmatprep.subr.bf16.mxu0 0
        %2916 = vmatpush1.bf16.msra.mxu0 %v2893
        %2917 = vmatprep.subr.bf16.mxu0 0
        %2918 = vmatpush1.bf16.msra.mxu0 %v2894
        %2919 = vmatprep.subr.bf16.mxu0 0
        %2920 = vmatpush1.bf16.msra.mxu0 0
        %2921 = vmatprep.subr.bf16.mxu0 0
        %2922 = vmatpush1.bf16.msra.mxu0 0
        %2923 = vmatprep.subr.bf16.mxu0 0
        %2924 = vmatpush1.bf16.msra.mxu0 0
        %2925 = vmatprep.subr.bf16.mxu0 0
        %2926 = vmatpush1.bf16.msra.mxu0 0
        %2927 = vmatprep.subr.bf16.mxu0 0
        %2928 = vmatpush1.bf16.msra.mxu0 0
        %2929 = vmatprep.subr.bf16.mxu0 0
        %2930 = vmatpush1.bf16.msra.mxu0 0
        %2931 = vmatprep.subr.bf16.mxu0 0
        %2932 = vmatpush1.bf16.msra.mxu0 0
        %2933 = vmatprep.subr.bf16.mxu0 0
        %2934 = vmatpush1.bf16.msra.mxu0 0
        %2935 = vmatprep.mubr.bf16.mxu0 0
        %2936 = vmatmul.mubr.bf16.gmra.mrb[0].mxu0 %v2837
        %v2937 = vpop.f32.mrb[0].mxu0
        %v2938 = vadd.f32 0.0, %v2937
        %v2939 = vpop.f32.mrb[0].mxu0
        %v2940 = vpop.f32.mrb[0].mxu0
        %v2941 = vpop.f32.mrb[0].mxu0
        %2942 = vdwg.mxu0
        %v2943 = vadd.f32 %v2693, %v2938
        %s2944 = scalar_lea.vmem %s14, 1
        %v2945 = vld [vmem:[%s2944] sm:$0x1]
        %v2947 = vlaneseq
        %v2948 = vshrl.u32 %v2947, 7
        %v2949 = vsub.s32 0, %v2948
        %v2950 = vrot.slane %v2945, %v2949
        %v2952 = vadd.f32 %v2943, %v2950
        %v2953 = vld [vmem:[%s15] sm:$0x1]
        %v2954 = vld [vmem:[%s16] sm:$0x1]
        %vm2955 = vcmask 516096
        %v2956 = vsel %vm2955, %v2952, 0.0
        %2957 = vadd.xlane.f32.xlu0 %v2956
        %v2958 = vpop.xlane.xlu0 %2957
        %v2959 = vmul.f32 %v2958, %v1086
        %v2960 = vsub.f32 %v2952, %v2959
        %v2961 = vmul.f32 %v2960, %v2960
        %v2962 = vsel %vm2955, %v2961, 0.0
        %2963 = vadd.xlane.f32.xlu0 %v2962
        %v2964 = vpop.xlane.xlu0 %2963
        %v2965 = vmul.f32 %v2964, %v1086
        %v2966 = vadd.f32 %v2965, 1e-06
        %v2967 = vrsqrt.pop %v2966
        %v2968 = vmul.f32 %v2960, %v2967
        %v2969 = vmul.f32 %v2968, %v2953
        %v2970 = vadd.f32 %v2969, %v2954
        %2971 = vst.msk [vmem:[%s540] sm:$0x1] %vm2955, %v2970
        %s2972 = sand.u32 %s401, 1
        %s2973 = scalar_lea.sflag [#allocation3], %s2972
        %s2974 = sand.u32 %s401, 1
        %s2975 = scalar_lea.vmem [#allocation2], %s2974
        // Predicated region
        $region89: #{vit_forward.1} parent=87 // pred_check
          %p2976 = pneg %p411
        $region90: #{vit_forward.1} parent=87 // pred_check_branch
          %2978 = sbr.rel (%p2976) target = $region92
        $region91: #{vit_forward.1} parent=87 // pred_region
          %s2980 = ssub.s32 16, 16
          %2981 = vsyncadd %s2973, %s2980
          %s2982 = smul.addr %s31, 16
          %s2983 = scalar_lea.hbm %s17, %s2982
          %s2985 = sshll.u32 %s2975, 4
          %s2986 = int_to_ptr.vmem [resolvable:$true] %s2985
          %2988 = dma.vmem_to_hbm [thread:$0]  %s2986, 16, %s2983, %s2973
        $region92: #{vit_forward.1} parent=87 // pred_fallthru
          _
      $region88: #{vit_forward.1} parent=5 // pred_fallthru
        _
      %p2989 = scmp.le.s32.totalorder 2, %s26
      // Predicated region
      $region93: #{vit_forward.1} parent=5 // pred_check
        %p2990 = pneg %p2989
      $region94: #{vit_forward.1} parent=5 // pred_check_branch
        %2992 = sbr.rel (%p2990) target = $region96
      $region95: #{vit_forward.1} parent=5 // pred_region
        %s2993 = ssub.s32 %s26, 2
        // Predicated region
        $region97: #{vit_forward.1} parent=95 // pred_check
          %p2994 = pneg %p417
        $region98: #{vit_forward.1} parent=95 // pred_check_branch
          %2996 = sbr.rel (%p2994) target = $region100
        $region99: #{vit_forward.1} parent=95 // pred_region
          %s2997 = sand.u32 %s402, 1
          %s2998 = scalar_lea.sflag [#allocation3], %s2997
          %s2999 = sand.u32 %s402, 1
          %s3000 = scalar_lea.vmem [#allocation2], %s2999
          %3001 = dma.done %s2998, 16
        $region100: #{vit_forward.1} parent=95 // pred_fallthru
          _
      $region96: #{vit_forward.1} parent=5 // pred_fallthru
        _
    $region6: #{vit_forward.1} parent=1 // loop_footer
      %s30 = sadd.s32 1, %s26
    $region7: #{vit_forward.1} parent=1 // loop_footer_branch
      %25 = sbr.rel target = $region3
    $region8: #{vit_forward.1} parent=1 // loop_exit
      _
    %3002 = vsyncpa [#allocation3], 1
    %s3003 = scalar_lea.sflag [#allocation3], 1
    %3004 = vsyncpa %s3003, 1

</llo_original>
